<compile_context>
chip_gen: v5e
topology: v5e:2x2
jax: 0.10.0
libtpu: 0.0.40
codegen_flags: <defaults>
</compile_context>

<pallas_src>
import math
from functools import partial

import jax
import jax.numpy as jnp
from jax import lax
from jax.experimental import pallas as pl
from jax.experimental.pallas import tpu as pltpu

NEG_INF = -1e30  # masked-score value (f32); exp() underflows to exactly 0


# ----------------------------------------------------------------------------
# Small helpers
# ----------------------------------------------------------------------------
def _tpu_vmem_bytes(default=64 << 20):
    try:
        return int(pltpu.get_tpu_info().vmem_capacity_bytes)
    except Exception:
        return default  # conservative (v7x-sized) assumption


def _vmem_limit_bytes():
    cap = _tpu_vmem_bytes()
    if cap >= (100 << 20):      # v5e / v6e: 128 MiB physical VMEM
        return 100 << 20
    return 52 << 20             # v7x: 64 MiB / TC, leave DMA/scratch headroom


def _pick_block_b(B, S, target_rows=512):
    """Largest divisor of B keeping Bb*S rows near target, but >=2 grid steps
    on the 'parallel' batch axis when possible (megacore / v7x)."""
    best = 1
    for d in range(1, B + 1):
        if B % d == 0 and d * S <= max(S, target_rows):
            best = d
    while best > 1 and B // best < 2:
        best = max(d for d in range(1, best) if B % d == 0)
    return best


def _pick_seq_tile(S, target=128):
    for t in range(min(S, target), 0, -1):
        if S % t == 0:
            return t
    return S


def _pick_f_tile(F, target=512):
    if F <= target:
        return F
    for t in range(target, 0, -128):
        if F % t == 0:
            return t
    return F  # no aligned divisor: keep the FFN weights resident


def _layernorm(x, w, b, eps=1e-5):
    mu = jnp.mean(x, axis=-1, keepdims=True)
    var = jnp.mean((x - mu) ** 2, axis=-1, keepdims=True)
    return (x - mu) * lax.rsqrt(var + eps) * w + b


# ----------------------------------------------------------------------------
# Pallas kernels
# ----------------------------------------------------------------------------
def encoder_layer_kernel(num_heads, seq_tile,
                         x_ref,
                         wqkv_ref, bqkv_ref, wo_ref, bo_ref,
                         ln1w_ref, ln1b_ref,
                         w1_ref, b1_ref, w2_ref, b2_ref,
                         ln2w_ref, ln2b_ref,
                         o_ref,
                         q_scr, k_scr, v_scr, attn_scr, h1_scr, ffacc_scr):
    """One nn.TransformerEncoderLayer (batch_first, post-norm, ReLU).

    Grid: (batch blocks ['parallel'], FFN F-tiles ['arbitrary']).
    Attention + residual + norm1 run once per batch block (f == 0); the FFN is
    streamed over F tiles into a VMEM accumulator and finalized at f == last.
    All matmuls run in bf16 on the MXU with f32 accumulation; softmax and
    layernorm stay in f32.
    """
    Bb, S, E = x_ref.shape
    H = num_heads
    Dh = E // H
    BH = Bb * H
    M = Bb * S
    TQ = TK = seq_tile
    nq = S // TQ
    f32, bf16 = jnp.float32, jnp.bfloat16

    f_idx = pl.program_id(1)
    nf = pl.num_programs(1)

    # ---- attention + residual + norm1: only on the first F step ------------
    @pl.when(f_idx == 0)
    def _attention():
        xb = x_ref[...].astype(bf16).reshape(M, E)
        # fused QKV projection; 1/sqrt(Dh) is folded into the Q columns of
        # wqkv / bqkv at init time, so no explicit scale here.
        qkv = (jnp.dot(xb, wqkv_ref[...], preferred_element_type=f32)
               + bqkv_ref[...]).reshape(Bb, S, 3 * E)
        # stage Q/K/V head-major (Bb,H,S,Dh) in VMEM scratch so the flash loop
        # can use leading-batch einsums and pl.ds KV-tile slicing.
        for h in range(H):
            d0 = h * Dh
            q_scr[:, h] = qkv[:, :, d0:d0 + Dh].astype(bf16)
            k_scr[:, h] = qkv[:, :, E + d0:E + d0 + Dh].astype(bf16)
            v_scr[:, h] = qkv[:, :, 2 * E + d0:2 * E + d0 + Dh].astype(bf16)

        def kv_step(qt, kt, vt, m, l, acc, mask=None):
            s = jnp.einsum('zqd,zkd->zqk', qt, kt,
                           preferred_element_type=f32)           # (BH,TQ,TK)
            if mask is not None:
                s = jnp.where(mask, s, NEG_INF)
            m_new = jnp.maximum(m, jnp.max(s, axis=-1, keepdims=True))
            alpha = jnp.exp(m - m_new)
            p = jnp.exp(s - m_new)
            l_new = alpha * l + jnp.sum(p, axis=-1, keepdims=True)
            ctx = jnp.einsum('zqk,zkd->zqd', p.astype(bf16), vt,
                             preferred_element_type=f32)         # (BH,TQ,Dh)
            return m_new, l_new, alpha * acc + ctx

        iq = lax.broadcasted_iota(jnp.int32, (TQ, TK), 0)
        ik = lax.broadcasted_iota(jnp.int32, (TQ, TK), 1)
        diag_mask = (iq >= ik)[None]                             # (1,TQ,TK)

        # flash-style online softmax over causal KV tiles; tiles strictly
        # above the diagonal are never touched.
        for qi in range(nq):                                     # static, ~S/128
            qs = qi * TQ
            qt = q_scr[:, :, qs:qs + TQ, :].reshape(BH, TQ, Dh)
            carry = (jnp.full((BH, TQ, 1), NEG_INF, f32),
                     jnp.zeros((BH, TQ, 1), f32),
                     jnp.zeros((BH, TQ, Dh), f32))

            if qi > 0:                                           # unmasked tiles
                def body(j, c):
                    ks = pl.multiple_of(j * TK, TK)
                    kt = k_scr[:, :, pl.ds(ks, TK), :].reshape(BH, TK, Dh)
                    vt = v_scr[:, :, pl.ds(ks, TK), :].reshape(BH, TK, Dh)
                    return kv_step(qt, kt, vt, *c)
                carry = lax.fori_loop(0, qi, body, carry)

            # diagonal tile carries the causal mask
            kt = k_scr[:, :, qs:qs + TK, :].reshape(BH, TK, Dh)
            vt = v_scr[:, :, qs:qs + TK, :].reshape(BH, TK, Dh)
            m_i, l_i, acc = kv_step(qt, kt, vt, *carry, mask=diag_mask)

            out4 = (acc * pl.reciprocal(l_i, approx=True)).reshape(Bb, H, TQ, Dh)
            for h in range(H):                                   # head -> lane scatter
                d0 = h * Dh
                attn_scr[:, qs:qs + TQ, d0:d0 + Dh] = out4[:, h]

        # single full-width out-projection over concatenated heads
        attn = jnp.dot(attn_scr[...].reshape(M, E).astype(bf16), wo_ref[...],
                       preferred_element_type=f32) + bo_ref[...]
        xf = x_ref[...].astype(f32).reshape(M, E)
        h1_scr[...] = _layernorm(xf + attn, ln1w_ref[...],
                                 ln1b_ref[...]).reshape(Bb, S, E)
        ffacc_scr[...] = jnp.zeros_like(ffacc_scr)

    # ---- feed-forward, streamed over F tiles (grid axis 1, "arbitrary") ----
    h1 = h1_scr[...].reshape(M, E).astype(bf16)
    ff = jnp.dot(h1, w1_ref[...], preferred_element_type=f32) + b1_ref[...]
    ff = jnp.maximum(ff, 0.0)
    ffacc_scr[...] += jnp.dot(ff.astype(bf16), w2_ref[...],
                              preferred_element_type=f32).reshape(Bb, S, E)

    @pl.when(f_idx == nf - 1)
    def _finalize():
        h2 = _layernorm(h1_scr[...].reshape(M, E)
                        + ffacc_scr[...].reshape(M, E) + b2_ref[...],
                        ln2w_ref[...], ln2b_ref[...])
        o_ref[...] = h2.reshape(Bb, S, E).astype(o_ref.dtype)


def output_proj_kernel(x_ref, w_ref, b_ref, o_ref):
    o_ref[...] = (jnp.dot(x_ref[...].astype(jnp.bfloat16), w_ref[...],
                          preferred_element_type=jnp.float32)
                  + b_ref[...]).astype(o_ref.dtype)


# ----------------------------------------------------------------------------
# Wrappers calling pallas_call
# ----------------------------------------------------------------------------
def _encoder_layer_call(x, p, num_heads, weight_buffers):
    B, S, E = x.shape
    F = p["w1"].shape[1]
    H = num_heads
    Dh = E // H
    bb = _pick_block_b(B, S)
    tq = _pick_seq_tile(S)
    tf = _pick_f_tile(F)
    nf = F // tf

    def const_spec(shape):
        n = len(shape)
        idx = lambda b, f, _n=n: (0,) * _n
        if weight_buffers is None:
            return pl.BlockSpec(shape, idx)
        # constant-index weights are revisited every step: single-buffer them
        # (default double buffering would only double their VMEM footprint).
        return pl.BlockSpec(shape, idx, pipeline_mode=pl.Buffered(weight_buffers))

    in_specs = [
        pl.BlockSpec((bb, S, E), lambda b, f: (b, 0, 0)),     # x: bb rows / step
        const_spec((E, 3 * E)), const_spec((1, 3 * E)),       # in_proj
        const_spec((E, E)), const_spec((1, E)),               # out_proj
        const_spec((1, E)), const_spec((1, E)),               # ln1
        pl.BlockSpec((E, tf), lambda b, f: (0, f)),           # linear1 (streamed over F)
        pl.BlockSpec((1, tf), lambda b, f: (0, f)),           # b1      (streamed over F)
        pl.BlockSpec((tf, E), lambda b, f: (f, 0)),           # linear2 (streamed over F)
        const_spec((1, E)),                                   # b2
        const_spec((1, E)), const_spec((1, E)),               # ln2
    ]
    return pl.pallas_call(
        partial(encoder_layer_kernel, num_heads, tq),
        out_shape=jax.ShapeDtypeStruct((B, S, E), jnp.bfloat16),
        grid=(B // bb, nf),
        in_specs=in_specs,
        out_specs=pl.BlockSpec((bb, S, E), lambda b, f: (b, 0, 0)),
        scratch_shapes=[
            pltpu.VMEM((bb, H, S, Dh), jnp.bfloat16),   # Q (head-major)
            pltpu.VMEM((bb, H, S, Dh), jnp.bfloat16),   # K
            pltpu.VMEM((bb, H, S, Dh), jnp.bfloat16),   # V
            pltpu.VMEM((bb, S, E), jnp.float32),        # attention output
            pltpu.VMEM((bb, S, E), jnp.float32),        # post-norm1 stream
            pltpu.VMEM((bb, S, E), jnp.float32),        # FFN accumulator
        ],
        compiler_params=pltpu.CompilerParams(
            dimension_semantics=("parallel", "arbitrary"),
            vmem_limit_bytes=_vmem_limit_bytes()),
    )(x, p["wqkv"], p["bqkv"], p["wo"], p["bo"],
      p["ln1w"], p["ln1b"], p["w1"], p["b1"], p["w2"], p["b2"],
      p["ln2w"], p["ln2b"])


def encoder_layer(x, p, num_heads):
    try:
        return _encoder_layer_call(x, p, num_heads, weight_buffers=1)
    except Exception:
        # pl.Buffered / pipeline_mode unavailable on this jax version:
        # fall back to default (double-buffered) weight blocks.
        return _encoder_layer_call(x, p, num_heads, weight_buffers=None)


def _output_proj_tiles(M, V):
    # v5e/v6e (128 MiB VMEM): large row tiles cut (E,V) weight re-reads ~4x;
    # v7x (64 MiB/TC): keep tiles modest and lean on its higher HBM bandwidth.
    big = _tpu_vmem_bytes() >= (100 << 20)
    tm = 1024 if big else 256
    return min(tm, M), min(512, V)


def output_proj(x, w, b, out_dtype=jnp.float32):
    # TODO(synk): emit bf16 logits (out_dtype=jnp.bfloat16) or fuse the
    # downstream softmax/argmax to halve the dominant (M,V) HBM writeback.
    B, S, E = x.shape
    V = w.shape[1]
    M = B * S
    x2 = x.reshape(M, E)
    tm, tn = _output_proj_tiles(M, V)
    out = pl.pallas_call(
        output_proj_kernel,
        out_shape=jax.ShapeDtypeStruct((M, V), out_dtype),
        grid=(pl.cdiv(M, tm), pl.cdiv(V, tn)),
        in_specs=[pl.BlockSpec((tm, E), lambda m, n: (m, 0)),
                  pl.BlockSpec((E, tn), lambda m, n: (0, n)),
                  pl.BlockSpec((1, tn), lambda m, n: (0, n))],
        out_specs=pl.BlockSpec((tm, tn), lambda m, n: (m, n)),
        compiler_params=pltpu.CompilerParams(
            dimension_semantics=("parallel", "parallel"),
            vmem_limit_bytes=_vmem_limit_bytes()),
    )(x2, w, b.reshape(1, V))
    return out.reshape(B, S, V)


def gpt_clone_forward(tokens, params, num_heads):
    """Full GPTClone forward. Embedding gathers are glue (plain JAX gather);
    the transformer layers and the output projection run in Pallas kernels."""
    B, S = tokens.shape
    x = params["tok_emb"][tokens] + params["pos_emb"][:S][None, :, :]
    x = x.astype(jnp.bfloat16)          # bf16 inter-layer activations
    # TODO(synk): dropout layers are identity here (eval-mode semantics).
    for lp in params["layers"]:
        x = encoder_layer(x, lp, num_heads)
    return output_proj(x, params["out_w"], params["out_b"])


# ----------------------------------------------------------------------------
# Deterministic parameter init (shapes match the nn.Module __init__).
# The 1/sqrt(Dh) attention scale is folded into the Q columns of the fused
# in-projection (init-time, semantics-preserving reparameterization).
# ----------------------------------------------------------------------------
def init_params(key, vocab, E, num_heads, num_layers, F, max_seq):
    ks = jax.random.split(key, 4 + num_layers)
    f32, bf16 = jnp.float32, jnp.bfloat16
    scale = 1.0 / math.sqrt(E // num_heads)

    def rnd(k, shape, dtype=f32):
        return (jax.random.normal(k, shape, dtype=f32) * 0.02).astype(dtype)

    layers = []
    for l in range(num_layers):
        lk = jax.random.split(ks[4 + l], 8)
        wqkv = rnd(lk[0], (E, 3 * E))
        bqkv = rnd(lk[1], (1, 3 * E))
        wqkv = jnp.concatenate([wqkv[:, :E] * scale, wqkv[:, E:]], axis=1)
        bqkv = jnp.concatenate([bqkv[:, :E] * scale, bqkv[:, E:]], axis=1)
        layers.append(dict(
            wqkv=wqkv.astype(bf16), bqkv=bqkv,
            wo=rnd(lk[2], (E, E), bf16), bo=rnd(lk[3], (1, E)),
            ln1w=jnp.ones((1, E), f32), ln1b=jnp.zeros((1, E), f32),
            w1=rnd(lk[4], (E, F), bf16), b1=rnd(lk[5], (1, F)),
            w2=rnd(lk[6], (F, E), bf16), b2=rnd(lk[7], (1, E)),
            ln2w=jnp.ones((1, E), f32), ln2b=jnp.zeros((1, E), f32),
        ))
    return dict(
        tok_emb=rnd(ks[0], (vocab, E)),
        pos_emb=rnd(ks[1], (max_seq, E)),
        out_w=rnd(ks[2], (E, vocab), bf16),
        out_b=jax.random.normal(ks[3], (vocab,), dtype=f32) * 0.02,
        layers=layers,
    )


# ----------------------------------------------------------------------------
# Pure-JAX f32 reference (same stored weights) for validation
# ----------------------------------------------------------------------------
def reference_forward(tokens, params, num_heads):
    B, S = tokens.shape
    E = params["tok_emb"].shape[1]
    Dh = E // num_heads
    f32 = jnp.float32
    x = params["tok_emb"][tokens] + params["pos_emb"][:S][None]
    i = jnp.arange(S)
    mask = jnp.where(i[:, None] >= i[None, :], 0.0, NEG_INF).astype(f32)

    def ln(y, w, b):
        mu = y.mean(-1, keepdims=True)
        var = ((y - mu) ** 2).mean(-1, keepdims=True)
        return (y - mu) / jnp.sqrt(var + 1e-5) * w[0] + b[0]

    for p in params["layers"]:
        qkv = x @ p["wqkv"].astype(f32) + p["bqkv"][0]
        q, k, v = jnp.split(qkv, 3, axis=-1)
        q = q.reshape(B, S, num_heads, Dh).transpose(0, 2, 1, 3)
        k = k.reshape(B, S, num_heads, Dh).transpose(0, 2, 1, 3)
        v = v.reshape(B, S, num_heads, Dh).transpose(0, 2, 1, 3)
        # NOTE: 1/sqrt(Dh) is already folded into the Q columns of wqkv/bqkv.
        s = jnp.einsum("bhsd,bhtd->bhst", q, k) + mask
        a = jax.nn.softmax(s, axis=-1)
        o = jnp.einsum("bhst,bhtd->bhsd", a, v).transpose(0, 2, 1, 3).reshape(B, S, E)
        o = o @ p["wo"].astype(f32) + p["bo"][0]
        x = ln(x + o, p["ln1w"], p["ln1b"])
        f = jnp.maximum(x @ p["w1"].astype(f32) + p["b1"][0], 0.0)
        f = f @ p["w2"].astype(f32) + p["b2"][0]
        x = ln(x + f, p["ln2w"], p["ln2b"])
    return x @ params["out_w"].astype(f32) + params["out_b"]


# ----------------------------------------------------------------------------
if __name__ == "__main__":
    VOCAB, EMBED, HEADS, LAYERS, FFN, MAX_SEQ = 64, 32, 4, 2, 64, 16
    B, S = 2, 8

    key = jax.random.PRNGKey(0)
    pkey, xkey = jax.random.split(key)
    params = init_params(pkey, VOCAB, EMBED, HEADS, LAYERS, FFN, MAX_SEQ)
    tokens = jax.random.randint(xkey, (B, S), 0, VOCAB, dtype=jnp.int32)

    out = jax.block_until_ready(gpt_clone_forward(tokens, params, HEADS))
    assert out.shape == (B, S, VOCAB), out.shape

    ref = reference_forward(tokens, params, HEADS)
    err = float(jnp.max(jnp.abs(out - ref)))
    # bf16 MXU inputs + bf16 inter-layer activations + approx EUP reciprocal
    # vs a pure-f32 reference.
    assert err < 2.5e-2, err

    print("KERNEL_OK")
</pallas_src>

<mosaic_0001>
module attributes {stable_mosaic.version = 11 : i64} {
  func.func @encoder_layer_kernel(%arg0: i32, %arg1: i32, %arg2: memref<1x8x32xbf16, #tpu.memory_space<vmem>>, %arg3: memref<32x96xbf16, #tpu.memory_space<vmem>>, %arg4: memref<1x96xf32, #tpu.memory_space<vmem>>, %arg5: memref<32x32xbf16, #tpu.memory_space<vmem>>, %arg6: memref<1x32xf32, #tpu.memory_space<vmem>>, %arg7: memref<1x32xf32, #tpu.memory_space<vmem>>, %arg8: memref<1x32xf32, #tpu.memory_space<vmem>>, %arg9: memref<32x64xbf16, #tpu.memory_space<vmem>>, %arg10: memref<1x64xf32, #tpu.memory_space<vmem>>, %arg11: memref<64x32xbf16, #tpu.memory_space<vmem>>, %arg12: memref<1x32xf32, #tpu.memory_space<vmem>>, %arg13: memref<1x32xf32, #tpu.memory_space<vmem>>, %arg14: memref<1x32xf32, #tpu.memory_space<vmem>>, %arg15: memref<1x8x32xbf16, #tpu.memory_space<vmem>>, %arg16: memref<1x4x8x8xbf16, #tpu.memory_space<vmem>>, %arg17: memref<1x4x8x8xbf16, #tpu.memory_space<vmem>>, %arg18: memref<1x4x8x8xbf16, #tpu.memory_space<vmem>>, %arg19: memref<1x8x32xf32, #tpu.memory_space<vmem>>, %arg20: memref<1x8x32xf32, #tpu.memory_space<vmem>>, %arg21: memref<1x8x32xf32, #tpu.memory_space<vmem>>) attributes {dimension_semantics = [#tpu.dimension_semantics<parallel>, #tpu.dimension_semantics<arbitrary>], iteration_bounds = array<i64: 2, 1>, scalar_prefetch = 0 : i64, scratch_operands = 6 : i64, tpu.core_type = #tpu.core_type<tc>, window_params = [{transform_indices = @transform_0, window_bounds = array<i64: 1, 8, 32>}, {pipeline_mode = #tpu.pipeline_mode<synchronous>, transform_indices = @transform_1, window_bounds = array<i64: 32, 96>}, {pipeline_mode = #tpu.pipeline_mode<synchronous>, transform_indices = @transform_2, window_bounds = array<i64: 1, 96>}, {pipeline_mode = #tpu.pipeline_mode<synchronous>, transform_indices = @transform_3, window_bounds = array<i64: 32, 32>}, {pipeline_mode = #tpu.pipeline_mode<synchronous>, transform_indices = @transform_4, window_bounds = array<i64: 1, 32>}, {pipeline_mode = #tpu.pipeline_mode<synchronous>, transform_indices = @transform_5, window_bounds = array<i64: 1, 32>}, {pipeline_mode = #tpu.pipeline_mode<synchronous>, transform_indices = @transform_6, window_bounds = array<i64: 1, 32>}, {transform_indices = @transform_7, window_bounds = array<i64: 32, 64>}, {transform_indices = @transform_8, window_bounds = array<i64: 1, 64>}, {transform_indices = @transform_9, window_bounds = array<i64: 64, 32>}, {pipeline_mode = #tpu.pipeline_mode<synchronous>, transform_indices = @transform_10, window_bounds = array<i64: 1, 32>}, {pipeline_mode = #tpu.pipeline_mode<synchronous>, transform_indices = @transform_11, window_bounds = array<i64: 1, 32>}, {pipeline_mode = #tpu.pipeline_mode<synchronous>, transform_indices = @transform_12, window_bounds = array<i64: 1, 32>}, {transform_indices = @transform_13, window_bounds = array<i64: 1, 8, 32>}]} {
    %c0_i32 = arith.constant 0 : i32
    %0 = arith.cmpi eq, %arg1, %c0_i32 : i32
    %1 = arith.extui %0 : i1 to i32
    %c0_i32_0 = arith.constant 0 : i32
    %2 = arith.cmpi ne, %1, %c0_i32_0 : i32
    scf.if %2 {
      %c0_19 = arith.constant 0 : index
      %c0_20 = arith.constant 0 : index
      %c0_21 = arith.constant 0 : index
      %23 = vector.load %arg2[%c0_19, %c0_20, %c0_21] : memref<1x8x32xbf16, #tpu.memory_space<vmem>>, vector<1x8x32xbf16>
      %24 = vector.shape_cast %23 : vector<1x8x32xbf16> to vector<8x32xbf16>
      %c0_22 = arith.constant 0 : index
      %c0_23 = arith.constant 0 : index
      %25 = vector.load %arg3[%c0_22, %c0_23] : memref<32x96xbf16, #tpu.memory_space<vmem>>, vector<32x96xbf16>
      %cst_24 = arith.constant dense<0.000000e+00> : vector<8x96xf32>
      %26 = tpu.matmul %24, %25, %cst_24 {dimension_numbers = #tpu.dot_dimension_numbers<[1], [0], [0], [1], [0, 0, 1, 1], [], []>} : vector<8x32xbf16>, vector<32x96xbf16>, vector<8x96xf32> -> vector<8x96xf32>
      %c0_25 = arith.constant 0 : index
      %c0_26 = arith.constant 0 : index
      %27 = vector.load %arg4[%c0_25, %c0_26] : memref<1x96xf32, #tpu.memory_space<vmem>>, vector<1x96xf32>
      %28 = vector.broadcast %27 : vector<1x96xf32> to vector<8x96xf32>
      %29 = arith.addf %26, %28 : vector<8x96xf32>
      %30 = vector.shape_cast %29 : vector<8x96xf32> to vector<1x8x96xf32>
      %31 = vector.extract_strided_slice %30 {offsets = [0, 0, 0], sizes = [1, 8, 8], strides = [1, 1, 1]} : vector<1x8x96xf32> to vector<1x8x8xf32>
      %32 = arith.truncf %31 : vector<1x8x8xf32> to vector<1x8x8xbf16>
      %c0_27 = arith.constant 0 : index
      %c0_28 = arith.constant 0 : index
      %c0_29 = arith.constant 0 : index
      %c0_30 = arith.constant 0 : index
      %33 = vector.load %arg16[%c0_27, %c0_28, %c0_29, %c0_30] : memref<1x4x8x8xbf16, #tpu.memory_space<vmem>>, vector<1x1x8x8xbf16>
      %34 = vector.shape_cast %33 : vector<1x1x8x8xbf16> to vector<1x8x8xbf16>
      %35 = vector.shape_cast %32 : vector<1x8x8xbf16> to vector<1x1x8x8xbf16>
      tpu.vector_store %arg16[%c0_27, %c0_28, %c0_29, %c0_30], %35 {strides = array<i32>} : memref<1x4x8x8xbf16, #tpu.memory_space<vmem>>, vector<1x1x8x8xbf16>,
      %36 = vector.extract_strided_slice %30 {offsets = [0, 0, 32], sizes = [1, 8, 8], strides = [1, 1, 1]} : vector<1x8x96xf32> to vector<1x8x8xf32>
      %37 = arith.truncf %36 : vector<1x8x8xf32> to vector<1x8x8xbf16>
      %c0_31 = arith.constant 0 : index
      %c0_32 = arith.constant 0 : index
      %c0_33 = arith.constant 0 : index
      %c0_34 = arith.constant 0 : index
      %38 = vector.load %arg17[%c0_31, %c0_32, %c0_33, %c0_34] : memref<1x4x8x8xbf16, #tpu.memory_space<vmem>>, vector<1x1x8x8xbf16>
      %39 = vector.shape_cast %38 : vector<1x1x8x8xbf16> to vector<1x8x8xbf16>
      %40 = vector.shape_cast %37 : vector<1x8x8xbf16> to vector<1x1x8x8xbf16>
      tpu.vector_store %arg17[%c0_31, %c0_32, %c0_33, %c0_34], %40 {strides = array<i32>} : memref<1x4x8x8xbf16, #tpu.memory_space<vmem>>, vector<1x1x8x8xbf16>,
      %41 = vector.extract_strided_slice %30 {offsets = [0, 0, 64], sizes = [1, 8, 8], strides = [1, 1, 1]} : vector<1x8x96xf32> to vector<1x8x8xf32>
      %42 = arith.truncf %41 : vector<1x8x8xf32> to vector<1x8x8xbf16>
      %c0_35 = arith.constant 0 : index
      %c0_36 = arith.constant 0 : index
      %c0_37 = arith.constant 0 : index
      %c0_38 = arith.constant 0 : index
      %43 = vector.load %arg18[%c0_35, %c0_36, %c0_37, %c0_38] : memref<1x4x8x8xbf16, #tpu.memory_space<vmem>>, vector<1x1x8x8xbf16>
      %44 = vector.shape_cast %43 : vector<1x1x8x8xbf16> to vector<1x8x8xbf16>
      %45 = vector.shape_cast %42 : vector<1x8x8xbf16> to vector<1x1x8x8xbf16>
      tpu.vector_store %arg18[%c0_35, %c0_36, %c0_37, %c0_38], %45 {strides = array<i32>} : memref<1x4x8x8xbf16, #tpu.memory_space<vmem>>, vector<1x1x8x8xbf16>,
      %46 = vector.extract_strided_slice %30 {offsets = [0, 0, 8], sizes = [1, 8, 8], strides = [1, 1, 1]} : vector<1x8x96xf32> to vector<1x8x8xf32>
      %47 = arith.truncf %46 : vector<1x8x8xf32> to vector<1x8x8xbf16>
      %c0_39 = arith.constant 0 : index
      %c1 = arith.constant 1 : index
      %c0_40 = arith.constant 0 : index
      %c0_41 = arith.constant 0 : index
      %48 = vector.load %arg16[%c0_39, %c1, %c0_40, %c0_41] : memref<1x4x8x8xbf16, #tpu.memory_space<vmem>>, vector<1x1x8x8xbf16>
      %49 = vector.shape_cast %48 : vector<1x1x8x8xbf16> to vector<1x8x8xbf16>
      %50 = vector.shape_cast %47 : vector<1x8x8xbf16> to vector<1x1x8x8xbf16>
      tpu.vector_store %arg16[%c0_39, %c1, %c0_40, %c0_41], %50 {strides = array<i32>} : memref<1x4x8x8xbf16, #tpu.memory_space<vmem>>, vector<1x1x8x8xbf16>,
      %51 = vector.extract_strided_slice %30 {offsets = [0, 0, 40], sizes = [1, 8, 8], strides = [1, 1, 1]} : vector<1x8x96xf32> to vector<1x8x8xf32>
      %52 = arith.truncf %51 : vector<1x8x8xf32> to vector<1x8x8xbf16>
      %c0_42 = arith.constant 0 : index
      %c1_43 = arith.constant 1 : index
      %c0_44 = arith.constant 0 : index
      %c0_45 = arith.constant 0 : index
      %53 = vector.load %arg17[%c0_42, %c1_43, %c0_44, %c0_45] : memref<1x4x8x8xbf16, #tpu.memory_space<vmem>>, vector<1x1x8x8xbf16>
      %54 = vector.shape_cast %53 : vector<1x1x8x8xbf16> to vector<1x8x8xbf16>
      %55 = vector.shape_cast %52 : vector<1x8x8xbf16> to vector<1x1x8x8xbf16>
      tpu.vector_store %arg17[%c0_42, %c1_43, %c0_44, %c0_45], %55 {strides = array<i32>} : memref<1x4x8x8xbf16, #tpu.memory_space<vmem>>, vector<1x1x8x8xbf16>,
      %56 = vector.extract_strided_slice %30 {offsets = [0, 0, 72], sizes = [1, 8, 8], strides = [1, 1, 1]} : vector<1x8x96xf32> to vector<1x8x8xf32>
      %57 = arith.truncf %56 : vector<1x8x8xf32> to vector<1x8x8xbf16>
      %c0_46 = arith.constant 0 : index
      %c1_47 = arith.constant 1 : index
      %c0_48 = arith.constant 0 : index
      %c0_49 = arith.constant 0 : index
      %58 = vector.load %arg18[%c0_46, %c1_47, %c0_48, %c0_49] : memref<1x4x8x8xbf16, #tpu.memory_space<vmem>>, vector<1x1x8x8xbf16>
      %59 = vector.shape_cast %58 : vector<1x1x8x8xbf16> to vector<1x8x8xbf16>
      %60 = vector.shape_cast %57 : vector<1x8x8xbf16> to vector<1x1x8x8xbf16>
      tpu.vector_store %arg18[%c0_46, %c1_47, %c0_48, %c0_49], %60 {strides = array<i32>} : memref<1x4x8x8xbf16, #tpu.memory_space<vmem>>, vector<1x1x8x8xbf16>,
      %61 = vector.extract_strided_slice %30 {offsets = [0, 0, 16], sizes = [1, 8, 8], strides = [1, 1, 1]} : vector<1x8x96xf32> to vector<1x8x8xf32>
      %62 = arith.truncf %61 : vector<1x8x8xf32> to vector<1x8x8xbf16>
      %c0_50 = arith.constant 0 : index
      %c2 = arith.constant 2 : index
      %c0_51 = arith.constant 0 : index
      %c0_52 = arith.constant 0 : index
      %63 = vector.load %arg16[%c0_50, %c2, %c0_51, %c0_52] : memref<1x4x8x8xbf16, #tpu.memory_space<vmem>>, vector<1x1x8x8xbf16>
      %64 = vector.shape_cast %63 : vector<1x1x8x8xbf16> to vector<1x8x8xbf16>
      %65 = vector.shape_cast %62 : vector<1x8x8xbf16> to vector<1x1x8x8xbf16>
      tpu.vector_store %arg16[%c0_50, %c2, %c0_51, %c0_52], %65 {strides = array<i32>} : memref<1x4x8x8xbf16, #tpu.memory_space<vmem>>, vector<1x1x8x8xbf16>,
      %66 = vector.extract_strided_slice %30 {offsets = [0, 0, 48], sizes = [1, 8, 8], strides = [1, 1, 1]} : vector<1x8x96xf32> to vector<1x8x8xf32>
      %67 = arith.truncf %66 : vector<1x8x8xf32> to vector<1x8x8xbf16>
      %c0_53 = arith.constant 0 : index
      %c2_54 = arith.constant 2 : index
      %c0_55 = arith.constant 0 : index
      %c0_56 = arith.constant 0 : index
      %68 = vector.load %arg17[%c0_53, %c2_54, %c0_55, %c0_56] : memref<1x4x8x8xbf16, #tpu.memory_space<vmem>>, vector<1x1x8x8xbf16>
      %69 = vector.shape_cast %68 : vector<1x1x8x8xbf16> to vector<1x8x8xbf16>
      %70 = vector.shape_cast %67 : vector<1x8x8xbf16> to vector<1x1x8x8xbf16>
      tpu.vector_store %arg17[%c0_53, %c2_54, %c0_55, %c0_56], %70 {strides = array<i32>} : memref<1x4x8x8xbf16, #tpu.memory_space<vmem>>, vector<1x1x8x8xbf16>,
      %71 = vector.extract_strided_slice %30 {offsets = [0, 0, 80], sizes = [1, 8, 8], strides = [1, 1, 1]} : vector<1x8x96xf32> to vector<1x8x8xf32>
      %72 = arith.truncf %71 : vector<1x8x8xf32> to vector<1x8x8xbf16>
      %c0_57 = arith.constant 0 : index
      %c2_58 = arith.constant 2 : index
      %c0_59 = arith.constant 0 : index
      %c0_60 = arith.constant 0 : index
      %73 = vector.load %arg18[%c0_57, %c2_58, %c0_59, %c0_60] : memref<1x4x8x8xbf16, #tpu.memory_space<vmem>>, vector<1x1x8x8xbf16>
      %74 = vector.shape_cast %73 : vector<1x1x8x8xbf16> to vector<1x8x8xbf16>
      %75 = vector.shape_cast %72 : vector<1x8x8xbf16> to vector<1x1x8x8xbf16>
      tpu.vector_store %arg18[%c0_57, %c2_58, %c0_59, %c0_60], %75 {strides = array<i32>} : memref<1x4x8x8xbf16, #tpu.memory_space<vmem>>, vector<1x1x8x8xbf16>,
      %76 = vector.extract_strided_slice %30 {offsets = [0, 0, 24], sizes = [1, 8, 8], strides = [1, 1, 1]} : vector<1x8x96xf32> to vector<1x8x8xf32>
      %77 = arith.truncf %76 : vector<1x8x8xf32> to vector<1x8x8xbf16>
      %c0_61 = arith.constant 0 : index
      %c3 = arith.constant 3 : index
      %c0_62 = arith.constant 0 : index
      %c0_63 = arith.constant 0 : index
      %78 = vector.load %arg16[%c0_61, %c3, %c0_62, %c0_63] : memref<1x4x8x8xbf16, #tpu.memory_space<vmem>>, vector<1x1x8x8xbf16>
      %79 = vector.shape_cast %78 : vector<1x1x8x8xbf16> to vector<1x8x8xbf16>
      %80 = vector.shape_cast %77 : vector<1x8x8xbf16> to vector<1x1x8x8xbf16>
      tpu.vector_store %arg16[%c0_61, %c3, %c0_62, %c0_63], %80 {strides = array<i32>} : memref<1x4x8x8xbf16, #tpu.memory_space<vmem>>, vector<1x1x8x8xbf16>,
      %81 = vector.extract_strided_slice %30 {offsets = [0, 0, 56], sizes = [1, 8, 8], strides = [1, 1, 1]} : vector<1x8x96xf32> to vector<1x8x8xf32>
      %82 = arith.truncf %81 : vector<1x8x8xf32> to vector<1x8x8xbf16>
      %c0_64 = arith.constant 0 : index
      %c3_65 = arith.constant 3 : index
      %c0_66 = arith.constant 0 : index
      %c0_67 = arith.constant 0 : index
      %83 = vector.load %arg17[%c0_64, %c3_65, %c0_66, %c0_67] : memref<1x4x8x8xbf16, #tpu.memory_space<vmem>>, vector<1x1x8x8xbf16>
      %84 = vector.shape_cast %83 : vector<1x1x8x8xbf16> to vector<1x8x8xbf16>
      %85 = vector.shape_cast %82 : vector<1x8x8xbf16> to vector<1x1x8x8xbf16>
      tpu.vector_store %arg17[%c0_64, %c3_65, %c0_66, %c0_67], %85 {strides = array<i32>} : memref<1x4x8x8xbf16, #tpu.memory_space<vmem>>, vector<1x1x8x8xbf16>,
      %86 = vector.extract_strided_slice %30 {offsets = [0, 0, 88], sizes = [1, 8, 8], strides = [1, 1, 1]} : vector<1x8x96xf32> to vector<1x8x8xf32>
      %87 = arith.truncf %86 : vector<1x8x8xf32> to vector<1x8x8xbf16>
      %c0_68 = arith.constant 0 : index
      %c3_69 = arith.constant 3 : index
      %c0_70 = arith.constant 0 : index
      %c0_71 = arith.constant 0 : index
      %88 = vector.load %arg18[%c0_68, %c3_69, %c0_70, %c0_71] : memref<1x4x8x8xbf16, #tpu.memory_space<vmem>>, vector<1x1x8x8xbf16>
      %89 = vector.shape_cast %88 : vector<1x1x8x8xbf16> to vector<1x8x8xbf16>
      %90 = vector.shape_cast %87 : vector<1x8x8xbf16> to vector<1x1x8x8xbf16>
      tpu.vector_store %arg18[%c0_68, %c3_69, %c0_70, %c0_71], %90 {strides = array<i32>} : memref<1x4x8x8xbf16, #tpu.memory_space<vmem>>, vector<1x1x8x8xbf16>,
      %91 = tpu.iota {dimensions = array<i32: 0>} : vector<8x8xi32>
      %92 = tpu.iota {dimensions = array<i32: 1>} : vector<8x8xi32>
      %93 = arith.cmpi sge, %91, %92 : vector<8x8xi32>
      %94 = vector.shape_cast %93 : vector<8x8xi1> to vector<1x8x8xi1>
      %c0_72 = arith.constant 0 : index
      %c0_73 = arith.constant 0 : index
      %c0_74 = arith.constant 0 : index
      %c0_75 = arith.constant 0 : index
      %95 = vector.load %arg16[%c0_72, %c0_73, %c0_74, %c0_75] : memref<1x4x8x8xbf16, #tpu.memory_space<vmem>>, vector<1x4x8x8xbf16>
      %96 = vector.shape_cast %95 : vector<1x4x8x8xbf16> to vector<4x8x8xbf16>
      %cst_76 = arith.constant -1.000000e+30 : f32
      %97 = vector.broadcast %cst_76 : f32 to vector<4x8x1xf32>
      %cst_77 = arith.constant 0.000000e+00 : f32
      %98 = vector.broadcast %cst_77 : f32 to vector<4x8x1xf32>
      %cst_78 = arith.constant 0.000000e+00 : f32
      %99 = vector.broadcast %cst_78 : f32 to vector<4x8x8xf32>
      %c0_79 = arith.constant 0 : index
      %c0_80 = arith.constant 0 : index
      %c0_81 = arith.constant 0 : index
      %c0_82 = arith.constant 0 : index
      %100 = vector.load %arg17[%c0_79, %c0_80, %c0_81, %c0_82] : memref<1x4x8x8xbf16, #tpu.memory_space<vmem>>, vector<1x4x8x8xbf16>
      %101 = vector.shape_cast %100 : vector<1x4x8x8xbf16> to vector<4x8x8xbf16>
      %c0_83 = arith.constant 0 : index
      %c0_84 = arith.constant 0 : index
      %c0_85 = arith.constant 0 : index
      %c0_86 = arith.constant 0 : index
      %102 = vector.load %arg18[%c0_83, %c0_84, %c0_85, %c0_86] : memref<1x4x8x8xbf16, #tpu.memory_space<vmem>>, vector<1x4x8x8xbf16>
      %103 = vector.shape_cast %102 : vector<1x4x8x8xbf16> to vector<4x8x8xbf16>
      "tpu.trace_start"() <{level = 10 : i32, message = "zqd,zkd->zqk"}> : () -> ()
      %cst_87 = arith.constant dense<0.000000e+00> : vector<4x8x8xf32>
      %104 = tpu.matmul %96, %101, %cst_87 {dimension_numbers = #tpu.dot_dimension_numbers<[2], [2], [1], [1], [0, 0, 0, 1, 1, 1], [0], [0]>} : vector<4x8x8xbf16>, vector<4x8x8xbf16>, vector<4x8x8xf32> -> vector<4x8x8xf32>
      %cst_88 = arith.constant -1.000000e+30 : f32
      "tpu.trace_stop"() : () -> ()
      %105 = vector.shape_cast %94 : vector<1x8x8xi1> to vector<1x8x8xi1>
      %106 = vector.broadcast %105 : vector<1x8x8xi1> to vector<4x8x8xi1>
      %107 = vector.broadcast %cst_88 : f32 to vector<4x8x8xf32>
      %108 = arith.select %106, %104, %107 : vector<4x8x8xi1>, vector<4x8x8xf32>
      %cst_89 = arith.constant dense<0xFF800000> : vector<4x8xf32>
      %109 = vector.multi_reduction <maximumf>, %108, %cst_89 [2] : vector<4x8x8xf32> to vector<4x8xf32>
      %110 = vector.shape_cast %109 : vector<4x8xf32> to vector<4x8x1xf32>
      %111 = arith.maximumf %97, %110 : vector<4x8x1xf32>
      %112 = arith.subf %97, %111 : vector<4x8x1xf32>
      %113 = math.exp %112 : vector<4x8x1xf32>
      %114 = vector.broadcast %111 : vector<4x8x1xf32> to vector<4x8x8xf32>
      %115 = arith.subf %108, %114 : vector<4x8x8xf32>
      %116 = math.exp %115 : vector<4x8x8xf32>
      %117 = arith.mulf %113, %98 : vector<4x8x1xf32>
      %cst_90 = arith.constant dense<0.000000e+00> : vector<4x8xf32>
      %118 = vector.multi_reduction <add>, %116, %cst_90 [2] : vector<4x8x8xf32> to vector<4x8xf32>
      %119 = vector.shape_cast %118 : vector<4x8xf32> to vector<4x8x1xf32>
      %120 = arith.addf %117, %119 : vector<4x8x1xf32>
      %121 = arith.truncf %116 : vector<4x8x8xf32> to vector<4x8x8xbf16>
      "tpu.trace_start"() <{level = 10 : i32, message = "zqk,zkd->zqd"}> : () -> ()
      %cst_91 = arith.constant dense<0.000000e+00> : vector<4x8x8xf32>
      %122 = tpu.matmul %121, %103, %cst_91 {dimension_numbers = #tpu.dot_dimension_numbers<[2], [1], [1], [2], [0, 0, 0, 1, 1, 2], [0], [0]>} : vector<4x8x8xbf16>, vector<4x8x8xbf16>, vector<4x8x8xf32> -> vector<4x8x8xf32>
      "tpu.trace_stop"() : () -> ()
      %123 = vector.broadcast %113 : vector<4x8x1xf32> to vector<4x8x8xf32>
      %124 = arith.mulf %123, %99 : vector<4x8x8xf32>
      %125 = arith.addf %124, %122 : vector<4x8x8xf32>
      %126 = tpu.reciprocal %120 {approx = true} : vector<4x8x1xf32> -> vector<4x8x1xf32>
      %127 = vector.broadcast %126 : vector<4x8x1xf32> to vector<4x8x8xf32>
      %128 = arith.mulf %125, %127 : vector<4x8x8xf32>
      %129 = vector.shape_cast %128 : vector<4x8x8xf32> to vector<1x4x8x8xf32>
      %130 = vector.extract_strided_slice %129 {offsets = [0, 0, 0, 0], sizes = [1, 1, 8, 8], strides = [1, 1, 1, 1]} : vector<1x4x8x8xf32> to vector<1x1x8x8xf32>
      %131 = vector.shape_cast %130 : vector<1x1x8x8xf32> to vector<1x8x8xf32>
      %c0_92 = arith.constant 0 : index
      %c0_93 = arith.constant 0 : index
      %c0_94 = arith.constant 0 : index
      %132 = vector.load %arg19[%c0_92, %c0_93, %c0_94] : memref<1x8x32xf32, #tpu.memory_space<vmem>>, vector<1x8x8xf32>
      tpu.vector_store %arg19[%c0_92, %c0_93, %c0_94], %131 {strides = array<i32>} : memref<1x8x32xf32, #tpu.memory_space<vmem>>, vector<1x8x8xf32>,
      %133 = vector.extract_strided_slice %129 {offsets = [0, 1, 0, 0], sizes = [1, 1, 8, 8], strides = [1, 1, 1, 1]} : vector<1x4x8x8xf32> to vector<1x1x8x8xf32>
      %134 = vector.shape_cast %133 : vector<1x1x8x8xf32> to vector<1x8x8xf32>
      %c0_95 = arith.constant 0 : index
      %c0_96 = arith.constant 0 : index
      %c8 = arith.constant 8 : index
      %135 = vector.load %arg19[%c0_95, %c0_96, %c8] : memref<1x8x32xf32, #tpu.memory_space<vmem>>, vector<1x8x8xf32>
      tpu.vector_store %arg19[%c0_95, %c0_96, %c8], %134 {strides = array<i32>} : memref<1x8x32xf32, #tpu.memory_space<vmem>>, vector<1x8x8xf32>,
      %136 = vector.extract_strided_slice %129 {offsets = [0, 2, 0, 0], sizes = [1, 1, 8, 8], strides = [1, 1, 1, 1]} : vector<1x4x8x8xf32> to vector<1x1x8x8xf32>
      %137 = vector.shape_cast %136 : vector<1x1x8x8xf32> to vector<1x8x8xf32>
      %c0_97 = arith.constant 0 : index
      %c0_98 = arith.constant 0 : index
      %c16 = arith.constant 16 : index
      %138 = vector.load %arg19[%c0_97, %c0_98, %c16] : memref<1x8x32xf32, #tpu.memory_space<vmem>>, vector<1x8x8xf32>
      tpu.vector_store %arg19[%c0_97, %c0_98, %c16], %137 {strides = array<i32>} : memref<1x8x32xf32, #tpu.memory_space<vmem>>, vector<1x8x8xf32>,
      %139 = vector.extract_strided_slice %129 {offsets = [0, 3, 0, 0], sizes = [1, 1, 8, 8], strides = [1, 1, 1, 1]} : vector<1x4x8x8xf32> to vector<1x1x8x8xf32>
      %140 = vector.shape_cast %139 : vector<1x1x8x8xf32> to vector<1x8x8xf32>
      %c0_99 = arith.constant 0 : index
      %c0_100 = arith.constant 0 : index
      %c24 = arith.constant 24 : index
      %141 = vector.load %arg19[%c0_99, %c0_100, %c24] : memref<1x8x32xf32, #tpu.memory_space<vmem>>, vector<1x8x8xf32>
      tpu.vector_store %arg19[%c0_99, %c0_100, %c24], %140 {strides = array<i32>} : memref<1x8x32xf32, #tpu.memory_space<vmem>>, vector<1x8x8xf32>,
      %c0_101 = arith.constant 0 : index
      %c0_102 = arith.constant 0 : index
      %c0_103 = arith.constant 0 : index
      %142 = vector.load %arg19[%c0_101, %c0_102, %c0_103] : memref<1x8x32xf32, #tpu.memory_space<vmem>>, vector<1x8x32xf32>
      %143 = vector.shape_cast %142 : vector<1x8x32xf32> to vector<8x32xf32>
      %144 = arith.truncf %143 : vector<8x32xf32> to vector<8x32xbf16>
      %c0_104 = arith.constant 0 : index
      %c0_105 = arith.constant 0 : index
      %145 = vector.load %arg5[%c0_104, %c0_105] : memref<32x32xbf16, #tpu.memory_space<vmem>>, vector<32x32xbf16>
      %cst_106 = arith.constant dense<0.000000e+00> : vector<8x32xf32>
      %146 = tpu.matmul %144, %145, %cst_106 {dimension_numbers = #tpu.dot_dimension_numbers<[1], [0], [0], [1], [0, 0, 1, 1], [], []>} : vector<8x32xbf16>, vector<32x32xbf16>, vector<8x32xf32> -> vector<8x32xf32>
      %c0_107 = arith.constant 0 : index
      %c0_108 = arith.constant 0 : index
      %147 = vector.load %arg6[%c0_107, %c0_108] : memref<1x32xf32, #tpu.memory_space<vmem>>, vector<1x32xf32>
      %148 = vector.broadcast %147 : vector<1x32xf32> to vector<8x32xf32>
      %149 = arith.addf %146, %148 : vector<8x32xf32>
      %c0_109 = arith.constant 0 : index
      %c0_110 = arith.constant 0 : index
      %c0_111 = arith.constant 0 : index
      %150 = vector.load %arg2[%c0_109, %c0_110, %c0_111] : memref<1x8x32xbf16, #tpu.memory_space<vmem>>, vector<1x8x32xbf16>
      %151 = arith.extf %150 : vector<1x8x32xbf16> to vector<1x8x32xf32>
      %152 = vector.shape_cast %151 : vector<1x8x32xf32> to vector<8x32xf32>
      %153 = arith.addf %152, %149 : vector<8x32xf32>
      %c0_112 = arith.constant 0 : index
      %c0_113 = arith.constant 0 : index
      %154 = vector.load %arg7[%c0_112, %c0_113] : memref<1x32xf32, #tpu.memory_space<vmem>>, vector<1x32xf32>
      %c0_114 = arith.constant 0 : index
      %c0_115 = arith.constant 0 : index
      %155 = vector.load %arg8[%c0_114, %c0_115] : memref<1x32xf32, #tpu.memory_space<vmem>>, vector<1x32xf32>
      %cst_116 = arith.constant dense<0.000000e+00> : vector<8xf32>
      %156 = vector.multi_reduction <add>, %153, %cst_116 [1] : vector<8x32xf32> to vector<8xf32>
      %157 = vector.shape_cast %156 : vector<8xf32> to vector<8x1xf32>
      %cst_117 = arith.constant 3.200000e+01 : f32
      %158 = vector.broadcast %cst_117 : f32 to vector<8x1xf32>
      %159 = arith.divf %157, %158 : vector<8x1xf32>
      %160 = vector.broadcast %159 : vector<8x1xf32> to vector<8x32xf32>
      %161 = arith.subf %153, %160 : vector<8x32xf32>
      %162 = arith.mulf %161, %161 : vector<8x32xf32>
      %cst_118 = arith.constant dense<0.000000e+00> : vector<8xf32>
      %163 = vector.multi_reduction <add>, %162, %cst_118 [1] : vector<8x32xf32> to vector<8xf32>
      %164 = vector.shape_cast %163 : vector<8xf32> to vector<8x1xf32>
      %cst_119 = arith.constant 3.200000e+01 : f32
      %165 = vector.broadcast %cst_119 : f32 to vector<8x1xf32>
      %166 = arith.divf %164, %165 : vector<8x1xf32>
      %167 = vector.broadcast %159 : vector<8x1xf32> to vector<8x32xf32>
      %168 = arith.subf %153, %167 : vector<8x32xf32>
      %cst_120 = arith.constant 9.99999974E-6 : f32
      %169 = vector.broadcast %cst_120 : f32 to vector<8x1xf32>
      %170 = arith.addf %166, %169 : vector<8x1xf32>
      %171 = math.rsqrt %170 : vector<8x1xf32>
      %172 = vector.broadcast %171 : vector<8x1xf32> to vector<8x32xf32>
      %173 = arith.mulf %168, %172 : vector<8x32xf32>
      %174 = vector.broadcast %154 : vector<1x32xf32> to vector<8x32xf32>
      %175 = arith.mulf %173, %174 : vector<8x32xf32>
      %176 = vector.broadcast %155 : vector<1x32xf32> to vector<8x32xf32>
      %177 = arith.addf %175, %176 : vector<8x32xf32>
      %178 = vector.shape_cast %177 : vector<8x32xf32> to vector<1x8x32xf32>
      %c0_121 = arith.constant 0 : index
      %c0_122 = arith.constant 0 : index
      %c0_123 = arith.constant 0 : index
      %179 = vector.load %arg20[%c0_121, %c0_122, %c0_123] : memref<1x8x32xf32, #tpu.memory_space<vmem>>, vector<1x8x32xf32>
      tpu.vector_store %arg20[%c0_121, %c0_122, %c0_123], %178 {strides = array<i32>} : memref<1x8x32xf32, #tpu.memory_space<vmem>>, vector<1x8x32xf32>,
      %cst_124 = arith.constant 0.000000e+00 : f32
      %180 = vector.broadcast %cst_124 : f32 to vector<1x8x32xf32>
      %c0_125 = arith.constant 0 : index
      %c0_126 = arith.constant 0 : index
      %c0_127 = arith.constant 0 : index
      %181 = vector.load %arg21[%c0_125, %c0_126, %c0_127] : memref<1x8x32xf32, #tpu.memory_space<vmem>>, vector<1x8x32xf32>
      tpu.vector_store %arg21[%c0_125, %c0_126, %c0_127], %180 {strides = array<i32>} : memref<1x8x32xf32, #tpu.memory_space<vmem>>, vector<1x8x32xf32>,
    } else {
    }
    %c0 = arith.constant 0 : index
    %c0_1 = arith.constant 0 : index
    %c0_2 = arith.constant 0 : index
    %3 = vector.load %arg20[%c0, %c0_1, %c0_2] : memref<1x8x32xf32, #tpu.memory_space<vmem>>, vector<1x8x32xf32>
    %4 = vector.shape_cast %3 : vector<1x8x32xf32> to vector<8x32xf32>
    %5 = arith.truncf %4 : vector<8x32xf32> to vector<8x32xbf16>
    %c0_3 = arith.constant 0 : index
    %c0_4 = arith.constant 0 : index
    %6 = vector.load %arg9[%c0_3, %c0_4] : memref<32x64xbf16, #tpu.memory_space<vmem>>, vector<32x64xbf16>
    %cst = arith.constant dense<0.000000e+00> : vector<8x64xf32>
    %7 = tpu.matmul %5, %6, %cst {dimension_numbers = #tpu.dot_dimension_numbers<[1], [0], [0], [1], [0, 0, 1, 1], [], []>} : vector<8x32xbf16>, vector<32x64xbf16>, vector<8x64xf32> -> vector<8x64xf32>
    %c0_5 = arith.constant 0 : index
    %c0_6 = arith.constant 0 : index
    %8 = vector.load %arg10[%c0_5, %c0_6] : memref<1x64xf32, #tpu.memory_space<vmem>>, vector<1x64xf32>
    %9 = vector.broadcast %8 : vector<1x64xf32> to vector<8x64xf32>
    %10 = arith.addf %7, %9 : vector<8x64xf32>
    %cst_7 = arith.constant 0.000000e+00 : f32
    %11 = vector.broadcast %cst_7 : f32 to vector<8x64xf32>
    %12 = arith.maximumf %10, %11 : vector<8x64xf32>
    %c0_8 = arith.constant 0 : index
    %c0_9 = arith.constant 0 : index
    %c0_10 = arith.constant 0 : index
    %13 = vector.load %arg21[%c0_8, %c0_9, %c0_10] : memref<1x8x32xf32, #tpu.memory_space<vmem>>, vector<1x8x32xf32>
    %14 = arith.truncf %12 : vector<8x64xf32> to vector<8x64xbf16>
    %c0_11 = arith.constant 0 : index
    %c0_12 = arith.constant 0 : index
    %15 = vector.load %arg11[%c0_11, %c0_12] : memref<64x32xbf16, #tpu.memory_space<vmem>>, vector<64x32xbf16>
    %cst_13 = arith.constant dense<0.000000e+00> : vector<8x32xf32>
    %16 = tpu.matmul %14, %15, %cst_13 {dimension_numbers = #tpu.dot_dimension_numbers<[1], [0], [0], [1], [0, 0, 1, 1], [], []>} : vector<8x64xbf16>, vector<64x32xbf16>, vector<8x32xf32> -> vector<8x32xf32>
    %17 = vector.shape_cast %16 : vector<8x32xf32> to vector<1x8x32xf32>
    %18 = arith.addf %13, %17 : vector<1x8x32xf32>
    %c0_14 = arith.constant 0 : index
    %c0_15 = arith.constant 0 : index
    %c0_16 = arith.constant 0 : index
    %19 = vector.load %arg21[%c0_14, %c0_15, %c0_16] : memref<1x8x32xf32, #tpu.memory_space<vmem>>, vector<1x8x32xf32>
    tpu.vector_store %arg21[%c0_14, %c0_15, %c0_16], %18 {strides = array<i32>} : memref<1x8x32xf32, #tpu.memory_space<vmem>>, vector<1x8x32xf32>,
    %c0_i32_17 = arith.constant 0 : i32
    %20 = arith.cmpi eq, %arg1, %c0_i32_17 : i32
    %21 = arith.extui %20 : i1 to i32
    %c0_i32_18 = arith.constant 0 : i32
    %22 = arith.cmpi ne, %21, %c0_i32_18 : i32
    scf.if %22 {
      %c0_19 = arith.constant 0 : index
      %c0_20 = arith.constant 0 : index
      %c0_21 = arith.constant 0 : index
      %23 = vector.load %arg20[%c0_19, %c0_20, %c0_21] : memref<1x8x32xf32, #tpu.memory_space<vmem>>, vector<1x8x32xf32>
      %24 = vector.shape_cast %23 : vector<1x8x32xf32> to vector<8x32xf32>
      %c0_22 = arith.constant 0 : index
      %c0_23 = arith.constant 0 : index
      %c0_24 = arith.constant 0 : index
      %25 = vector.load %arg21[%c0_22, %c0_23, %c0_24] : memref<1x8x32xf32, #tpu.memory_space<vmem>>, vector<1x8x32xf32>
      %26 = vector.shape_cast %25 : vector<1x8x32xf32> to vector<8x32xf32>
      %27 = arith.addf %24, %26 : vector<8x32xf32>
      %c0_25 = arith.constant 0 : index
      %c0_26 = arith.constant 0 : index
      %28 = vector.load %arg12[%c0_25, %c0_26] : memref<1x32xf32, #tpu.memory_space<vmem>>, vector<1x32xf32>
      %29 = vector.broadcast %28 : vector<1x32xf32> to vector<8x32xf32>
      %30 = arith.addf %27, %29 : vector<8x32xf32>
      %c0_27 = arith.constant 0 : index
      %c0_28 = arith.constant 0 : index
      %31 = vector.load %arg13[%c0_27, %c0_28] : memref<1x32xf32, #tpu.memory_space<vmem>>, vector<1x32xf32>
      %c0_29 = arith.constant 0 : index
      %c0_30 = arith.constant 0 : index
      %32 = vector.load %arg14[%c0_29, %c0_30] : memref<1x32xf32, #tpu.memory_space<vmem>>, vector<1x32xf32>
      %cst_31 = arith.constant dense<0.000000e+00> : vector<8xf32>
      %33 = vector.multi_reduction <add>, %30, %cst_31 [1] : vector<8x32xf32> to vector<8xf32>
      %34 = vector.shape_cast %33 : vector<8xf32> to vector<8x1xf32>
      %cst_32 = arith.constant 3.200000e+01 : f32
      %35 = vector.broadcast %cst_32 : f32 to vector<8x1xf32>
      %36 = arith.divf %34, %35 : vector<8x1xf32>
      %37 = vector.broadcast %36 : vector<8x1xf32> to vector<8x32xf32>
      %38 = arith.subf %30, %37 : vector<8x32xf32>
      %39 = arith.mulf %38, %38 : vector<8x32xf32>
      %cst_33 = arith.constant dense<0.000000e+00> : vector<8xf32>
      %40 = vector.multi_reduction <add>, %39, %cst_33 [1] : vector<8x32xf32> to vector<8xf32>
      %41 = vector.shape_cast %40 : vector<8xf32> to vector<8x1xf32>
      %cst_34 = arith.constant 3.200000e+01 : f32
      %42 = vector.broadcast %cst_34 : f32 to vector<8x1xf32>
      %43 = arith.divf %41, %42 : vector<8x1xf32>
      %44 = vector.broadcast %36 : vector<8x1xf32> to vector<8x32xf32>
      %45 = arith.subf %30, %44 : vector<8x32xf32>
      %cst_35 = arith.constant 9.99999974E-6 : f32
      %46 = vector.broadcast %cst_35 : f32 to vector<8x1xf32>
      %47 = arith.addf %43, %46 : vector<8x1xf32>
      %48 = math.rsqrt %47 : vector<8x1xf32>
      %49 = vector.broadcast %48 : vector<8x1xf32> to vector<8x32xf32>
      %50 = arith.mulf %45, %49 : vector<8x32xf32>
      %51 = vector.broadcast %31 : vector<1x32xf32> to vector<8x32xf32>
      %52 = arith.mulf %50, %51 : vector<8x32xf32>
      %53 = vector.broadcast %32 : vector<1x32xf32> to vector<8x32xf32>
      %54 = arith.addf %52, %53 : vector<8x32xf32>
      %55 = vector.shape_cast %54 : vector<8x32xf32> to vector<1x8x32xf32>
      %56 = arith.truncf %55 : vector<1x8x32xf32> to vector<1x8x32xbf16>
      %c0_36 = arith.constant 0 : index
      %c0_37 = arith.constant 0 : index
      %c0_38 = arith.constant 0 : index
      %57 = vector.load %arg15[%c0_36, %c0_37, %c0_38] : memref<1x8x32xbf16, #tpu.memory_space<vmem>>, vector<1x8x32xbf16>
      tpu.vector_store %arg15[%c0_36, %c0_37, %c0_38], %56 {strides = array<i32>} : memref<1x8x32xbf16, #tpu.memory_space<vmem>>, vector<1x8x32xbf16>,
    } else {
    }
    return
  }
  func.func @transform_0(%arg0: i32, %arg1: i32) -> (i32, i32, i32) {
    %c0_i32 = arith.constant 0 : i32
    %c0_i32_0 = arith.constant 0 : i32
    %c0_i32_1 = arith.constant 0 : i32
    return %arg0, %c0_i32, %c0_i32_0 : i32, i32, i32
  }
  func.func @transform_1(%arg0: i32, %arg1: i32) -> (i32, i32) {
    %c0_i32 = arith.constant 0 : i32
    %c0_i32_0 = arith.constant 0 : i32
    %c0_i32_1 = arith.constant 0 : i32
    return %c0_i32, %c0_i32_0 : i32, i32
  }
  func.func @transform_2(%arg0: i32, %arg1: i32) -> (i32, i32) {
    %c0_i32 = arith.constant 0 : i32
    %c0_i32_0 = arith.constant 0 : i32
    %c0_i32_1 = arith.constant 0 : i32
    return %c0_i32, %c0_i32_0 : i32, i32
  }
  func.func @transform_3(%arg0: i32, %arg1: i32) -> (i32, i32) {
    %c0_i32 = arith.constant 0 : i32
    %c0_i32_0 = arith.constant 0 : i32
    %c0_i32_1 = arith.constant 0 : i32
    return %c0_i32, %c0_i32_0 : i32, i32
  }
  func.func @transform_4(%arg0: i32, %arg1: i32) -> (i32, i32) {
    %c0_i32 = arith.constant 0 : i32
    %c0_i32_0 = arith.constant 0 : i32
    %c0_i32_1 = arith.constant 0 : i32
    return %c0_i32, %c0_i32_0 : i32, i32
  }
  func.func @transform_5(%arg0: i32, %arg1: i32) -> (i32, i32) {
    %c0_i32 = arith.constant 0 : i32
    %c0_i32_0 = arith.constant 0 : i32
    %c0_i32_1 = arith.constant 0 : i32
    return %c0_i32, %c0_i32_0 : i32, i32
  }
  func.func @transform_6(%arg0: i32, %arg1: i32) -> (i32, i32) {
    %c0_i32 = arith.constant 0 : i32
    %c0_i32_0 = arith.constant 0 : i32
    %c0_i32_1 = arith.constant 0 : i32
    return %c0_i32, %c0_i32_0 : i32, i32
  }
  func.func @transform_7(%arg0: i32, %arg1: i32) -> (i32, i32) {
    %c0_i32 = arith.constant 0 : i32
    %c0_i32_0 = arith.constant 0 : i32
    return %c0_i32, %arg1 : i32, i32
  }
  func.func @transform_8(%arg0: i32, %arg1: i32) -> (i32, i32) {
    %c0_i32 = arith.constant 0 : i32
    %c0_i32_0 = arith.constant 0 : i32
    return %c0_i32, %arg1 : i32, i32
  }
  func.func @transform_9(%arg0: i32, %arg1: i32) -> (i32, i32) {
    %c0_i32 = arith.constant 0 : i32
    %c0_i32_0 = arith.constant 0 : i32
    return %arg1, %c0_i32 : i32, i32
  }
  func.func @transform_10(%arg0: i32, %arg1: i32) -> (i32, i32) {
    %c0_i32 = arith.constant 0 : i32
    %c0_i32_0 = arith.constant 0 : i32
    %c0_i32_1 = arith.constant 0 : i32
    return %c0_i32, %c0_i32_0 : i32, i32
  }
  func.func @transform_11(%arg0: i32, %arg1: i32) -> (i32, i32) {
    %c0_i32 = arith.constant 0 : i32
    %c0_i32_0 = arith.constant 0 : i32
    %c0_i32_1 = arith.constant 0 : i32
    return %c0_i32, %c0_i32_0 : i32, i32
  }
  func.func @transform_12(%arg0: i32, %arg1: i32) -> (i32, i32) {
    %c0_i32 = arith.constant 0 : i32
    %c0_i32_0 = arith.constant 0 : i32
    %c0_i32_1 = arith.constant 0 : i32
    return %c0_i32, %c0_i32_0 : i32, i32
  }
  func.func @transform_13(%arg0: i32, %arg1: i32) -> (i32, i32, i32) {
    %c0_i32 = arith.constant 0 : i32
    %c0_i32_0 = arith.constant 0 : i32
    %c0_i32_1 = arith.constant 0 : i32
    return %arg0, %c0_i32, %c0_i32_0 : i32, i32, i32
  }
}

module attributes {stable_mosaic.version = 11 : i64} {
  func.func @encoder_layer_kernel(%arg0: i32, %arg1: i32, %arg2: memref<1x8x32xbf16, #tpu.memory_space<vmem>>, %arg3: memref<32x96xbf16, #tpu.memory_space<vmem>>, %arg4: memref<1x96xf32, #tpu.memory_space<vmem>>, %arg5: memref<32x32xbf16, #tpu.memory_space<vmem>>, %arg6: memref<1x32xf32, #tpu.memory_space<vmem>>, %arg7: memref<1x32xf32, #tpu.memory_space<vmem>>, %arg8: memref<1x32xf32, #tpu.memory_space<vmem>>, %arg9: memref<32x64xbf16, #tpu.memory_space<vmem>>, %arg10: memref<1x64xf32, #tpu.memory_space<vmem>>, %arg11: memref<64x32xbf16, #tpu.memory_space<vmem>>, %arg12: memref<1x32xf32, #tpu.memory_space<vmem>>, %arg13: memref<1x32xf32, #tpu.memory_space<vmem>>, %arg14: memref<1x32xf32, #tpu.memory_space<vmem>>, %arg15: memref<1x8x32xbf16, #tpu.memory_space<vmem>>, %arg16: memref<1x4x8x8xbf16, #tpu.memory_space<vmem>>, %arg17: memref<1x4x8x8xbf16, #tpu.memory_space<vmem>>, %arg18: memref<1x4x8x8xbf16, #tpu.memory_space<vmem>>, %arg19: memref<1x8x32xf32, #tpu.memory_space<vmem>>, %arg20: memref<1x8x32xf32, #tpu.memory_space<vmem>>, %arg21: memref<1x8x32xf32, #tpu.memory_space<vmem>>) attributes {dimension_semantics = [#tpu.dimension_semantics<parallel>, #tpu.dimension_semantics<arbitrary>], iteration_bounds = array<i64: 2, 1>, scalar_prefetch = 0 : i64, scratch_operands = 6 : i64, tpu.core_type = #tpu.core_type<tc>, window_params = [{transform_indices = @transform_0, window_bounds = array<i64: 1, 8, 32>}, {pipeline_mode = #tpu.pipeline_mode<synchronous>, transform_indices = @transform_1, window_bounds = array<i64: 32, 96>}, {pipeline_mode = #tpu.pipeline_mode<synchronous>, transform_indices = @transform_2, window_bounds = array<i64: 1, 96>}, {pipeline_mode = #tpu.pipeline_mode<synchronous>, transform_indices = @transform_3, window_bounds = array<i64: 32, 32>}, {pipeline_mode = #tpu.pipeline_mode<synchronous>, transform_indices = @transform_4, window_bounds = array<i64: 1, 32>}, {pipeline_mode = #tpu.pipeline_mode<synchronous>, transform_indices = @transform_5, window_bounds = array<i64: 1, 32>}, {pipeline_mode = #tpu.pipeline_mode<synchronous>, transform_indices = @transform_6, window_bounds = array<i64: 1, 32>}, {transform_indices = @transform_7, window_bounds = array<i64: 32, 64>}, {transform_indices = @transform_8, window_bounds = array<i64: 1, 64>}, {transform_indices = @transform_9, window_bounds = array<i64: 64, 32>}, {pipeline_mode = #tpu.pipeline_mode<synchronous>, transform_indices = @transform_10, window_bounds = array<i64: 1, 32>}, {pipeline_mode = #tpu.pipeline_mode<synchronous>, transform_indices = @transform_11, window_bounds = array<i64: 1, 32>}, {pipeline_mode = #tpu.pipeline_mode<synchronous>, transform_indices = @transform_12, window_bounds = array<i64: 1, 32>}, {transform_indices = @transform_13, window_bounds = array<i64: 1, 8, 32>}]} {
    %c0_i32 = arith.constant 0 : i32
    %0 = arith.cmpi eq, %arg1, %c0_i32 : i32
    %1 = arith.extui %0 : i1 to i32
    %c0_i32_0 = arith.constant 0 : i32
    %2 = arith.cmpi ne, %1, %c0_i32_0 : i32
    scf.if %2 {
      %c0_19 = arith.constant 0 : index
      %c0_20 = arith.constant 0 : index
      %c0_21 = arith.constant 0 : index
      %23 = vector.load %arg2[%c0_19, %c0_20, %c0_21] : memref<1x8x32xbf16, #tpu.memory_space<vmem>>, vector<1x8x32xbf16>
      %24 = vector.shape_cast %23 : vector<1x8x32xbf16> to vector<8x32xbf16>
      %c0_22 = arith.constant 0 : index
      %c0_23 = arith.constant 0 : index
      %25 = vector.load %arg3[%c0_22, %c0_23] : memref<32x96xbf16, #tpu.memory_space<vmem>>, vector<32x96xbf16>
      %cst_24 = arith.constant dense<0.000000e+00> : vector<8x96xf32>
      %26 = tpu.matmul %24, %25, %cst_24 {dimension_numbers = #tpu.dot_dimension_numbers<[1], [0], [0], [1], [0, 0, 1, 1], [], []>} : vector<8x32xbf16>, vector<32x96xbf16>, vector<8x96xf32> -> vector<8x96xf32>
      %c0_25 = arith.constant 0 : index
      %c0_26 = arith.constant 0 : index
      %27 = vector.load %arg4[%c0_25, %c0_26] : memref<1x96xf32, #tpu.memory_space<vmem>>, vector<1x96xf32>
      %28 = vector.broadcast %27 : vector<1x96xf32> to vector<8x96xf32>
      %29 = arith.addf %26, %28 : vector<8x96xf32>
      %30 = vector.shape_cast %29 : vector<8x96xf32> to vector<1x8x96xf32>
      %31 = vector.extract_strided_slice %30 {offsets = [0, 0, 0], sizes = [1, 8, 8], strides = [1, 1, 1]} : vector<1x8x96xf32> to vector<1x8x8xf32>
      %32 = arith.truncf %31 : vector<1x8x8xf32> to vector<1x8x8xbf16>
      %c0_27 = arith.constant 0 : index
      %c0_28 = arith.constant 0 : index
      %c0_29 = arith.constant 0 : index
      %c0_30 = arith.constant 0 : index
      %33 = vector.load %arg16[%c0_27, %c0_28, %c0_29, %c0_30] : memref<1x4x8x8xbf16, #tpu.memory_space<vmem>>, vector<1x1x8x8xbf16>
      %34 = vector.shape_cast %33 : vector<1x1x8x8xbf16> to vector<1x8x8xbf16>
      %35 = vector.shape_cast %32 : vector<1x8x8xbf16> to vector<1x1x8x8xbf16>
      tpu.vector_store %arg16[%c0_27, %c0_28, %c0_29, %c0_30], %35 {strides = array<i32>} : memref<1x4x8x8xbf16, #tpu.memory_space<vmem>>, vector<1x1x8x8xbf16>,
      %36 = vector.extract_strided_slice %30 {offsets = [0, 0, 32], sizes = [1, 8, 8], strides = [1, 1, 1]} : vector<1x8x96xf32> to vector<1x8x8xf32>
      %37 = arith.truncf %36 : vector<1x8x8xf32> to vector<1x8x8xbf16>
      %c0_31 = arith.constant 0 : index
      %c0_32 = arith.constant 0 : index
      %c0_33 = arith.constant 0 : index
      %c0_34 = arith.constant 0 : index
      %38 = vector.load %arg17[%c0_31, %c0_32, %c0_33, %c0_34] : memref<1x4x8x8xbf16, #tpu.memory_space<vmem>>, vector<1x1x8x8xbf16>
      %39 = vector.shape_cast %38 : vector<1x1x8x8xbf16> to vector<1x8x8xbf16>
      %40 = vector.shape_cast %37 : vector<1x8x8xbf16> to vector<1x1x8x8xbf16>
      tpu.vector_store %arg17[%c0_31, %c0_32, %c0_33, %c0_34], %40 {strides = array<i32>} : memref<1x4x8x8xbf16, #tpu.memory_space<vmem>>, vector<1x1x8x8xbf16>,
      %41 = vector.extract_strided_slice %30 {offsets = [0, 0, 64], sizes = [1, 8, 8], strides = [1, 1, 1]} : vector<1x8x96xf32> to vector<1x8x8xf32>
      %42 = arith.truncf %41 : vector<1x8x8xf32> to vector<1x8x8xbf16>
      %c0_35 = arith.constant 0 : index
      %c0_36 = arith.constant 0 : index
      %c0_37 = arith.constant 0 : index
      %c0_38 = arith.constant 0 : index
      %43 = vector.load %arg18[%c0_35, %c0_36, %c0_37, %c0_38] : memref<1x4x8x8xbf16, #tpu.memory_space<vmem>>, vector<1x1x8x8xbf16>
      %44 = vector.shape_cast %43 : vector<1x1x8x8xbf16> to vector<1x8x8xbf16>
      %45 = vector.shape_cast %42 : vector<1x8x8xbf16> to vector<1x1x8x8xbf16>
      tpu.vector_store %arg18[%c0_35, %c0_36, %c0_37, %c0_38], %45 {strides = array<i32>} : memref<1x4x8x8xbf16, #tpu.memory_space<vmem>>, vector<1x1x8x8xbf16>,
      %46 = vector.extract_strided_slice %30 {offsets = [0, 0, 8], sizes = [1, 8, 8], strides = [1, 1, 1]} : vector<1x8x96xf32> to vector<1x8x8xf32>
      %47 = arith.truncf %46 : vector<1x8x8xf32> to vector<1x8x8xbf16>
      %c0_39 = arith.constant 0 : index
      %c1 = arith.constant 1 : index
      %c0_40 = arith.constant 0 : index
      %c0_41 = arith.constant 0 : index
      %48 = vector.load %arg16[%c0_39, %c1, %c0_40, %c0_41] : memref<1x4x8x8xbf16, #tpu.memory_space<vmem>>, vector<1x1x8x8xbf16>
      %49 = vector.shape_cast %48 : vector<1x1x8x8xbf16> to vector<1x8x8xbf16>
      %50 = vector.shape_cast %47 : vector<1x8x8xbf16> to vector<1x1x8x8xbf16>
      tpu.vector_store %arg16[%c0_39, %c1, %c0_40, %c0_41], %50 {strides = array<i32>} : memref<1x4x8x8xbf16, #tpu.memory_space<vmem>>, vector<1x1x8x8xbf16>,
      %51 = vector.extract_strided_slice %30 {offsets = [0, 0, 40], sizes = [1, 8, 8], strides = [1, 1, 1]} : vector<1x8x96xf32> to vector<1x8x8xf32>
      %52 = arith.truncf %51 : vector<1x8x8xf32> to vector<1x8x8xbf16>
      %c0_42 = arith.constant 0 : index
      %c1_43 = arith.constant 1 : index
      %c0_44 = arith.constant 0 : index
      %c0_45 = arith.constant 0 : index
      %53 = vector.load %arg17[%c0_42, %c1_43, %c0_44, %c0_45] : memref<1x4x8x8xbf16, #tpu.memory_space<vmem>>, vector<1x1x8x8xbf16>
      %54 = vector.shape_cast %53 : vector<1x1x8x8xbf16> to vector<1x8x8xbf16>
      %55 = vector.shape_cast %52 : vector<1x8x8xbf16> to vector<1x1x8x8xbf16>
      tpu.vector_store %arg17[%c0_42, %c1_43, %c0_44, %c0_45], %55 {strides = array<i32>} : memref<1x4x8x8xbf16, #tpu.memory_space<vmem>>, vector<1x1x8x8xbf16>,
      %56 = vector.extract_strided_slice %30 {offsets = [0, 0, 72], sizes = [1, 8, 8], strides = [1, 1, 1]} : vector<1x8x96xf32> to vector<1x8x8xf32>
      %57 = arith.truncf %56 : vector<1x8x8xf32> to vector<1x8x8xbf16>
      %c0_46 = arith.constant 0 : index
      %c1_47 = arith.constant 1 : index
      %c0_48 = arith.constant 0 : index
      %c0_49 = arith.constant 0 : index
      %58 = vector.load %arg18[%c0_46, %c1_47, %c0_48, %c0_49] : memref<1x4x8x8xbf16, #tpu.memory_space<vmem>>, vector<1x1x8x8xbf16>
      %59 = vector.shape_cast %58 : vector<1x1x8x8xbf16> to vector<1x8x8xbf16>
      %60 = vector.shape_cast %57 : vector<1x8x8xbf16> to vector<1x1x8x8xbf16>
      tpu.vector_store %arg18[%c0_46, %c1_47, %c0_48, %c0_49], %60 {strides = array<i32>} : memref<1x4x8x8xbf16, #tpu.memory_space<vmem>>, vector<1x1x8x8xbf16>,
      %61 = vector.extract_strided_slice %30 {offsets = [0, 0, 16], sizes = [1, 8, 8], strides = [1, 1, 1]} : vector<1x8x96xf32> to vector<1x8x8xf32>
      %62 = arith.truncf %61 : vector<1x8x8xf32> to vector<1x8x8xbf16>
      %c0_50 = arith.constant 0 : index
      %c2 = arith.constant 2 : index
      %c0_51 = arith.constant 0 : index
      %c0_52 = arith.constant 0 : index
      %63 = vector.load %arg16[%c0_50, %c2, %c0_51, %c0_52] : memref<1x4x8x8xbf16, #tpu.memory_space<vmem>>, vector<1x1x8x8xbf16>
      %64 = vector.shape_cast %63 : vector<1x1x8x8xbf16> to vector<1x8x8xbf16>
      %65 = vector.shape_cast %62 : vector<1x8x8xbf16> to vector<1x1x8x8xbf16>
      tpu.vector_store %arg16[%c0_50, %c2, %c0_51, %c0_52], %65 {strides = array<i32>} : memref<1x4x8x8xbf16, #tpu.memory_space<vmem>>, vector<1x1x8x8xbf16>,
      %66 = vector.extract_strided_slice %30 {offsets = [0, 0, 48], sizes = [1, 8, 8], strides = [1, 1, 1]} : vector<1x8x96xf32> to vector<1x8x8xf32>
      %67 = arith.truncf %66 : vector<1x8x8xf32> to vector<1x8x8xbf16>
      %c0_53 = arith.constant 0 : index
      %c2_54 = arith.constant 2 : index
      %c0_55 = arith.constant 0 : index
      %c0_56 = arith.constant 0 : index
      %68 = vector.load %arg17[%c0_53, %c2_54, %c0_55, %c0_56] : memref<1x4x8x8xbf16, #tpu.memory_space<vmem>>, vector<1x1x8x8xbf16>
      %69 = vector.shape_cast %68 : vector<1x1x8x8xbf16> to vector<1x8x8xbf16>
      %70 = vector.shape_cast %67 : vector<1x8x8xbf16> to vector<1x1x8x8xbf16>
      tpu.vector_store %arg17[%c0_53, %c2_54, %c0_55, %c0_56], %70 {strides = array<i32>} : memref<1x4x8x8xbf16, #tpu.memory_space<vmem>>, vector<1x1x8x8xbf16>,
      %71 = vector.extract_strided_slice %30 {offsets = [0, 0, 80], sizes = [1, 8, 8], strides = [1, 1, 1]} : vector<1x8x96xf32> to vector<1x8x8xf32>
      %72 = arith.truncf %71 : vector<1x8x8xf32> to vector<1x8x8xbf16>
      %c0_57 = arith.constant 0 : index
      %c2_58 = arith.constant 2 : index
      %c0_59 = arith.constant 0 : index
      %c0_60 = arith.constant 0 : index
      %73 = vector.load %arg18[%c0_57, %c2_58, %c0_59, %c0_60] : memref<1x4x8x8xbf16, #tpu.memory_space<vmem>>, vector<1x1x8x8xbf16>
      %74 = vector.shape_cast %73 : vector<1x1x8x8xbf16> to vector<1x8x8xbf16>
      %75 = vector.shape_cast %72 : vector<1x8x8xbf16> to vector<1x1x8x8xbf16>
      tpu.vector_store %arg18[%c0_57, %c2_58, %c0_59, %c0_60], %75 {strides = array<i32>} : memref<1x4x8x8xbf16, #tpu.memory_space<vmem>>, vector<1x1x8x8xbf16>,
      %76 = vector.extract_strided_slice %30 {offsets = [0, 0, 24], sizes = [1, 8, 8], strides = [1, 1, 1]} : vector<1x8x96xf32> to vector<1x8x8xf32>
      %77 = arith.truncf %76 : vector<1x8x8xf32> to vector<1x8x8xbf16>
      %c0_61 = arith.constant 0 : index
      %c3 = arith.constant 3 : index
      %c0_62 = arith.constant 0 : index
      %c0_63 = arith.constant 0 : index
      %78 = vector.load %arg16[%c0_61, %c3, %c0_62, %c0_63] : memref<1x4x8x8xbf16, #tpu.memory_space<vmem>>, vector<1x1x8x8xbf16>
      %79 = vector.shape_cast %78 : vector<1x1x8x8xbf16> to vector<1x8x8xbf16>
      %80 = vector.shape_cast %77 : vector<1x8x8xbf16> to vector<1x1x8x8xbf16>
      tpu.vector_store %arg16[%c0_61, %c3, %c0_62, %c0_63], %80 {strides = array<i32>} : memref<1x4x8x8xbf16, #tpu.memory_space<vmem>>, vector<1x1x8x8xbf16>,
      %81 = vector.extract_strided_slice %30 {offsets = [0, 0, 56], sizes = [1, 8, 8], strides = [1, 1, 1]} : vector<1x8x96xf32> to vector<1x8x8xf32>
      %82 = arith.truncf %81 : vector<1x8x8xf32> to vector<1x8x8xbf16>
      %c0_64 = arith.constant 0 : index
      %c3_65 = arith.constant 3 : index
      %c0_66 = arith.constant 0 : index
      %c0_67 = arith.constant 0 : index
      %83 = vector.load %arg17[%c0_64, %c3_65, %c0_66, %c0_67] : memref<1x4x8x8xbf16, #tpu.memory_space<vmem>>, vector<1x1x8x8xbf16>
      %84 = vector.shape_cast %83 : vector<1x1x8x8xbf16> to vector<1x8x8xbf16>
      %85 = vector.shape_cast %82 : vector<1x8x8xbf16> to vector<1x1x8x8xbf16>
      tpu.vector_store %arg17[%c0_64, %c3_65, %c0_66, %c0_67], %85 {strides = array<i32>} : memref<1x4x8x8xbf16, #tpu.memory_space<vmem>>, vector<1x1x8x8xbf16>,
      %86 = vector.extract_strided_slice %30 {offsets = [0, 0, 88], sizes = [1, 8, 8], strides = [1, 1, 1]} : vector<1x8x96xf32> to vector<1x8x8xf32>
      %87 = arith.truncf %86 : vector<1x8x8xf32> to vector<1x8x8xbf16>
      %c0_68 = arith.constant 0 : index
      %c3_69 = arith.constant 3 : index
      %c0_70 = arith.constant 0 : index
      %c0_71 = arith.constant 0 : index
      %88 = vector.load %arg18[%c0_68, %c3_69, %c0_70, %c0_71] : memref<1x4x8x8xbf16, #tpu.memory_space<vmem>>, vector<1x1x8x8xbf16>
      %89 = vector.shape_cast %88 : vector<1x1x8x8xbf16> to vector<1x8x8xbf16>
      %90 = vector.shape_cast %87 : vector<1x8x8xbf16> to vector<1x1x8x8xbf16>
      tpu.vector_store %arg18[%c0_68, %c3_69, %c0_70, %c0_71], %90 {strides = array<i32>} : memref<1x4x8x8xbf16, #tpu.memory_space<vmem>>, vector<1x1x8x8xbf16>,
      %91 = tpu.iota {dimensions = array<i32: 0>} : vector<8x8xi32>
      %92 = tpu.iota {dimensions = array<i32: 1>} : vector<8x8xi32>
      %93 = arith.cmpi sge, %91, %92 : vector<8x8xi32>
      %94 = vector.shape_cast %93 : vector<8x8xi1> to vector<1x8x8xi1>
      %c0_72 = arith.constant 0 : index
      %c0_73 = arith.constant 0 : index
      %c0_74 = arith.constant 0 : index
      %c0_75 = arith.constant 0 : index
      %95 = vector.load %arg16[%c0_72, %c0_73, %c0_74, %c0_75] : memref<1x4x8x8xbf16, #tpu.memory_space<vmem>>, vector<1x4x8x8xbf16>
      %96 = vector.shape_cast %95 : vector<1x4x8x8xbf16> to vector<4x8x8xbf16>
      %cst_76 = arith.constant -1.000000e+30 : f32
      %97 = vector.broadcast %cst_76 : f32 to vector<4x8x1xf32>
      %cst_77 = arith.constant 0.000000e+00 : f32
      %98 = vector.broadcast %cst_77 : f32 to vector<4x8x1xf32>
      %cst_78 = arith.constant 0.000000e+00 : f32
      %99 = vector.broadcast %cst_78 : f32 to vector<4x8x8xf32>
      %c0_79 = arith.constant 0 : index
      %c0_80 = arith.constant 0 : index
      %c0_81 = arith.constant 0 : index
      %c0_82 = arith.constant 0 : index
      %100 = vector.load %arg17[%c0_79, %c0_80, %c0_81, %c0_82] : memref<1x4x8x8xbf16, #tpu.memory_space<vmem>>, vector<1x4x8x8xbf16>
      %101 = vector.shape_cast %100 : vector<1x4x8x8xbf16> to vector<4x8x8xbf16>
      %c0_83 = arith.constant 0 : index
      %c0_84 = arith.constant 0 : index
      %c0_85 = arith.constant 0 : index
      %c0_86 = arith.constant 0 : index
      %102 = vector.load %arg18[%c0_83, %c0_84, %c0_85, %c0_86] : memref<1x4x8x8xbf16, #tpu.memory_space<vmem>>, vector<1x4x8x8xbf16>
      %103 = vector.shape_cast %102 : vector<1x4x8x8xbf16> to vector<4x8x8xbf16>
      "tpu.trace_start"() <{level = 10 : i32, message = "zqd,zkd->zqk"}> : () -> ()
      %cst_87 = arith.constant dense<0.000000e+00> : vector<4x8x8xf32>
      %104 = tpu.matmul %96, %101, %cst_87 {dimension_numbers = #tpu.dot_dimension_numbers<[2], [2], [1], [1], [0, 0, 0, 1, 1, 1], [0], [0]>} : vector<4x8x8xbf16>, vector<4x8x8xbf16>, vector<4x8x8xf32> -> vector<4x8x8xf32>
      %cst_88 = arith.constant -1.000000e+30 : f32
      "tpu.trace_stop"() : () -> ()
      %105 = vector.shape_cast %94 : vector<1x8x8xi1> to vector<1x8x8xi1>
      %106 = vector.broadcast %105 : vector<1x8x8xi1> to vector<4x8x8xi1>
      %107 = vector.broadcast %cst_88 : f32 to vector<4x8x8xf32>
      %108 = arith.select %106, %104, %107 : vector<4x8x8xi1>, vector<4x8x8xf32>
      %cst_89 = arith.constant dense<0xFF800000> : vector<4x8xf32>
      %109 = vector.multi_reduction <maximumf>, %108, %cst_89 [2] : vector<4x8x8xf32> to vector<4x8xf32>
      %110 = vector.shape_cast %109 : vector<4x8xf32> to vector<4x8x1xf32>
      %111 = arith.maximumf %97, %110 : vector<4x8x1xf32>
      %112 = arith.subf %97, %111 : vector<4x8x1xf32>
      %113 = math.exp %112 : vector<4x8x1xf32>
      %114 = vector.broadcast %111 : vector<4x8x1xf32> to vector<4x8x8xf32>
      %115 = arith.subf %108, %114 : vector<4x8x8xf32>
      %116 = math.exp %115 : vector<4x8x8xf32>
      %117 = arith.mulf %113, %98 : vector<4x8x1xf32>
      %cst_90 = arith.constant dense<0.000000e+00> : vector<4x8xf32>
      %118 = vector.multi_reduction <add>, %116, %cst_90 [2] : vector<4x8x8xf32> to vector<4x8xf32>
      %119 = vector.shape_cast %118 : vector<4x8xf32> to vector<4x8x1xf32>
      %120 = arith.addf %117, %119 : vector<4x8x1xf32>
      %121 = arith.truncf %116 : vector<4x8x8xf32> to vector<4x8x8xbf16>
      "tpu.trace_start"() <{level = 10 : i32, message = "zqk,zkd->zqd"}> : () -> ()
      %cst_91 = arith.constant dense<0.000000e+00> : vector<4x8x8xf32>
      %122 = tpu.matmul %121, %103, %cst_91 {dimension_numbers = #tpu.dot_dimension_numbers<[2], [1], [1], [2], [0, 0, 0, 1, 1, 2], [0], [0]>} : vector<4x8x8xbf16>, vector<4x8x8xbf16>, vector<4x8x8xf32> -> vector<4x8x8xf32>
      "tpu.trace_stop"() : () -> ()
      %123 = vector.broadcast %113 : vector<4x8x1xf32> to vector<4x8x8xf32>
      %124 = arith.mulf %123, %99 : vector<4x8x8xf32>
      %125 = arith.addf %124, %122 : vector<4x8x8xf32>
      %126 = tpu.reciprocal %120 {approx = true} : vector<4x8x1xf32> -> vector<4x8x1xf32>
      %127 = vector.broadcast %126 : vector<4x8x1xf32> to vector<4x8x8xf32>
      %128 = arith.mulf %125, %127 : vector<4x8x8xf32>
      %129 = vector.shape_cast %128 : vector<4x8x8xf32> to vector<1x4x8x8xf32>
      %130 = vector.extract_strided_slice %129 {offsets = [0, 0, 0, 0], sizes = [1, 1, 8, 8], strides = [1, 1, 1, 1]} : vector<1x4x8x8xf32> to vector<1x1x8x8xf32>
      %131 = vector.shape_cast %130 : vector<1x1x8x8xf32> to vector<1x8x8xf32>
      %c0_92 = arith.constant 0 : index
      %c0_93 = arith.constant 0 : index
      %c0_94 = arith.constant 0 : index
      %132 = vector.load %arg19[%c0_92, %c0_93, %c0_94] : memref<1x8x32xf32, #tpu.memory_space<vmem>>, vector<1x8x8xf32>
      tpu.vector_store %arg19[%c0_92, %c0_93, %c0_94], %131 {strides = array<i32>} : memref<1x8x32xf32, #tpu.memory_space<vmem>>, vector<1x8x8xf32>,
      %133 = vector.extract_strided_slice %129 {offsets = [0, 1, 0, 0], sizes = [1, 1, 8, 8], strides = [1, 1, 1, 1]} : vector<1x4x8x8xf32> to vector<1x1x8x8xf32>
      %134 = vector.shape_cast %133 : vector<1x1x8x8xf32> to vector<1x8x8xf32>
      %c0_95 = arith.constant 0 : index
      %c0_96 = arith.constant 0 : index
      %c8 = arith.constant 8 : index
      %135 = vector.load %arg19[%c0_95, %c0_96, %c8] : memref<1x8x32xf32, #tpu.memory_space<vmem>>, vector<1x8x8xf32>
      tpu.vector_store %arg19[%c0_95, %c0_96, %c8], %134 {strides = array<i32>} : memref<1x8x32xf32, #tpu.memory_space<vmem>>, vector<1x8x8xf32>,
      %136 = vector.extract_strided_slice %129 {offsets = [0, 2, 0, 0], sizes = [1, 1, 8, 8], strides = [1, 1, 1, 1]} : vector<1x4x8x8xf32> to vector<1x1x8x8xf32>
      %137 = vector.shape_cast %136 : vector<1x1x8x8xf32> to vector<1x8x8xf32>
      %c0_97 = arith.constant 0 : index
      %c0_98 = arith.constant 0 : index
      %c16 = arith.constant 16 : index
      %138 = vector.load %arg19[%c0_97, %c0_98, %c16] : memref<1x8x32xf32, #tpu.memory_space<vmem>>, vector<1x8x8xf32>
      tpu.vector_store %arg19[%c0_97, %c0_98, %c16], %137 {strides = array<i32>} : memref<1x8x32xf32, #tpu.memory_space<vmem>>, vector<1x8x8xf32>,
      %139 = vector.extract_strided_slice %129 {offsets = [0, 3, 0, 0], sizes = [1, 1, 8, 8], strides = [1, 1, 1, 1]} : vector<1x4x8x8xf32> to vector<1x1x8x8xf32>
      %140 = vector.shape_cast %139 : vector<1x1x8x8xf32> to vector<1x8x8xf32>
      %c0_99 = arith.constant 0 : index
      %c0_100 = arith.constant 0 : index
      %c24 = arith.constant 24 : index
      %141 = vector.load %arg19[%c0_99, %c0_100, %c24] : memref<1x8x32xf32, #tpu.memory_space<vmem>>, vector<1x8x8xf32>
      tpu.vector_store %arg19[%c0_99, %c0_100, %c24], %140 {strides = array<i32>} : memref<1x8x32xf32, #tpu.memory_space<vmem>>, vector<1x8x8xf32>,
      %c0_101 = arith.constant 0 : index
      %c0_102 = arith.constant 0 : index
      %c0_103 = arith.constant 0 : index
      %142 = vector.load %arg19[%c0_101, %c0_102, %c0_103] : memref<1x8x32xf32, #tpu.memory_space<vmem>>, vector<1x8x32xf32>
      %143 = vector.shape_cast %142 : vector<1x8x32xf32> to vector<8x32xf32>
      %144 = arith.truncf %143 : vector<8x32xf32> to vector<8x32xbf16>
      %c0_104 = arith.constant 0 : index
      %c0_105 = arith.constant 0 : index
      %145 = vector.load %arg5[%c0_104, %c0_105] : memref<32x32xbf16, #tpu.memory_space<vmem>>, vector<32x32xbf16>
      %cst_106 = arith.constant dense<0.000000e+00> : vector<8x32xf32>
      %146 = tpu.matmul %144, %145, %cst_106 {dimension_numbers = #tpu.dot_dimension_numbers<[1], [0], [0], [1], [0, 0, 1, 1], [], []>} : vector<8x32xbf16>, vector<32x32xbf16>, vector<8x32xf32> -> vector<8x32xf32>
      %c0_107 = arith.constant 0 : index
      %c0_108 = arith.constant 0 : index
      %147 = vector.load %arg6[%c0_107, %c0_108] : memref<1x32xf32, #tpu.memory_space<vmem>>, vector<1x32xf32>
      %148 = vector.broadcast %147 : vector<1x32xf32> to vector<8x32xf32>
      %149 = arith.addf %146, %148 : vector<8x32xf32>
      %c0_109 = arith.constant 0 : index
      %c0_110 = arith.constant 0 : index
      %c0_111 = arith.constant 0 : index
      %150 = vector.load %arg2[%c0_109, %c0_110, %c0_111] : memref<1x8x32xbf16, #tpu.memory_space<vmem>>, vector<1x8x32xbf16>
      %151 = arith.extf %150 : vector<1x8x32xbf16> to vector<1x8x32xf32>
      %152 = vector.shape_cast %151 : vector<1x8x32xf32> to vector<8x32xf32>
      %153 = arith.addf %152, %149 : vector<8x32xf32>
      %c0_112 = arith.constant 0 : index
      %c0_113 = arith.constant 0 : index
      %154 = vector.load %arg7[%c0_112, %c0_113] : memref<1x32xf32, #tpu.memory_space<vmem>>, vector<1x32xf32>
      %c0_114 = arith.constant 0 : index
      %c0_115 = arith.constant 0 : index
      %155 = vector.load %arg8[%c0_114, %c0_115] : memref<1x32xf32, #tpu.memory_space<vmem>>, vector<1x32xf32>
      %cst_116 = arith.constant dense<0.000000e+00> : vector<8xf32>
      %156 = vector.multi_reduction <add>, %153, %cst_116 [1] : vector<8x32xf32> to vector<8xf32>
      %157 = vector.shape_cast %156 : vector<8xf32> to vector<8x1xf32>
      %cst_117 = arith.constant 3.200000e+01 : f32
      %158 = vector.broadcast %cst_117 : f32 to vector<8x1xf32>
      %159 = arith.divf %157, %158 : vector<8x1xf32>
      %160 = vector.broadcast %159 : vector<8x1xf32> to vector<8x32xf32>
      %161 = arith.subf %153, %160 : vector<8x32xf32>
      %162 = arith.mulf %161, %161 : vector<8x32xf32>
      %cst_118 = arith.constant dense<0.000000e+00> : vector<8xf32>
      %163 = vector.multi_reduction <add>, %162, %cst_118 [1] : vector<8x32xf32> to vector<8xf32>
      %164 = vector.shape_cast %163 : vector<8xf32> to vector<8x1xf32>
      %cst_119 = arith.constant 3.200000e+01 : f32
      %165 = vector.broadcast %cst_119 : f32 to vector<8x1xf32>
      %166 = arith.divf %164, %165 : vector<8x1xf32>
      %167 = vector.broadcast %159 : vector<8x1xf32> to vector<8x32xf32>
      %168 = arith.subf %153, %167 : vector<8x32xf32>
      %cst_120 = arith.constant 9.99999974E-6 : f32
      %169 = vector.broadcast %cst_120 : f32 to vector<8x1xf32>
      %170 = arith.addf %166, %169 : vector<8x1xf32>
      %171 = math.rsqrt %170 : vector<8x1xf32>
      %172 = vector.broadcast %171 : vector<8x1xf32> to vector<8x32xf32>
      %173 = arith.mulf %168, %172 : vector<8x32xf32>
      %174 = vector.broadcast %154 : vector<1x32xf32> to vector<8x32xf32>
      %175 = arith.mulf %173, %174 : vector<8x32xf32>
      %176 = vector.broadcast %155 : vector<1x32xf32> to vector<8x32xf32>
      %177 = arith.addf %175, %176 : vector<8x32xf32>
      %178 = vector.shape_cast %177 : vector<8x32xf32> to vector<1x8x32xf32>
      %c0_121 = arith.constant 0 : index
      %c0_122 = arith.constant 0 : index
      %c0_123 = arith.constant 0 : index
      %179 = vector.load %arg20[%c0_121, %c0_122, %c0_123] : memref<1x8x32xf32, #tpu.memory_space<vmem>>, vector<1x8x32xf32>
      tpu.vector_store %arg20[%c0_121, %c0_122, %c0_123], %178 {strides = array<i32>} : memref<1x8x32xf32, #tpu.memory_space<vmem>>, vector<1x8x32xf32>,
      %cst_124 = arith.constant 0.000000e+00 : f32
      %180 = vector.broadcast %cst_124 : f32 to vector<1x8x32xf32>
      %c0_125 = arith.constant 0 : index
      %c0_126 = arith.constant 0 : index
      %c0_127 = arith.constant 0 : index
      %181 = vector.load %arg21[%c0_125, %c0_126, %c0_127] : memref<1x8x32xf32, #tpu.memory_space<vmem>>, vector<1x8x32xf32>
      tpu.vector_store %arg21[%c0_125, %c0_126, %c0_127], %180 {strides = array<i32>} : memref<1x8x32xf32, #tpu.memory_space<vmem>>, vector<1x8x32xf32>,
    } else {
    }
    %c0 = arith.constant 0 : index
    %c0_1 = arith.constant 0 : index
    %c0_2 = arith.constant 0 : index
    %3 = vector.load %arg20[%c0, %c0_1, %c0_2] : memref<1x8x32xf32, #tpu.memory_space<vmem>>, vector<1x8x32xf32>
    %4 = vector.shape_cast %3 : vector<1x8x32xf32> to vector<8x32xf32>
    %5 = arith.truncf %4 : vector<8x32xf32> to vector<8x32xbf16>
    %c0_3 = arith.constant 0 : index
    %c0_4 = arith.constant 0 : index
    %6 = vector.load %arg9[%c0_3, %c0_4] : memref<32x64xbf16, #tpu.memory_space<vmem>>, vector<32x64xbf16>
    %cst = arith.constant dense<0.000000e+00> : vector<8x64xf32>
    %7 = tpu.matmul %5, %6, %cst {dimension_numbers = #tpu.dot_dimension_numbers<[1], [0], [0], [1], [0, 0, 1, 1], [], []>} : vector<8x32xbf16>, vector<32x64xbf16>, vector<8x64xf32> -> vector<8x64xf32>
    %c0_5 = arith.constant 0 : index
    %c0_6 = arith.constant 0 : index
    %8 = vector.load %arg10[%c0_5, %c0_6] : memref<1x64xf32, #tpu.memory_space<vmem>>, vector<1x64xf32>
    %9 = vector.broadcast %8 : vector<1x64xf32> to vector<8x64xf32>
    %10 = arith.addf %7, %9 : vector<8x64xf32>
    %cst_7 = arith.constant 0.000000e+00 : f32
    %11 = vector.broadcast %cst_7 : f32 to vector<8x64xf32>
    %12 = arith.maximumf %10, %11 : vector<8x64xf32>
    %c0_8 = arith.constant 0 : index
    %c0_9 = arith.constant 0 : index
    %c0_10 = arith.constant 0 : index
    %13 = vector.load %arg21[%c0_8, %c0_9, %c0_10] : memref<1x8x32xf32, #tpu.memory_space<vmem>>, vector<1x8x32xf32>
    %14 = arith.truncf %12 : vector<8x64xf32> to vector<8x64xbf16>
    %c0_11 = arith.constant 0 : index
    %c0_12 = arith.constant 0 : index
    %15 = vector.load %arg11[%c0_11, %c0_12] : memref<64x32xbf16, #tpu.memory_space<vmem>>, vector<64x32xbf16>
    %cst_13 = arith.constant dense<0.000000e+00> : vector<8x32xf32>
    %16 = tpu.matmul %14, %15, %cst_13 {dimension_numbers = #tpu.dot_dimension_numbers<[1], [0], [0], [1], [0, 0, 1, 1], [], []>} : vector<8x64xbf16>, vector<64x32xbf16>, vector<8x32xf32> -> vector<8x32xf32>
    %17 = vector.shape_cast %16 : vector<8x32xf32> to vector<1x8x32xf32>
    %18 = arith.addf %13, %17 : vector<1x8x32xf32>
    %c0_14 = arith.constant 0 : index
    %c0_15 = arith.constant 0 : index
    %c0_16 = arith.constant 0 : index
    %19 = vector.load %arg21[%c0_14, %c0_15, %c0_16] : memref<1x8x32xf32, #tpu.memory_space<vmem>>, vector<1x8x32xf32>
    tpu.vector_store %arg21[%c0_14, %c0_15, %c0_16], %18 {strides = array<i32>} : memref<1x8x32xf32, #tpu.memory_space<vmem>>, vector<1x8x32xf32>,
    %c0_i32_17 = arith.constant 0 : i32
    %20 = arith.cmpi eq, %arg1, %c0_i32_17 : i32
    %21 = arith.extui %20 : i1 to i32
    %c0_i32_18 = arith.constant 0 : i32
    %22 = arith.cmpi ne, %21, %c0_i32_18 : i32
    scf.if %22 {
      %c0_19 = arith.constant 0 : index
      %c0_20 = arith.constant 0 : index
      %c0_21 = arith.constant 0 : index
      %23 = vector.load %arg20[%c0_19, %c0_20, %c0_21] : memref<1x8x32xf32, #tpu.memory_space<vmem>>, vector<1x8x32xf32>
      %24 = vector.shape_cast %23 : vector<1x8x32xf32> to vector<8x32xf32>
      %c0_22 = arith.constant 0 : index
      %c0_23 = arith.constant 0 : index
      %c0_24 = arith.constant 0 : index
      %25 = vector.load %arg21[%c0_22, %c0_23, %c0_24] : memref<1x8x32xf32, #tpu.memory_space<vmem>>, vector<1x8x32xf32>
      %26 = vector.shape_cast %25 : vector<1x8x32xf32> to vector<8x32xf32>
      %27 = arith.addf %24, %26 : vector<8x32xf32>
      %c0_25 = arith.constant 0 : index
      %c0_26 = arith.constant 0 : index
      %28 = vector.load %arg12[%c0_25, %c0_26] : memref<1x32xf32, #tpu.memory_space<vmem>>, vector<1x32xf32>
      %29 = vector.broadcast %28 : vector<1x32xf32> to vector<8x32xf32>
      %30 = arith.addf %27, %29 : vector<8x32xf32>
      %c0_27 = arith.constant 0 : index
      %c0_28 = arith.constant 0 : index
      %31 = vector.load %arg13[%c0_27, %c0_28] : memref<1x32xf32, #tpu.memory_space<vmem>>, vector<1x32xf32>
      %c0_29 = arith.constant 0 : index
      %c0_30 = arith.constant 0 : index
      %32 = vector.load %arg14[%c0_29, %c0_30] : memref<1x32xf32, #tpu.memory_space<vmem>>, vector<1x32xf32>
      %cst_31 = arith.constant dense<0.000000e+00> : vector<8xf32>
      %33 = vector.multi_reduction <add>, %30, %cst_31 [1] : vector<8x32xf32> to vector<8xf32>
      %34 = vector.shape_cast %33 : vector<8xf32> to vector<8x1xf32>
      %cst_32 = arith.constant 3.200000e+01 : f32
      %35 = vector.broadcast %cst_32 : f32 to vector<8x1xf32>
      %36 = arith.divf %34, %35 : vector<8x1xf32>
      %37 = vector.broadcast %36 : vector<8x1xf32> to vector<8x32xf32>
      %38 = arith.subf %30, %37 : vector<8x32xf32>
      %39 = arith.mulf %38, %38 : vector<8x32xf32>
      %cst_33 = arith.constant dense<0.000000e+00> : vector<8xf32>
      %40 = vector.multi_reduction <add>, %39, %cst_33 [1] : vector<8x32xf32> to vector<8xf32>
      %41 = vector.shape_cast %40 : vector<8xf32> to vector<8x1xf32>
      %cst_34 = arith.constant 3.200000e+01 : f32
      %42 = vector.broadcast %cst_34 : f32 to vector<8x1xf32>
      %43 = arith.divf %41, %42 : vector<8x1xf32>
      %44 = vector.broadcast %36 : vector<8x1xf32> to vector<8x32xf32>
      %45 = arith.subf %30, %44 : vector<8x32xf32>
      %cst_35 = arith.constant 9.99999974E-6 : f32
      %46 = vector.broadcast %cst_35 : f32 to vector<8x1xf32>
      %47 = arith.addf %43, %46 : vector<8x1xf32>
      %48 = math.rsqrt %47 : vector<8x1xf32>
      %49 = vector.broadcast %48 : vector<8x1xf32> to vector<8x32xf32>
      %50 = arith.mulf %45, %49 : vector<8x32xf32>
      %51 = vector.broadcast %31 : vector<1x32xf32> to vector<8x32xf32>
      %52 = arith.mulf %50, %51 : vector<8x32xf32>
      %53 = vector.broadcast %32 : vector<1x32xf32> to vector<8x32xf32>
      %54 = arith.addf %52, %53 : vector<8x32xf32>
      %55 = vector.shape_cast %54 : vector<8x32xf32> to vector<1x8x32xf32>
      %56 = arith.truncf %55 : vector<1x8x32xf32> to vector<1x8x32xbf16>
      %c0_36 = arith.constant 0 : index
      %c0_37 = arith.constant 0 : index
      %c0_38 = arith.constant 0 : index
      %57 = vector.load %arg15[%c0_36, %c0_37, %c0_38] : memref<1x8x32xbf16, #tpu.memory_space<vmem>>, vector<1x8x32xbf16>
      tpu.vector_store %arg15[%c0_36, %c0_37, %c0_38], %56 {strides = array<i32>} : memref<1x8x32xbf16, #tpu.memory_space<vmem>>, vector<1x8x32xbf16>,
    } else {
    }
    return
  }
  func.func @transform_0(%arg0: i32, %arg1: i32) -> (i32, i32, i32) {
    %c0_i32 = arith.constant 0 : i32
    %c0_i32_0 = arith.constant 0 : i32
    %c0_i32_1 = arith.constant 0 : i32
    return %arg0, %c0_i32, %c0_i32_0 : i32, i32, i32
  }
  func.func @transform_1(%arg0: i32, %arg1: i32) -> (i32, i32) {
    %c0_i32 = arith.constant 0 : i32
    %c0_i32_0 = arith.constant 0 : i32
    %c0_i32_1 = arith.constant 0 : i32
    return %c0_i32, %c0_i32_0 : i32, i32
  }
  func.func @transform_2(%arg0: i32, %arg1: i32) -> (i32, i32) {
    %c0_i32 = arith.constant 0 : i32
    %c0_i32_0 = arith.constant 0 : i32
    %c0_i32_1 = arith.constant 0 : i32
    return %c0_i32, %c0_i32_0 : i32, i32
  }
  func.func @transform_3(%arg0: i32, %arg1: i32) -> (i32, i32) {
    %c0_i32 = arith.constant 0 : i32
    %c0_i32_0 = arith.constant 0 : i32
    %c0_i32_1 = arith.constant 0 : i32
    return %c0_i32, %c0_i32_0 : i32, i32
  }
  func.func @transform_4(%arg0: i32, %arg1: i32) -> (i32, i32) {
    %c0_i32 = arith.constant 0 : i32
    %c0_i32_0 = arith.constant 0 : i32
    %c0_i32_1 = arith.constant 0 : i32
    return %c0_i32, %c0_i32_0 : i32, i32
  }
  func.func @transform_5(%arg0: i32, %arg1: i32) -> (i32, i32) {
    %c0_i32 = arith.constant 0 : i32
    %c0_i32_0 = arith.constant 0 : i32
    %c0_i32_1 = arith.constant 0 : i32
    return %c0_i32, %c0_i32_0 : i32, i32
  }
  func.func @transform_6(%arg0: i32, %arg1: i32) -> (i32, i32) {
    %c0_i32 = arith.constant 0 : i32
    %c0_i32_0 = arith.constant 0 : i32
    %c0_i32_1 = arith.constant 0 : i32
    return %c0_i32, %c0_i32_0 : i32, i32
  }
  func.func @transform_7(%arg0: i32, %arg1: i32) -> (i32, i32) {
    %c0_i32 = arith.constant 0 : i32
    %c0_i32_0 = arith.constant 0 : i32
    return %c0_i32, %arg1 : i32, i32
  }
  func.func @transform_8(%arg0: i32, %arg1: i32) -> (i32, i32) {
    %c0_i32 = arith.constant 0 : i32
    %c0_i32_0 = arith.constant 0 : i32
    return %c0_i32, %arg1 : i32, i32
  }
  func.func @transform_9(%arg0: i32, %arg1: i32) -> (i32, i32) {
    %c0_i32 = arith.constant 0 : i32
    %c0_i32_0 = arith.constant 0 : i32
    return %arg1, %c0_i32 : i32, i32
  }
  func.func @transform_10(%arg0: i32, %arg1: i32) -> (i32, i32) {
    %c0_i32 = arith.constant 0 : i32
    %c0_i32_0 = arith.constant 0 : i32
    %c0_i32_1 = arith.constant 0 : i32
    return %c0_i32, %c0_i32_0 : i32, i32
  }
  func.func @transform_11(%arg0: i32, %arg1: i32) -> (i32, i32) {
    %c0_i32 = arith.constant 0 : i32
    %c0_i32_0 = arith.constant 0 : i32
    %c0_i32_1 = arith.constant 0 : i32
    return %c0_i32, %c0_i32_0 : i32, i32
  }
  func.func @transform_12(%arg0: i32, %arg1: i32) -> (i32, i32) {
    %c0_i32 = arith.constant 0 : i32
    %c0_i32_0 = arith.constant 0 : i32
    %c0_i32_1 = arith.constant 0 : i32
    return %c0_i32, %c0_i32_0 : i32, i32
  }
  func.func @transform_13(%arg0: i32, %arg1: i32) -> (i32, i32, i32) {
    %c0_i32 = arith.constant 0 : i32
    %c0_i32_0 = arith.constant 0 : i32
    %c0_i32_1 = arith.constant 0 : i32
    return %arg0, %c0_i32, %c0_i32_0 : i32, i32, i32
  }
}

</mosaic_0001>

<llo_original>
// kernel: tpu_custom_call.1
$region0: #{tpu_custom_call.1}
  #allocation0 [shape = 'u32[]', space=smem, size = 0x4, offset = 0x4, fixed_abs, tag = 'smem constant byte address 0x4 - core index']
  #allocation1 [shape = 'u32[72,128]{1,0:T(1,128)}', space=vmem, size = 0x9000, scoped, tag = 'internal scratch']
  #allocation2 [shape = 'bf16[1,4,8,8]{3,2,1,0:T(8,128)(2,1)}', space=vmem, size = 0x2000, scoped, tag = 'scratch operand']
  #allocation3 [shape = 'bf16[1,4,8,8]{3,2,1,0:T(8,128)(2,1)}', space=vmem, size = 0x2000, scoped, tag = 'scratch operand']
  #allocation4 [shape = 'bf16[1,4,8,8]{3,2,1,0:T(8,128)(2,1)}', space=vmem, size = 0x2000, scoped, tag = 'scratch operand']
  #allocation5 [shape = 'f32[1,8,32]{2,1,0:T(8,128)}', space=vmem, size = 0x1000, scoped, tag = 'scratch operand']
  #allocation6 [shape = 'f32[1,8,32]{2,1,0:T(8,128)}', space=vmem, size = 0x1000, scoped, tag = 'scratch operand']
  #allocation7 [shape = 'f32[1,8,32]{2,1,0:T(8,128)}', space=vmem, size = 0x1000, scoped, tag = 'scratch operand']
  %s0 = inlined_call_operand.hbm [shape: bf16[2,8,32], index: 0, kind: input, shape index: {}]
  %s1 = inlined_call_operand.vmem [shape: bf16[32,96], index: 1, kind: input, shape index: {}]
  %s2 = inlined_call_operand.vmem [shape: f32[1,96], index: 2, kind: input, shape index: {}]
  %s3 = inlined_call_operand.vmem [shape: bf16[32,32], index: 3, kind: input, shape index: {}]
  %s4 = inlined_call_operand.vmem [shape: f32[1,32], index: 4, kind: input, shape index: {}]
  %s5 = inlined_call_operand.vmem [shape: f32[1,32], index: 5, kind: input, shape index: {}]
  %s6 = inlined_call_operand.vmem [shape: f32[1,32], index: 6, kind: input, shape index: {}]
  %s7 = inlined_call_operand.vmem [shape: bf16[32,64], index: 7, kind: input, shape index: {}]
  %s8 = inlined_call_operand.vmem [shape: f32[1,64], index: 8, kind: input, shape index: {}]
  %s9 = inlined_call_operand.vmem [shape: bf16[64,32], index: 9, kind: input, shape index: {}]
  %s10 = inlined_call_operand.vmem [shape: f32[1,32], index: 10, kind: input, shape index: {}]
  %s11 = inlined_call_operand.vmem [shape: f32[1,32], index: 11, kind: input, shape index: {}]
  %s12 = inlined_call_operand.vmem [shape: f32[1,32], index: 12, kind: input, shape index: {}]
  %s13 = inlined_call_operand.hbm [shape: bf16[2,8,32], index: 13, kind: output, shape index: {}]
  %s14 = sld [smem:[#allocation0]]
  $region97: #{tpu_custom_call.1} parent=0
    _
  %s16 = ssub.s32 1, %s14
  %s17 = scalar_select 0, %s16, %s14
  $region1: #{tpu_custom_call.1} parent=0
    #allocation8 [shape = 'u8[4096]{0}', space=vmem, size = 0x1000, scoped, tag = 'input window, operand 0']
    #allocation9 [shape = 's32[2]{0}', space=sflag, size = 0x8, scoped, tag = 'scoped memory for tpu_custom_call.1']
    #allocation10 [shape = 's32[2]{0}', space=sflag, size = 0x8, scoped, tag = 'scoped memory for tpu_custom_call.1']
    #allocation11 [shape = 'u8[4096]{0}', space=vmem, size = 0x1000, scoped, tag = 'output window, operand 0']
    %18 = vsyncpa [#allocation9], 0
    %s19 = scalar_lea.sflag [#allocation9], 1
    %20 = vsyncpa %s19, 0
    %21 = vsyncpa [#allocation10], 0
    %s22 = scalar_lea.sflag [#allocation10], 1
    %23 = vsyncpa %s22, 0
    loop: start=0, step=1, limit=4
    $region2: #{tpu_custom_call.1} parent=1 // loop_pre_header
      _
    $region3: #{tpu_custom_call.1} parent=1 // loop_header
      %s25 = sphi 0, %s29
      %p26 = scmp.ge.s32.totalorder %s25, 4
      %s32 = sphi 0, %s44
      %s33 = sphi 0, %s40
      %s34 = sphi 0, %s32
      %s35 = sphi 0, %s33
      %s36 = sphi 0, %s34
      %s37 = sphi 0, %s35
      %s47 = sphi 0, %s49
      %s50 = sphi 0, %s47
      %s51 = sphi 0, %s50
      %s67 = sphi 0, %s51
      %s71 = sphi 0, %s71
      %s73 = sphi 0, %s71
      %s74 = sphi 0, %s73
      %s88 = sphi 0, %s74
      %s92 = sphi 0, %s92
      %s94 = sphi 0, %s92
      %s95 = sphi 0, %s94
      %s109 = sphi 0, %s95
      %s113 = sphi 0, %s113
      %s115 = sphi 0, %s113
      %s116 = sphi 0, %s115
      %s130 = sphi 0, %s116
      %s134 = sphi 0, %s134
      %s136 = sphi 0, %s134
      %s137 = sphi 0, %s136
      %s151 = sphi 0, %s137
      %s155 = sphi 0, %s155
      %s157 = sphi 0, %s155
      %s158 = sphi 0, %s157
      %s172 = sphi 0, %s158
      %s176 = sphi 0, %s176
      %s178 = sphi 0, %s176
      %s179 = sphi 0, %s178
      %s193 = sphi 0, %s179
      %s199 = sphi 0, %s201
      %s202 = sphi 0, %s199
      %s203 = sphi 0, %s202
      %s219 = sphi 0, %s203
      %s225 = sphi 0, %s227
      %s228 = sphi 0, %s225
      %s229 = sphi 0, %s228
      %s245 = sphi 0, %s229
      %s251 = sphi 0, %s253
      %s254 = sphi 0, %s251
      %s255 = sphi 0, %s254
      %s271 = sphi 0, %s255
      %s275 = sphi 0, %s275
      %s277 = sphi 0, %s275
      %s278 = sphi 0, %s277
      %s292 = sphi 0, %s278
      %s296 = sphi 0, %s296
      %s298 = sphi 0, %s296
      %s299 = sphi 0, %s298
      %s313 = sphi 0, %s299
      %s317 = sphi 0, %s317
      %s319 = sphi 0, %s317
      %s320 = sphi 0, %s319
      %s334 = sphi 0, %s320
      %s340 = sphi 0, %s342
      %s343 = sphi 0, %s340
      %s344 = sphi 0, %s343
      %s360 = sphi 0, %s344
    $region4: #{tpu_custom_call.1} parent=1 // loop_header_branch
      %28 = sbr.rel (%p26) target = $region8
    $region5: #{tpu_custom_call.1} parent=1 // loop_body
      %s30 = ssub.s32 %s25, 1
      %s31 = ssub.s32 %s25, 2
      %s38 = sadd.s32 1, %s33
      %p39 = scmp.ge.s32.totalorder %s38, 1
      %s40 = scalar_select %p39, 0, %s38
      %s41 = sadd.s32 1, %s32
      %s42 = scalar_select %p39, %s41, %s32
      %p43 = scmp.ge.s32.totalorder %s42, 2
      %s44 = scalar_select %p43, 0, %s42
      %s45 = ssub.s32 %s32, %s44
      %p46 = scmp.eq.s32.totalorder %s45, 0
      %s48 = sadd.s32 %s47, 1
      %s49 = scalar_select %p46, %s47, %s48
      %p52 = pneg %p46
      %p53 = scmp.eq.s32.totalorder %s25, 1
      %p54 = por %p52, %p53
      %p55 = scmp.ne.s32.totalorder %s47, %s50
      %p56 = scmp.eq.s32.totalorder %s25, 0
      %p57 = por %p55, %p56
      %p58 = scmp.ne.s32.totalorder %s47, %s50
      %p59 = scmp.eq.s32.totalorder %s30, 1
      %p60 = por %p58, %p59
      %p61 = scmp.ne.s32.totalorder %s50, %s51
      %p62 = scmp.eq.s32.totalorder %s30, 0
      %p63 = por %p61, %p62
      %p64 = scmp.ne.s32.totalorder %s50, %s51
      %p65 = scmp.eq.s32.totalorder %s31, 1
      %p66 = por %p64, %p65
      %p68 = scmp.ne.s32.totalorder %s51, %s67
      %p69 = scmp.eq.s32.totalorder %s31, 0
      %p70 = por %p68, %p69
      %s72 = sadd.s32 %s71, 1
      %p75 = scmp.eq.s32.totalorder %s25, 1
      %p76 = scmp.ne.s32.totalorder %s71, %s73
      %p77 = scmp.eq.s32.totalorder %s25, 0
      %p78 = por %p76, %p77
      %p79 = scmp.ne.s32.totalorder %s71, %s73
      %p80 = scmp.eq.s32.totalorder %s30, 1
      %p81 = por %p79, %p80
      %p82 = scmp.ne.s32.totalorder %s73, %s74
      %p83 = scmp.eq.s32.totalorder %s30, 0
      %p84 = por %p82, %p83
      %p85 = scmp.ne.s32.totalorder %s73, %s74
      %p86 = scmp.eq.s32.totalorder %s31, 1
      %p87 = por %p85, %p86
      %p89 = scmp.ne.s32.totalorder %s74, %s88
      %p90 = scmp.eq.s32.totalorder %s31, 0
      %p91 = por %p89, %p90
      %s93 = sadd.s32 %s92, 1
      %p96 = scmp.eq.s32.totalorder %s25, 1
      %p97 = scmp.ne.s32.totalorder %s92, %s94
      %p98 = scmp.eq.s32.totalorder %s25, 0
      %p99 = por %p97, %p98
      %p100 = scmp.ne.s32.totalorder %s92, %s94
      %p101 = scmp.eq.s32.totalorder %s30, 1
      %p102 = por %p100, %p101
      %p103 = scmp.ne.s32.totalorder %s94, %s95
      %p104 = scmp.eq.s32.totalorder %s30, 0
      %p105 = por %p103, %p104
      %p106 = scmp.ne.s32.totalorder %s94, %s95
      %p107 = scmp.eq.s32.totalorder %s31, 1
      %p108 = por %p106, %p107
      %p110 = scmp.ne.s32.totalorder %s95, %s109
      %p111 = scmp.eq.s32.totalorder %s31, 0
      %p112 = por %p110, %p111
      %s114 = sadd.s32 %s113, 1
      %p117 = scmp.eq.s32.totalorder %s25, 1
      %p118 = scmp.ne.s32.totalorder %s113, %s115
      %p119 = scmp.eq.s32.totalorder %s25, 0
      %p120 = por %p118, %p119
      %p121 = scmp.ne.s32.totalorder %s113, %s115
      %p122 = scmp.eq.s32.totalorder %s30, 1
      %p123 = por %p121, %p122
      %p124 = scmp.ne.s32.totalorder %s115, %s116
      %p125 = scmp.eq.s32.totalorder %s30, 0
      %p126 = por %p124, %p125
      %p127 = scmp.ne.s32.totalorder %s115, %s116
      %p128 = scmp.eq.s32.totalorder %s31, 1
      %p129 = por %p127, %p128
      %p131 = scmp.ne.s32.totalorder %s116, %s130
      %p132 = scmp.eq.s32.totalorder %s31, 0
      %p133 = por %p131, %p132
      %s135 = sadd.s32 %s134, 1
      %p138 = scmp.eq.s32.totalorder %s25, 1
      %p139 = scmp.ne.s32.totalorder %s134, %s136
      %p140 = scmp.eq.s32.totalorder %s25, 0
      %p141 = por %p139, %p140
      %p142 = scmp.ne.s32.totalorder %s134, %s136
      %p143 = scmp.eq.s32.totalorder %s30, 1
      %p144 = por %p142, %p143
      %p145 = scmp.ne.s32.totalorder %s136, %s137
      %p146 = scmp.eq.s32.totalorder %s30, 0
      %p147 = por %p145, %p146
      %p148 = scmp.ne.s32.totalorder %s136, %s137
      %p149 = scmp.eq.s32.totalorder %s31, 1
      %p150 = por %p148, %p149
      %p152 = scmp.ne.s32.totalorder %s137, %s151
      %p153 = scmp.eq.s32.totalorder %s31, 0
      %p154 = por %p152, %p153
      %s156 = sadd.s32 %s155, 1
      %p159 = scmp.eq.s32.totalorder %s25, 1
      %p160 = scmp.ne.s32.totalorder %s155, %s157
      %p161 = scmp.eq.s32.totalorder %s25, 0
      %p162 = por %p160, %p161
      %p163 = scmp.ne.s32.totalorder %s155, %s157
      %p164 = scmp.eq.s32.totalorder %s30, 1
      %p165 = por %p163, %p164
      %p166 = scmp.ne.s32.totalorder %s157, %s158
      %p167 = scmp.eq.s32.totalorder %s30, 0
      %p168 = por %p166, %p167
      %p169 = scmp.ne.s32.totalorder %s157, %s158
      %p170 = scmp.eq.s32.totalorder %s31, 1
      %p171 = por %p169, %p170
      %p173 = scmp.ne.s32.totalorder %s158, %s172
      %p174 = scmp.eq.s32.totalorder %s31, 0
      %p175 = por %p173, %p174
      %s177 = sadd.s32 %s176, 1
      %p180 = scmp.eq.s32.totalorder %s25, 1
      %p181 = scmp.ne.s32.totalorder %s176, %s178
      %p182 = scmp.eq.s32.totalorder %s25, 0
      %p183 = por %p181, %p182
      %p184 = scmp.ne.s32.totalorder %s176, %s178
      %p185 = scmp.eq.s32.totalorder %s30, 1
      %p186 = por %p184, %p185
      %p187 = scmp.ne.s32.totalorder %s178, %s179
      %p188 = scmp.eq.s32.totalorder %s30, 0
      %p189 = por %p187, %p188
      %p190 = scmp.ne.s32.totalorder %s178, %s179
      %p191 = scmp.eq.s32.totalorder %s31, 1
      %p192 = por %p190, %p191
      %p194 = scmp.ne.s32.totalorder %s179, %s193
      %p195 = scmp.eq.s32.totalorder %s31, 0
      %p196 = por %p194, %p195
      %s197 = ssub.s32 %s33, %s40
      %p198 = scmp.eq.s32.totalorder %s197, 0
      %s200 = sadd.s32 %s199, 1
      %s201 = scalar_select %p198, %s199, %s200
      %p204 = pneg %p198
      %p205 = scmp.eq.s32.totalorder %s25, 1
      %p206 = por %p204, %p205
      %p207 = scmp.ne.s32.totalorder %s199, %s202
      %p208 = scmp.eq.s32.totalorder %s25, 0
      %p209 = por %p207, %p208
      %p210 = scmp.ne.s32.totalorder %s199, %s202
      %p211 = scmp.eq.s32.totalorder %s30, 1
      %p212 = por %p210, %p211
      %p213 = scmp.ne.s32.totalorder %s202, %s203
      %p214 = scmp.eq.s32.totalorder %s30, 0
      %p215 = por %p213, %p214
      %p216 = scmp.ne.s32.totalorder %s202, %s203
      %p217 = scmp.eq.s32.totalorder %s31, 1
      %p218 = por %p216, %p217
      %p220 = scmp.ne.s32.totalorder %s203, %s219
      %p221 = scmp.eq.s32.totalorder %s31, 0
      %p222 = por %p220, %p221
      %s223 = ssub.s32 %s33, %s40
      %p224 = scmp.eq.s32.totalorder %s223, 0
      %s226 = sadd.s32 %s225, 1
      %s227 = scalar_select %p224, %s225, %s226
      %p230 = pneg %p224
      %p231 = scmp.eq.s32.totalorder %s25, 1
      %p232 = por %p230, %p231
      %p233 = scmp.ne.s32.totalorder %s225, %s228
      %p234 = scmp.eq.s32.totalorder %s25, 0
      %p235 = por %p233, %p234
      %p236 = scmp.ne.s32.totalorder %s225, %s228
      %p237 = scmp.eq.s32.totalorder %s30, 1
      %p238 = por %p236, %p237
      %p239 = scmp.ne.s32.totalorder %s228, %s229
      %p240 = scmp.eq.s32.totalorder %s30, 0
      %p241 = por %p239, %p240
      %p242 = scmp.ne.s32.totalorder %s228, %s229
      %p243 = scmp.eq.s32.totalorder %s31, 1
      %p244 = por %p242, %p243
      %p246 = scmp.ne.s32.totalorder %s229, %s245
      %p247 = scmp.eq.s32.totalorder %s31, 0
      %p248 = por %p246, %p247
      %s249 = ssub.s32 %s33, %s40
      %p250 = scmp.eq.s32.totalorder %s249, 0
      %s252 = sadd.s32 %s251, 1
      %s253 = scalar_select %p250, %s251, %s252
      %p256 = pneg %p250
      %p257 = scmp.eq.s32.totalorder %s25, 1
      %p258 = por %p256, %p257
      %p259 = scmp.ne.s32.totalorder %s251, %s254
      %p260 = scmp.eq.s32.totalorder %s25, 0
      %p261 = por %p259, %p260
      %p262 = scmp.ne.s32.totalorder %s251, %s254
      %p263 = scmp.eq.s32.totalorder %s30, 1
      %p264 = por %p262, %p263
      %p265 = scmp.ne.s32.totalorder %s254, %s255
      %p266 = scmp.eq.s32.totalorder %s30, 0
      %p267 = por %p265, %p266
      %p268 = scmp.ne.s32.totalorder %s254, %s255
      %p269 = scmp.eq.s32.totalorder %s31, 1
      %p270 = por %p268, %p269
      %p272 = scmp.ne.s32.totalorder %s255, %s271
      %p273 = scmp.eq.s32.totalorder %s31, 0
      %p274 = por %p272, %p273
      %s276 = sadd.s32 %s275, 1
      %p279 = scmp.eq.s32.totalorder %s25, 1
      %p280 = scmp.ne.s32.totalorder %s275, %s277
      %p281 = scmp.eq.s32.totalorder %s25, 0
      %p282 = por %p280, %p281
      %p283 = scmp.ne.s32.totalorder %s275, %s277
      %p284 = scmp.eq.s32.totalorder %s30, 1
      %p285 = por %p283, %p284
      %p286 = scmp.ne.s32.totalorder %s277, %s278
      %p287 = scmp.eq.s32.totalorder %s30, 0
      %p288 = por %p286, %p287
      %p289 = scmp.ne.s32.totalorder %s277, %s278
      %p290 = scmp.eq.s32.totalorder %s31, 1
      %p291 = por %p289, %p290
      %p293 = scmp.ne.s32.totalorder %s278, %s292
      %p294 = scmp.eq.s32.totalorder %s31, 0
      %p295 = por %p293, %p294
      %s297 = sadd.s32 %s296, 1
      %p300 = scmp.eq.s32.totalorder %s25, 1
      %p301 = scmp.ne.s32.totalorder %s296, %s298
      %p302 = scmp.eq.s32.totalorder %s25, 0
      %p303 = por %p301, %p302
      %p304 = scmp.ne.s32.totalorder %s296, %s298
      %p305 = scmp.eq.s32.totalorder %s30, 1
      %p306 = por %p304, %p305
      %p307 = scmp.ne.s32.totalorder %s298, %s299
      %p308 = scmp.eq.s32.totalorder %s30, 0
      %p309 = por %p307, %p308
      %p310 = scmp.ne.s32.totalorder %s298, %s299
      %p311 = scmp.eq.s32.totalorder %s31, 1
      %p312 = por %p310, %p311
      %p314 = scmp.ne.s32.totalorder %s299, %s313
      %p315 = scmp.eq.s32.totalorder %s31, 0
      %p316 = por %p314, %p315
      %s318 = sadd.s32 %s317, 1
      %p321 = scmp.eq.s32.totalorder %s25, 1
      %p322 = scmp.ne.s32.totalorder %s317, %s319
      %p323 = scmp.eq.s32.totalorder %s25, 0
      %p324 = por %p322, %p323
      %p325 = scmp.ne.s32.totalorder %s317, %s319
      %p326 = scmp.eq.s32.totalorder %s30, 1
      %p327 = por %p325, %p326
      %p328 = scmp.ne.s32.totalorder %s319, %s320
      %p329 = scmp.eq.s32.totalorder %s30, 0
      %p330 = por %p328, %p329
      %p331 = scmp.ne.s32.totalorder %s319, %s320
      %p332 = scmp.eq.s32.totalorder %s31, 1
      %p333 = por %p331, %p332
      %p335 = scmp.ne.s32.totalorder %s320, %s334
      %p336 = scmp.eq.s32.totalorder %s31, 0
      %p337 = por %p335, %p336
      %s338 = ssub.s32 %s32, %s44
      %p339 = scmp.eq.s32.totalorder %s338, 0
      %s341 = sadd.s32 %s340, 1
      %s342 = scalar_select %p339, %s340, %s341
      %p345 = pneg %p339
      %p346 = scmp.eq.s32.totalorder %s25, 1
      %p347 = por %p345, %p346
      %p348 = scmp.ne.s32.totalorder %s340, %s343
      %p349 = scmp.eq.s32.totalorder %s25, 0
      %p350 = por %p348, %p349
      %p351 = scmp.ne.s32.totalorder %s340, %s343
      %p352 = scmp.eq.s32.totalorder %s30, 1
      %p353 = por %p351, %p352
      %p354 = scmp.ne.s32.totalorder %s343, %s344
      %p355 = scmp.eq.s32.totalorder %s30, 0
      %p356 = por %p354, %p355
      %p357 = scmp.ne.s32.totalorder %s343, %s344
      %p358 = scmp.eq.s32.totalorder %s31, 1
      %p359 = por %p357, %p358
      %p361 = scmp.ne.s32.totalorder %s344, %s360
      %p362 = scmp.eq.s32.totalorder %s31, 0
      %p363 = por %p361, %p362
      %p364 = scmp.le.s32.totalorder 1, %s25
      %p365 = scmp.lt.s32.totalorder %s25, 3
      %p366 = pnand %p364, %p365
      %p367 = pneg %p366
      // Predicated region
      $region9: #{tpu_custom_call.1} parent=5 // pred_check
        _
      $region10: #{tpu_custom_call.1} parent=5 // pred_check_branch
        %369 = sbr.rel (%p366) target = $region12
      $region11: #{tpu_custom_call.1} parent=5 // pred_region
        %s370 = ssub.s32 %s25, 1
        // Predicated region
        $region13: #{tpu_custom_call.1} parent=11 // pred_check
          %p371 = pneg %p84
        $region14: #{tpu_custom_call.1} parent=11 // pred_check_branch
          %373 = sbr.rel (%p371) target = $region16
        $region15: #{tpu_custom_call.1} parent=11 // pred_region
          _
        $region16: #{tpu_custom_call.1} parent=11 // pred_fallthru
          _
        // Predicated region
        $region17: #{tpu_custom_call.1} parent=11 // pred_check
          %p374 = pneg %p105
        $region18: #{tpu_custom_call.1} parent=11 // pred_check_branch
          %376 = sbr.rel (%p374) target = $region20
        $region19: #{tpu_custom_call.1} parent=11 // pred_region
          _
        $region20: #{tpu_custom_call.1} parent=11 // pred_fallthru
          _
        // Predicated region
        $region21: #{tpu_custom_call.1} parent=11 // pred_check
          %p377 = pneg %p126
        $region22: #{tpu_custom_call.1} parent=11 // pred_check_branch
          %379 = sbr.rel (%p377) target = $region24
        $region23: #{tpu_custom_call.1} parent=11 // pred_region
          _
        $region24: #{tpu_custom_call.1} parent=11 // pred_fallthru
          _
        // Predicated region
        $region25: #{tpu_custom_call.1} parent=11 // pred_check
          %p380 = pneg %p147
        $region26: #{tpu_custom_call.1} parent=11 // pred_check_branch
          %382 = sbr.rel (%p380) target = $region28
        $region27: #{tpu_custom_call.1} parent=11 // pred_region
          _
        $region28: #{tpu_custom_call.1} parent=11 // pred_fallthru
          _
        // Predicated region
        $region29: #{tpu_custom_call.1} parent=11 // pred_check
          %p383 = pneg %p168
        $region30: #{tpu_custom_call.1} parent=11 // pred_check_branch
          %385 = sbr.rel (%p383) target = $region32
        $region31: #{tpu_custom_call.1} parent=11 // pred_region
          _
        $region32: #{tpu_custom_call.1} parent=11 // pred_fallthru
          _
        // Predicated region
        $region33: #{tpu_custom_call.1} parent=11 // pred_check
          %p386 = pneg %p189
        $region34: #{tpu_custom_call.1} parent=11 // pred_check_branch
          %388 = sbr.rel (%p386) target = $region36
        $region35: #{tpu_custom_call.1} parent=11 // pred_region
          _
        $region36: #{tpu_custom_call.1} parent=11 // pred_fallthru
          _
        // Predicated region
        $region37: #{tpu_custom_call.1} parent=11 // pred_check
          %p389 = pneg %p215
        $region38: #{tpu_custom_call.1} parent=11 // pred_check_branch
          %391 = sbr.rel (%p389) target = $region40
        $region39: #{tpu_custom_call.1} parent=11 // pred_region
          %p392 = scmp.lt.s32.totalorder %s35, 0
          %s393 = scalar_select %p392, %s35, 0
          %s394 = smul.addr %s393, 4
          %s395 = scalar_lea.vmem %s7, %s394
        $region40: #{tpu_custom_call.1} parent=11 // pred_fallthru
          _
        // Predicated region
        $region41: #{tpu_custom_call.1} parent=11 // pred_check
          %p396 = pneg %p241
        $region42: #{tpu_custom_call.1} parent=11 // pred_check_branch
          %398 = sbr.rel (%p396) target = $region44
        $region43: #{tpu_custom_call.1} parent=11 // pred_region
          %p399 = scmp.lt.s32.totalorder %s35, 0
          %s400 = scalar_select %p399, %s35, 0
          %s401 = scalar_lea.vmem %s8, %s400
        $region44: #{tpu_custom_call.1} parent=11 // pred_fallthru
          _
        // Predicated region
        $region45: #{tpu_custom_call.1} parent=11 // pred_check
          %p402 = pneg %p267
        $region46: #{tpu_custom_call.1} parent=11 // pred_check_branch
          %404 = sbr.rel (%p402) target = $region48
        $region47: #{tpu_custom_call.1} parent=11 // pred_region
          %s405 = smul.u32 8, %s35
          %p406 = scmp.lt.s32.totalorder %s405, 7
          %s407 = scalar_select %p406, %s405, 7
          %s408 = smul.addr %s407, 4
          %s409 = scalar_lea.vmem %s9, %s408
          %s410 = smul.u32 8, %s35
        $region48: #{tpu_custom_call.1} parent=11 // pred_fallthru
          _
        // Predicated region
        $region49: #{tpu_custom_call.1} parent=11 // pred_check
          %p411 = pneg %p288
        $region50: #{tpu_custom_call.1} parent=11 // pred_check_branch
          %413 = sbr.rel (%p411) target = $region52
        $region51: #{tpu_custom_call.1} parent=11 // pred_region
          _
        $region52: #{tpu_custom_call.1} parent=11 // pred_fallthru
          _
        // Predicated region
        $region53: #{tpu_custom_call.1} parent=11 // pred_check
          %p414 = pneg %p309
        $region54: #{tpu_custom_call.1} parent=11 // pred_check_branch
          %416 = sbr.rel (%p414) target = $region56
        $region55: #{tpu_custom_call.1} parent=11 // pred_region
          _
        $region56: #{tpu_custom_call.1} parent=11 // pred_fallthru
          _
        // Predicated region
        $region57: #{tpu_custom_call.1} parent=11 // pred_check
          %p417 = pneg %p330
        $region58: #{tpu_custom_call.1} parent=11 // pred_check_branch
          %419 = sbr.rel (%p417) target = $region60
        $region59: #{tpu_custom_call.1} parent=11 // pred_region
          _
        $region60: #{tpu_custom_call.1} parent=11 // pred_fallthru
          _
      $region12: #{tpu_custom_call.1} parent=5 // pred_fallthru
        _
      %p420 = scmp.lt.s32.totalorder %s25, 2
      // Predicated region
      $region61: #{tpu_custom_call.1} parent=5 // pred_check
        %p421 = pneg %p420
      $region62: #{tpu_custom_call.1} parent=5 // pred_check_branch
        %423 = sbr.rel (%p421) target = $region64
      $region63: #{tpu_custom_call.1} parent=5 // pred_region
        // Predicated region
        $region65: #{tpu_custom_call.1} parent=63 // pred_check
          %p424 = pneg %p57
        $region66: #{tpu_custom_call.1} parent=63 // pred_check_branch
          %426 = sbr.rel (%p424) target = $region68
        $region67: #{tpu_custom_call.1} parent=63 // pred_region
          %s427 = sand.u32 %s47, 1
          %s428 = scalar_lea.sflag [#allocation9], %s427
          %s429 = sand.u32 %s47, 1
          %s430 = smul.addr %s429, 4
          %s431 = scalar_lea.vmem [#allocation8], %s430
          %433 = vsyncadd %s428, 0
          %s434 = smul.addr %s32, 4
          %s435 = scalar_lea.hbm %s0, %s434
          %s437 = sshll.u32 %s435, 4
          %s438 = int_to_ptr.hbm [resolvable:$true] %s437
          %s439 = sshll.u32 %s431, 4
          %s440 = int_to_ptr.vmem [resolvable:$true] %s439
          %442 = dma.hbm_to_vmem [thread:$0]  %s438, 64, %s440, %s428
        $region68: #{tpu_custom_call.1} parent=63 // pred_fallthru
          _
      $region64: #{tpu_custom_call.1} parent=5 // pred_fallthru
        _
      %p443 = scmp.le.s32.totalorder 1, %s25
      %p444 = scmp.lt.s32.totalorder %s25, 3
      %p445 = pnand %p443, %p444
      %p446 = pneg %p445
      // Predicated region
      $region69: #{tpu_custom_call.1} parent=5 // pred_check
        _
      $region70: #{tpu_custom_call.1} parent=5 // pred_check_branch
        %448 = sbr.rel (%p445) target = $region72
      $region71: #{tpu_custom_call.1} parent=5 // pred_region
        %s449 = ssub.s32 %s25, 1
        %s450 = sand.u32 %s50, 1
        %s451 = scalar_lea.sflag [#allocation9], %s450
        %s452 = sand.u32 %s50, 1
        %s453 = smul.addr %s452, 4
        %s454 = scalar_lea.vmem [#allocation8], %s453
        // Predicated region
        $region73: #{tpu_custom_call.1} parent=71 // pred_check
          %p455 = pneg %p63
        $region74: #{tpu_custom_call.1} parent=71 // pred_check_branch
          %457 = sbr.rel (%p455) target = $region76
        $region75: #{tpu_custom_call.1} parent=71 // pred_region
          %459 = dma.done %s451, 64
        $region76: #{tpu_custom_call.1} parent=71 // pred_fallthru
          _
        %s460 = sand.u32 %s50, 1
        %s461 = scalar_lea.sflag [#allocation9], %s460
        %s462 = sand.u32 %s50, 1
        %s463 = smul.addr %s462, 4
        %s464 = scalar_lea.vmem [#allocation8], %s463
        %p465 = pneg %p63
        %p466 = pneg %p60
        %p467 = pneg %p84
        %p468 = pneg %p81
        %p469 = pneg %p105
        %p470 = pneg %p102
        %p471 = pneg %p126
        %p472 = pneg %p123
        %p473 = pneg %p147
        %p474 = pneg %p144
        %p475 = pneg %p168
        %p476 = pneg %p165
        %p477 = pneg %p189
        %p478 = pneg %p186
        %p479 = scmp.lt.s32.totalorder %s35, 0
        %s480 = scalar_select %p479, %s35, 0
        %s481 = smul.addr %s480, 4
        %s482 = scalar_lea.vmem %s7, %s481
        %p483 = pneg %p215
        %p484 = pneg %p212
        %p485 = scmp.lt.s32.totalorder %s35, 0
        %s486 = scalar_select %p485, %s35, 0
        %s487 = scalar_lea.vmem %s8, %s486
        %p488 = pneg %p241
        %p489 = pneg %p238
        %s490 = smul.u32 8, %s35
        %p491 = scmp.lt.s32.totalorder %s490, 7
        %s492 = scalar_select %p491, %s490, 7
        %s493 = smul.addr %s492, 4
        %s494 = scalar_lea.vmem %s9, %s493
        %p495 = pneg %p267
        %p496 = pneg %p264
        %p497 = pneg %p288
        %p498 = pneg %p285
        %p499 = pneg %p309
        %p500 = pneg %p306
        %p501 = pneg %p330
        %p502 = pneg %p327
        %p503 = pneg %p356
        %p504 = pneg %p353
        %s505 = sand.u32 %s343, 1
        %s506 = scalar_lea.sflag [#allocation10], %s505
        %s507 = sand.u32 %s343, 1
        %s508 = smul.addr %s507, 4
        %s509 = scalar_lea.vmem [#allocation11], %s508
        %p510 = scmp.lt.s32.totalorder %s35, 0
        %s511 = scalar_select %p510, %s35, 0
        %s512 = smul.addr %s511, 4
        %s513 = scalar_lea.vmem %s7, %s512
        %p514 = scmp.lt.s32.totalorder %s35, 0
        %s515 = scalar_select %p514, %s35, 0
        %s516 = scalar_lea.vmem %s8, %s515
        %s517 = smul.u32 8, %s35
        %p518 = scmp.lt.s32.totalorder %s517, 7
        %s519 = scalar_select %p518, %s517, 7
        %s520 = smul.addr %s519, 4
        %s521 = scalar_lea.vmem %s9, %s520
        %s522 = smul.u32 8, %s35
        %p524 = scmp.eq.s32.totalorder %s35, 0
        // Predicated region
        $region77: #{tpu_custom_call.1} parent=71 // pred_check
          %p525 = pneg %p524
        $region78: #{tpu_custom_call.1} parent=71 // pred_check_branch
          %527 = sbr.rel (%p525) target = $region80
        $region79: #{tpu_custom_call.1} parent=71 // pred_region
          %v528 = vld [vmem:[%s454] sm:$0xf]
          %v529 = vld [vmem:[%s1] sm:$0xf]
          %v530 = vld [vmem:[%s1 + $0x4] sm:$0xf]
          %v531 = vld [vmem:[%s1 + $0x8] sm:$0xf]
          %v532 = vld [vmem:[%s1 + $0xc] sm:$0xf]
          %v533 = vld [vmem:[%s2] sm:$0x1]
          %v535 = vperm.slane %v533, 0
          %v541 = vunpack.c.l.b16 %v529
          %v542 = vunpack.c.l.b16 %v530
          %v543 = vunpack.c.l.b16 %v531
          %v544 = vunpack.c.l.b16 %v532
          %v545 = vpack.c.b16 %v542, %v541
          %v546 = vpack.c.b16 %v544, %v543
          %vm549 = vcmask 261120
          %v551 = vsel %vm549, %v528, 0
          %553 = vmatpush.bf16.msra.mxu0 0
          %554 = vmatpush.bf16.msra.mxu0 0
          %555 = vmatpush.bf16.msra.mxu0 0
          %556 = vmatpush.bf16.msra.mxu0 0
          %557 = vmatpush.bf16.msra.mxu0 0
          %558 = vmatpush.bf16.msra.mxu0 0
          %559 = vmatpush.bf16.msra.mxu0 %v546
          %560 = vmatpush.bf16.msra.mxu0 %v545
          %561 = vmatmul.bf16.gmra.mxu0 %v551
          %v562 = vpop.f32.mrf.mxu0
          %v563 = vadd.f32 %v535, %v562
          %v564 = vpop.f32.mrf.mxu0
          %565 = vdwg.mxu0
          %v566 = vpack.c.bf16 %v563, %v563
          %vm567 = vcmask 60416
          %568 = vst.msk [vmem:[#allocation2] sm:$0xf] %vm567, %v566
          %570 = vrot.lane.b32.xlu0 %v566, 96
          %v571 = vpop.permute.xlu0 %570
          %573 = vst.msk [vmem:[#allocation3] sm:$0xf] %vm567, %v571
          %574 = vrot.lane.b32.xlu0 %v566, 64
          %v575 = vpop.permute.xlu0 %574
          %577 = vst.msk [vmem:[#allocation4] sm:$0xf] %vm567, %v575
          %578 = vrot.lane.b32.xlu0 %v566, 120
          %v579 = vpop.permute.xlu0 %578
          %s581 = scalar_lea.vmem [#allocation2], 4
          %582 = vst.msk [vmem:[%s581] sm:$0xf] %vm567, %v579
          %583 = vrot.lane.b32.xlu0 %v566, 88
          %v584 = vpop.permute.xlu0 %583
          %s586 = scalar_lea.vmem [#allocation3], 4
          %587 = vst.msk [vmem:[%s586] sm:$0xf] %vm567, %v584
          %588 = vrot.lane.b32.xlu0 %v566, 56
          %v589 = vpop.permute.xlu0 %588
          %s591 = scalar_lea.vmem [#allocation4], 4
          %592 = vst.msk [vmem:[%s591] sm:$0xf] %vm567, %v589
          %593 = vrot.lane.b32.xlu0 %v566, 112
          %v594 = vpop.permute.xlu0 %593
          %s596 = scalar_lea.vmem [#allocation2], 8
          %597 = vst.msk [vmem:[%s596] sm:$0xf] %vm567, %v594
          %598 = vrot.lane.b32.xlu0 %v566, 80
          %v599 = vpop.permute.xlu0 %598
          %s601 = scalar_lea.vmem [#allocation3], 8
          %602 = vst.msk [vmem:[%s601] sm:$0xf] %vm567, %v599
          %603 = vrot.lane.b32.xlu0 %v566, 48
          %v604 = vpop.permute.xlu0 %603
          %s606 = scalar_lea.vmem [#allocation4], 8
          %607 = vst.msk [vmem:[%s606] sm:$0xf] %vm567, %v604
          %608 = vrot.lane.b32.xlu0 %v566, 104
          %v609 = vpop.permute.xlu0 %608
          %s611 = scalar_lea.vmem [#allocation2], 12
          %612 = vst.msk [vmem:[%s611] sm:$0xf] %vm567, %v609
          %613 = vrot.lane.b32.xlu0 %v566, 72
          %v614 = vpop.permute.xlu0 %613
          %s616 = scalar_lea.vmem [#allocation3], 12
          %617 = vst.msk [vmem:[%s616] sm:$0xf] %vm567, %v614
          %618 = vrot.lane.b32.xlu0 %v566, 40
          %v619 = vpop.permute.xlu0 %618
          %s621 = scalar_lea.vmem [#allocation4], 12
          %622 = vst.msk [vmem:[%s621] sm:$0xf] %vm567, %v619
          %v623 = vlaneseq
          %v624 = vshrl.u32 %v623, 7
          %v625 = vlaneseq
          %v626 = vand.u32 %v625, 127
          %vm627 = vcmp.ge.s32.totalorder %v624, %v626
          %v628 = vld [vmem:[#allocation2] sm:$0xf]
          %v629 = vld [vmem:[#allocation2 + $0x4] sm:$0xf]
          %v630 = vld [vmem:[#allocation2 + $0x8] sm:$0xf]
          %v631 = vld [vmem:[#allocation2 + $0xc] sm:$0xf]
          %v632 = vld [vmem:[#allocation3] sm:$0xf]
          %v633 = vld [vmem:[#allocation3 + $0x4] sm:$0xf]
          %v634 = vld [vmem:[#allocation3 + $0x8] sm:$0xf]
          %v635 = vld [vmem:[#allocation3 + $0xc] sm:$0xf]
          %v636 = vld [vmem:[#allocation4] sm:$0xf]
          %v637 = vld [vmem:[#allocation4 + $0x4] sm:$0xf]
          %v638 = vld [vmem:[#allocation4 + $0x8] sm:$0xf]
          %v639 = vld [vmem:[#allocation4 + $0xc] sm:$0xf]
          %vm640 = vcmask 64512
          %v642 = vsel %vm640, %v628, 0
          %v645 = vsel %vm640, %v632, 0
          %647 = vmatpush.bf16.xpose.msra.mxu0 0
          %648 = vmatpush.bf16.xpose.msra.mxu0 0
          %649 = vmatpush.bf16.xpose.msra.mxu0 0
          %650 = vmatpush.bf16.xpose.msra.mxu0 0
          %651 = vmatpush.bf16.xpose.msra.mxu0 0
          %652 = vmatpush.bf16.xpose.msra.mxu0 0
          %653 = vmatpush.bf16.xpose.msra.mxu0 0
          %654 = vmatpush.bf16.xpose.msra.mxu0 %v645
          %655 = vmatmul.bf16.gmra.mxu0 %v642
          %v656 = vpop.f32.mrf.mxu0
          %v657 = vadd.f32 0.0, %v656
          %v658 = vpop.f32.mrf.mxu0
          %659 = vdwg.mxu0
          %v661 = vsel %vm640, %v629, 0
          %v664 = vsel %vm640, %v633, 0
          %666 = vmatpush.bf16.xpose.msra.mxu0 0
          %667 = vmatpush.bf16.xpose.msra.mxu0 0
          %668 = vmatpush.bf16.xpose.msra.mxu0 0
          %669 = vmatpush.bf16.xpose.msra.mxu0 0
          %670 = vmatpush.bf16.xpose.msra.mxu0 0
          %671 = vmatpush.bf16.xpose.msra.mxu0 0
          %672 = vmatpush.bf16.xpose.msra.mxu0 0
          %673 = vmatpush.bf16.xpose.msra.mxu0 %v664
          %674 = vmatmul.bf16.gmra.mxu0 %v661
          %v675 = vpop.f32.mrf.mxu0
          %v676 = vadd.f32 0.0, %v675
          %v677 = vpop.f32.mrf.mxu0
          %678 = vdwg.mxu0
          %v680 = vsel %vm640, %v630, 0
          %v683 = vsel %vm640, %v634, 0
          %685 = vmatpush.bf16.xpose.msra.mxu0 0
          %686 = vmatpush.bf16.xpose.msra.mxu0 0
          %687 = vmatpush.bf16.xpose.msra.mxu0 0
          %688 = vmatpush.bf16.xpose.msra.mxu0 0
          %689 = vmatpush.bf16.xpose.msra.mxu0 0
          %690 = vmatpush.bf16.xpose.msra.mxu0 0
          %691 = vmatpush.bf16.xpose.msra.mxu0 0
          %692 = vmatpush.bf16.xpose.msra.mxu0 %v683
          %693 = vmatmul.bf16.gmra.mxu0 %v680
          %v694 = vpop.f32.mrf.mxu0
          %v695 = vadd.f32 0.0, %v694
          %v696 = vpop.f32.mrf.mxu0
          %697 = vdwg.mxu0
          %v699 = vsel %vm640, %v631, 0
          %v702 = vsel %vm640, %v635, 0
          %704 = vmatpush.bf16.xpose.msra.mxu0 0
          %705 = vmatpush.bf16.xpose.msra.mxu0 0
          %706 = vmatpush.bf16.xpose.msra.mxu0 0
          %707 = vmatpush.bf16.xpose.msra.mxu0 0
          %708 = vmatpush.bf16.xpose.msra.mxu0 0
          %709 = vmatpush.bf16.xpose.msra.mxu0 0
          %710 = vmatpush.bf16.xpose.msra.mxu0 0
          %711 = vmatpush.bf16.xpose.msra.mxu0 %v702
          %712 = vmatmul.bf16.gmra.mxu0 %v699
          %v713 = vpop.f32.mrf.mxu0
          %v714 = vadd.f32 0.0, %v713
          %v715 = vpop.f32.mrf.mxu0
          %716 = vdwg.mxu0
          %v717 = vsel %vm627, 1, 0
          %vm718 = vcmp.eq.s32.totalorder %v717, 1
          %v719 = vsel %vm718, %v657, -1e+30
          %v720 = vsel %vm718, %v676, -1e+30
          %v721 = vsel %vm718, %v695, -1e+30
          %v722 = vsel %vm718, %v714, -1e+30
          %v723 = vsel %vm640, %v719, -inf
          %724 = vmax.xlane.f32.xlu0 %v723
          %v725 = vpop.xlane.xlu0 %724
          %v726 = vsel %vm640, %v720, -inf
          %727 = vmax.xlane.f32.xlu0 %v726
          %v728 = vpop.xlane.xlu0 %727
          %v729 = vsel %vm640, %v721, -inf
          %730 = vmax.xlane.f32.xlu0 %v729
          %v731 = vpop.xlane.xlu0 %730
          %v732 = vsel %vm640, %v722, -inf
          %733 = vmax.xlane.f32.xlu0 %v732
          %v734 = vpop.xlane.xlu0 %733
          %v735 = vmax.f32 %v725, -1e+30
          %v736 = vmax.f32 %v728, -1e+30
          %v737 = vmax.f32 %v731, -1e+30
          %v738 = vmax.f32 %v734, -1e+30
          %v739 = vsub.f32 -1e+30, %v735
          %v740 = vsub.f32 -1e+30, %v736
          %v741 = vsub.f32 -1e+30, %v737
          %v742 = vsub.f32 -1e+30, %v738
          %v743 = vmul.f32 %v739, 1.442695
          %v744 = vpow.pop %v743
          %v745 = vmul.f32 %v740, 1.442695
          %v746 = vpow.pop %v745
          %v747 = vmul.f32 %v741, 1.442695
          %v748 = vpow.pop %v747
          %v749 = vmul.f32 %v742, 1.442695
          %v750 = vpow.pop %v749
          %v751 = vsub.f32 %v719, %v735
          %v752 = vsub.f32 %v720, %v736
          %v753 = vsub.f32 %v721, %v737
          %v754 = vsub.f32 %v722, %v738
          %v755 = vmul.f32 %v751, 1.442695
          %v756 = vpow.pop %v755
          %v757 = vmul.f32 %v752, 1.442695
          %v758 = vpow.pop %v757
          %v759 = vmul.f32 %v753, 1.442695
          %v760 = vpow.pop %v759
          %v761 = vmul.f32 %v754, 1.442695
          %v762 = vpow.pop %v761
          %v763 = vmul.f32 %v744, 0.0
          %v764 = vmul.f32 %v746, 0.0
          %v765 = vmul.f32 %v748, 0.0
          %v766 = vmul.f32 %v750, 0.0
          %v767 = vsel %vm640, %v756, 0.0
          %768 = vadd.xlane.f32.xlu0 %v767
          %v769 = vpop.xlane.xlu0 %768
          %v770 = vsel %vm640, %v758, 0.0
          %771 = vadd.xlane.f32.xlu0 %v770
          %v772 = vpop.xlane.xlu0 %771
          %v773 = vsel %vm640, %v760, 0.0
          %774 = vadd.xlane.f32.xlu0 %v773
          %v775 = vpop.xlane.xlu0 %774
          %v776 = vsel %vm640, %v762, 0.0
          %777 = vadd.xlane.f32.xlu0 %v776
          %v778 = vpop.xlane.xlu0 %777
          %v779 = vadd.f32 %v763, %v769
          %v780 = vadd.f32 %v764, %v772
          %v781 = vadd.f32 %v765, %v775
          %v782 = vadd.f32 %v766, %v778
          %v783 = vpack.c.bf16 %v756, %v756
          %v784 = vpack.c.bf16 %v758, %v758
          %v785 = vpack.c.bf16 %v760, %v760
          %v786 = vpack.c.bf16 %v762, %v762
          %v788 = vsel %vm640, %v783, 0
          %vm790 = vcmask 1043456
          %v792 = vsel %vm790, %v636, 0
          %794 = vmatpush.bf16.msra.mxu0 0
          %795 = vmatpush.bf16.msra.mxu0 0
          %796 = vmatpush.bf16.msra.mxu0 0
          %797 = vmatpush.bf16.msra.mxu0 0
          %798 = vmatpush.bf16.msra.mxu0 0
          %799 = vmatpush.bf16.msra.mxu0 0
          %800 = vmatpush.bf16.msra.mxu0 0
          %801 = vmatpush.bf16.msra.mxu0 %v792
          %802 = vmatmul.bf16.gmra.mxu0 %v788
          %v803 = vpop.f32.mrf.mxu0
          %v804 = vadd.f32 0.0, %v803
          %v805 = vpop.f32.mrf.mxu0
          %806 = vdwg.mxu0
          %v808 = vsel %vm640, %v784, 0
          %v811 = vsel %vm790, %v637, 0
          %813 = vmatpush.bf16.msra.mxu0 0
          %814 = vmatpush.bf16.msra.mxu0 0
          %815 = vmatpush.bf16.msra.mxu0 0
          %816 = vmatpush.bf16.msra.mxu0 0
          %817 = vmatpush.bf16.msra.mxu0 0
          %818 = vmatpush.bf16.msra.mxu0 0
          %819 = vmatpush.bf16.msra.mxu0 0
          %820 = vmatpush.bf16.msra.mxu0 %v811
          %821 = vmatmul.bf16.gmra.mxu0 %v808
          %v822 = vpop.f32.mrf.mxu0
          %v823 = vadd.f32 0.0, %v822
          %v824 = vpop.f32.mrf.mxu0
          %825 = vdwg.mxu0
          %v827 = vsel %vm640, %v785, 0
          %v830 = vsel %vm790, %v638, 0
          %832 = vmatpush.bf16.msra.mxu0 0
          %833 = vmatpush.bf16.msra.mxu0 0
          %834 = vmatpush.bf16.msra.mxu0 0
          %835 = vmatpush.bf16.msra.mxu0 0
          %836 = vmatpush.bf16.msra.mxu0 0
          %837 = vmatpush.bf16.msra.mxu0 0
          %838 = vmatpush.bf16.msra.mxu0 0
          %839 = vmatpush.bf16.msra.mxu0 %v830
          %840 = vmatmul.bf16.gmra.mxu0 %v827
          %v841 = vpop.f32.mrf.mxu0
          %v842 = vadd.f32 0.0, %v841
          %v843 = vpop.f32.mrf.mxu0
          %844 = vdwg.mxu0
          %v846 = vsel %vm640, %v786, 0
          %v849 = vsel %vm790, %v639, 0
          %851 = vmatpush.bf16.msra.mxu0 0
          %852 = vmatpush.bf16.msra.mxu0 0
          %853 = vmatpush.bf16.msra.mxu0 0
          %854 = vmatpush.bf16.msra.mxu0 0
          %855 = vmatpush.bf16.msra.mxu0 0
          %856 = vmatpush.bf16.msra.mxu0 0
          %857 = vmatpush.bf16.msra.mxu0 0
          %858 = vmatpush.bf16.msra.mxu0 %v849
          %859 = vmatmul.bf16.gmra.mxu0 %v846
          %v860 = vpop.f32.mrf.mxu0
          %v861 = vadd.f32 0.0, %v860
          %v862 = vpop.f32.mrf.mxu0
          %863 = vdwg.mxu0
          %v864 = vadd.f32 %v763, %v804
          %v865 = vadd.f32 %v764, %v823
          %v866 = vadd.f32 %v765, %v842
          %v867 = vadd.f32 %v766, %v861
          %v868 = vrcp.pop %v779
          %v869 = vrcp.pop %v780
          %v870 = vrcp.pop %v781
          %v871 = vrcp.pop %v782
          %v872 = vmul.f32 %v864, %v868
          %v873 = vmul.f32 %v865, %v869
          %v874 = vmul.f32 %v866, %v870
          %v875 = vmul.f32 %v867, %v871
          %876 = vst.msk [vmem:[#allocation5] sm:$0xff] %vm640, %v872
          %878 = vrot.lane.b32.xlu0 %v873, 8
          %v879 = vpop.permute.xlu0 %878
          %vm881 = vcmask 130112
          %882 = vst.msk [vmem:[#allocation5] sm:$0xff] %vm881, %v879
          %884 = vrot.lane.b32.xlu0 %v874, 16
          %v885 = vpop.permute.xlu0 %884
          %vm887 = vcmask 195712
          %888 = vst.msk [vmem:[#allocation5] sm:$0xff] %vm887, %v885
          %890 = vrot.lane.b32.xlu0 %v875, 24
          %v891 = vpop.permute.xlu0 %890
          %vm893 = vcmask 261312
          %894 = vst.msk [vmem:[#allocation5] sm:$0xff] %vm893, %v891
          %v895 = vld [vmem:[#allocation5] sm:$0xff]
          %v896 = vpack.c.bf16 %v895, %v895
          %v897 = vld [vmem:[%s3] sm:$0xf]
          %v898 = vld [vmem:[%s3 + $0x4] sm:$0xf]
          %v899 = vld [vmem:[%s3 + $0x8] sm:$0xf]
          %v900 = vld [vmem:[%s3 + $0xc] sm:$0xf]
          %v901 = vld [vmem:[%s4] sm:$0x1]
          %v903 = vperm.slane %v901, 0
          %v909 = vunpack.c.l.b16 %v897
          %v910 = vunpack.c.l.b16 %v898
          %v911 = vunpack.c.l.b16 %v899
          %v912 = vunpack.c.l.b16 %v900
          %v913 = vpack.c.b16 %v910, %v909
          %v914 = vpack.c.b16 %v912, %v911
          %v918 = vsel %vm549, %v896, 0
          %920 = vmatpush.bf16.msra.mxu0 0
          %921 = vmatpush.bf16.msra.mxu0 0
          %922 = vmatpush.bf16.msra.mxu0 0
          %923 = vmatpush.bf16.msra.mxu0 0
          %924 = vmatpush.bf16.msra.mxu0 0
          %925 = vmatpush.bf16.msra.mxu0 0
          %926 = vmatpush.bf16.msra.mxu0 %v914
          %927 = vmatpush.bf16.msra.mxu0 %v913
          %928 = vmatmul.bf16.gmra.mxu0 %v918
          %v929 = vpop.f32.mrf.mxu0
          %v930 = vadd.f32 %v903, %v929
          %v931 = vpop.f32.mrf.mxu0
          %932 = vdwg.mxu0
          %v933 = vld [vmem:[%s454] sm:$0xf]
          %v934 = vunpack.c.l.bf16 %v933
          %v935 = vadd.f32 %v934, %v930
          %v936 = vld [vmem:[%s5] sm:$0x1]
          %v937 = vld [vmem:[%s6] sm:$0x1]
          %v938 = vsel %vm549, %v935, 0.0
          %939 = vadd.xlane.f32.xlu0 %v938
          %v940 = vpop.xlane.xlu0 %939
          %v941 = vrcp.pop 32.0
          %v942 = vmul.f32 32.0, %v941
          %v943 = vsub.f32 1.0, %v942
          %v944 = vmul.f32 %v941, %v943
          %v945 = vadd.f32 %v941, %v944
          %vm946 = vweird.f32 %v941
          %v947 = vsel %vm946, %v941, %v945
          %v948 = vmul.f32 %v940, %v947
          %v949 = vsub.f32 %v935, %v948
          %v950 = vmul.f32 %v949, %v949
          %v951 = vsel %vm549, %v950, 0.0
          %952 = vadd.xlane.f32.xlu0 %v951
          %v953 = vpop.xlane.xlu0 %952
          %v954 = vmul.f32 %v953, %v947
          %v955 = vadd.f32 %v954, 1e-05
          %v956 = vrsqrt.pop %v955
          %v957 = vmul.f32 %v956, %v955
          %v958 = vmul.f32 %v957, %v956
          %v959 = vmul.f32 0.5, %v958
          %v960 = vsub.f32 1.5, %v959
          %v961 = vmul.f32 %v956, %v960
          %vm962 = vweird.f32 %v955
          %vm963 = vweird.f32 %v956
          %vm964 = vmor %vm962, %vm963
          %v965 = vsel %vm964, %v956, %v961
          %v966 = vmul.f32 %v949, %v965
          %v968 = vperm.slane %v936, 0
          %v970 = vmul.f32 %v966, %v968
          %v972 = vperm.slane %v937, 0
          %v974 = vadd.f32 %v970, %v972
          %975 = vst.msk [vmem:[#allocation6] sm:$0xff] %vm549, %v974
          %976 = vst.msk [vmem:[#allocation7] sm:$0xff] %vm549, 0.0
        $region80: #{tpu_custom_call.1} parent=71 // pred_fallthru
          _
        %v977 = vld [vmem:[#allocation6] sm:$0xff]
        %v978 = vpack.c.bf16 %v977, %v977
        %v979 = vld [vmem:[%s513] sm:$0xf]
        %v980 = vld [vmem:[%s513 + $0x4] sm:$0xf]
        %v981 = vld [vmem:[%s513 + $0x8] sm:$0xf]
        %v982 = vld [vmem:[%s513 + $0xc] sm:$0xf]
        %v983 = vld [vmem:[%s516] sm:$0x1]
        %v985 = vperm.slane %v983, 0
        %v991 = vunpack.c.l.b16 %v979
        %v992 = vunpack.c.l.b16 %v980
        %v993 = vunpack.c.l.b16 %v981
        %v994 = vunpack.c.l.b16 %v982
        %v995 = vpack.c.b16 %v992, %v991
        %v996 = vpack.c.b16 %v994, %v993
        %vm999 = vcmask 261120
        %v1001 = vsel %vm999, %v978, 0
        %1003 = vmatpush.bf16.msra.mxu0 0
        %1004 = vmatpush.bf16.msra.mxu0 0
        %1005 = vmatpush.bf16.msra.mxu0 0
        %1006 = vmatpush.bf16.msra.mxu0 0
        %1007 = vmatpush.bf16.msra.mxu0 0
        %1008 = vmatpush.bf16.msra.mxu0 0
        %1009 = vmatpush.bf16.msra.mxu0 %v996
        %1010 = vmatpush.bf16.msra.mxu0 %v995
        %1011 = vmatmul.bf16.gmra.mxu0 %v1001
        %v1012 = vpop.f32.mrf.mxu0
        %v1013 = vadd.f32 %v985, %v1012
        %v1014 = vpop.f32.mrf.mxu0
        %1015 = vdwg.mxu0
        %v1016 = vmax.f32 %v1013, 0.0
        %v1017 = vld [vmem:[#allocation7] sm:$0xff]
        %v1018 = vpack.c.bf16 %v1016, %v1016
        %v1019 = vld [vmem:[%s521] sm:$0xf]
        %v1020 = vld [vmem:[%s521 + $0x4] sm:$0xf]
        %v1021 = vld [vmem:[%s521 + $0x8] sm:$0xf]
        %v1022 = vld [vmem:[%s521 + $0xc] sm:$0xf]
        %v1023 = vld [vmem:[%s521 + $0x10] sm:$0xf]
        %v1024 = vld [vmem:[%s521 + $0x14] sm:$0xf]
        %v1025 = vld [vmem:[%s521 + $0x18] sm:$0xf]
        %v1026 = vld [vmem:[%s521 + $0x1c] sm:$0xf]
        %v1035 = vunpack.c.l.b16 %v1019
        %v1036 = vunpack.c.l.b16 %v1020
        %v1037 = vunpack.c.l.b16 %v1021
        %v1038 = vunpack.c.l.b16 %v1022
        %v1039 = vunpack.c.l.b16 %v1023
        %v1040 = vunpack.c.l.b16 %v1024
        %v1041 = vunpack.c.l.b16 %v1025
        %v1042 = vunpack.c.l.b16 %v1026
        %v1043 = vpack.c.b16 %v1036, %v1035
        %v1044 = vpack.c.b16 %v1038, %v1037
        %v1045 = vpack.c.b16 %v1040, %v1039
        %v1046 = vpack.c.b16 %v1042, %v1041
        %vm1051 = vcmask 523264
        %v1053 = vsel %vm1051, %v1018, 0
        %1055 = vmatpush.bf16.msra.mxu0 0
        %1056 = vmatpush.bf16.msra.mxu0 0
        %1057 = vmatpush.bf16.msra.mxu0 0
        %1058 = vmatpush.bf16.msra.mxu0 0
        %1059 = vmatpush.bf16.msra.mxu0 %v1046
        %1060 = vmatpush.bf16.msra.mxu0 %v1045
        %1061 = vmatpush.bf16.msra.mxu0 %v1044
        %1062 = vmatpush.bf16.msra.mxu0 %v1043
        %1063 = vmatmul.bf16.gmra.mxu0 %v1053
        %v1064 = vpop.f32.mrf.mxu0
        %v1065 = vadd.f32 0.0, %v1064
        %v1066 = vpop.f32.mrf.mxu0
        %1067 = vdwg.mxu0
        %v1068 = vadd.f32 %v1017, %v1065
        %1069 = vst.msk [vmem:[#allocation7] sm:$0xff] %vm999, %v1068
        // Predicated region
        $region81: #{tpu_custom_call.1} parent=71 // pred_check
          %p1070 = pneg %p524
        $region82: #{tpu_custom_call.1} parent=71 // pred_check_branch
          %1072 = sbr.rel (%p1070) target = $region84
        $region83: #{tpu_custom_call.1} parent=71 // pred_region
          %v1073 = vld [vmem:[#allocation6] sm:$0xff]
          %v1074 = vld [vmem:[#allocation7] sm:$0xff]
          %v1075 = vadd.f32 %v1073, %v1074
          %v1076 = vld [vmem:[%s10] sm:$0x1]
          %v1078 = vperm.slane %v1076, 0
          %v1080 = vadd.f32 %v1075, %v1078
          %v1081 = vld [vmem:[%s11] sm:$0x1]
          %v1082 = vld [vmem:[%s12] sm:$0x1]
          %v1083 = vsel %vm999, %v1080, 0.0
          %1084 = vadd.xlane.f32.xlu0 %v1083
          %v1085 = vpop.xlane.xlu0 %1084
          %v1086 = vrcp.pop 32.0
          %v1087 = vmul.f32 32.0, %v1086
          %v1088 = vsub.f32 1.0, %v1087
          %v1089 = vmul.f32 %v1086, %v1088
          %v1090 = vadd.f32 %v1086, %v1089
          %vm1091 = vweird.f32 %v1086
          %v1092 = vsel %vm1091, %v1086, %v1090
          %v1093 = vmul.f32 %v1085, %v1092
          %v1094 = vsub.f32 %v1080, %v1093
          %v1095 = vmul.f32 %v1094, %v1094
          %v1096 = vsel %vm999, %v1095, 0.0
          %1097 = vadd.xlane.f32.xlu0 %v1096
          %v1098 = vpop.xlane.xlu0 %1097
          %v1099 = vmul.f32 %v1098, %v1092
          %v1100 = vadd.f32 %v1099, 1e-05
          %v1101 = vrsqrt.pop %v1100
          %v1102 = vmul.f32 %v1101, %v1100
          %v1103 = vmul.f32 %v1102, %v1101
          %v1104 = vmul.f32 0.5, %v1103
          %v1105 = vsub.f32 1.5, %v1104
          %v1106 = vmul.f32 %v1101, %v1105
          %vm1107 = vweird.f32 %v1100
          %vm1108 = vweird.f32 %v1101
          %vm1109 = vmor %vm1107, %vm1108
          %v1110 = vsel %vm1109, %v1101, %v1106
          %v1111 = vmul.f32 %v1094, %v1110
          %v1113 = vperm.slane %v1081, 0
          %v1115 = vmul.f32 %v1111, %v1113
          %v1117 = vperm.slane %v1082, 0
          %v1119 = vadd.f32 %v1115, %v1117
          %v1120 = vpack.c.bf16 %v1119, %v1119
          %vm1121 = vcmask 257024
          %1122 = vst.msk [vmem:[%s509] sm:$0xf] %vm1121, %v1120
        $region84: #{tpu_custom_call.1} parent=71 // pred_fallthru
          _
        %s1123 = sand.u32 %s343, 1
        %s1124 = scalar_lea.sflag [#allocation10], %s1123
        %s1125 = sand.u32 %s343, 1
        %s1126 = smul.addr %s1125, 4
        %s1127 = scalar_lea.vmem [#allocation11], %s1126
        // Predicated region
        $region85: #{tpu_custom_call.1} parent=71 // pred_check
          %p1128 = pneg %p353
        $region86: #{tpu_custom_call.1} parent=71 // pred_check_branch
          %1130 = sbr.rel (%p1128) target = $region88
        $region87: #{tpu_custom_call.1} parent=71 // pred_region
          %1132 = vsyncadd %s1124, 0
          %s1133 = smul.addr %s34, 4
          %s1134 = scalar_lea.hbm %s13, %s1133
          %s1136 = sshll.u32 %s1127, 4
          %s1137 = int_to_ptr.vmem [resolvable:$true] %s1136
          %s1138 = sshll.u32 %s1134, 4
          %s1139 = int_to_ptr.hbm [resolvable:$true] %s1138
          %1141 = dma.vmem_to_hbm [thread:$0]  %s1137, 64, %s1139, %s1124
        $region88: #{tpu_custom_call.1} parent=71 // pred_fallthru
          _
      $region72: #{tpu_custom_call.1} parent=5 // pred_fallthru
        _
      %p1142 = scmp.le.s32.totalorder 2, %s25
      // Predicated region
      $region89: #{tpu_custom_call.1} parent=5 // pred_check
        %p1143 = pneg %p1142
      $region90: #{tpu_custom_call.1} parent=5 // pred_check_branch
        %1145 = sbr.rel (%p1143) target = $region92
      $region91: #{tpu_custom_call.1} parent=5 // pred_region
        %s1146 = ssub.s32 %s25, 2
        // Predicated region
        $region93: #{tpu_custom_call.1} parent=91 // pred_check
          %p1147 = pneg %p359
        $region94: #{tpu_custom_call.1} parent=91 // pred_check_branch
          %1149 = sbr.rel (%p1147) target = $region96
        $region95: #{tpu_custom_call.1} parent=91 // pred_region
          %s1150 = sand.u32 %s344, 1
          %s1151 = scalar_lea.sflag [#allocation10], %s1150
          %s1152 = sand.u32 %s344, 1
          %s1153 = smul.addr %s1152, 4
          %s1154 = scalar_lea.vmem [#allocation11], %s1153
          %1156 = dma.done %s1151, 64
        $region96: #{tpu_custom_call.1} parent=91 // pred_fallthru
          _
      $region92: #{tpu_custom_call.1} parent=5 // pred_fallthru
        _
    $region6: #{tpu_custom_call.1} parent=1 // loop_footer
      %s29 = sadd.s32 1, %s25
    $region7: #{tpu_custom_call.1} parent=1 // loop_footer_branch
      %24 = sbr.rel target = $region3
    $region8: #{tpu_custom_call.1} parent=1 // loop_exit
      _
    %1157 = vsyncpa [#allocation9], 1
    %s1158 = scalar_lea.sflag [#allocation9], 1
    %1159 = vsyncpa %s1158, 1
    %1160 = vsyncpa [#allocation10], 1
    %s1161 = scalar_lea.sflag [#allocation10], 1
    %1162 = vsyncpa %s1161, 1

// kernel: tpu_custom_call.1
$region0: #{tpu_custom_call.1}
  #allocation0 [shape = 'u32[]', space=smem, size = 0x4, offset = 0x4, fixed_abs, tag = 'smem constant byte address 0x4 - core index']
  #allocation1 [shape = 'u32[72,128]{1,0:T(1,128)}', space=vmem, size = 0x9000, scoped, tag = 'internal scratch']
  #allocation2 [shape = 'bf16[1,4,8,8]{3,2,1,0:T(8,128)(2,1)}', space=vmem, size = 0x2000, scoped, tag = 'scratch operand']
  #allocation3 [shape = 'bf16[1,4,8,8]{3,2,1,0:T(8,128)(2,1)}', space=vmem, size = 0x2000, scoped, tag = 'scratch operand']
  #allocation4 [shape = 'bf16[1,4,8,8]{3,2,1,0:T(8,128)(2,1)}', space=vmem, size = 0x2000, scoped, tag = 'scratch operand']
  #allocation5 [shape = 'f32[1,8,32]{2,1,0:T(8,128)}', space=vmem, size = 0x1000, scoped, tag = 'scratch operand']
  #allocation6 [shape = 'f32[1,8,32]{2,1,0:T(8,128)}', space=vmem, size = 0x1000, scoped, tag = 'scratch operand']
  #allocation7 [shape = 'f32[1,8,32]{2,1,0:T(8,128)}', space=vmem, size = 0x1000, scoped, tag = 'scratch operand']
  %s0 = inlined_call_operand.hbm [shape: bf16[2,8,32], index: 0, kind: input, shape index: {}]
  %s1 = inlined_call_operand.vmem [shape: bf16[32,96], index: 1, kind: input, shape index: {}]
  %s2 = inlined_call_operand.vmem [shape: f32[1,96], index: 2, kind: input, shape index: {}]
  %s3 = inlined_call_operand.vmem [shape: bf16[32,32], index: 3, kind: input, shape index: {}]
  %s4 = inlined_call_operand.vmem [shape: f32[1,32], index: 4, kind: input, shape index: {}]
  %s5 = inlined_call_operand.vmem [shape: f32[1,32], index: 5, kind: input, shape index: {}]
  %s6 = inlined_call_operand.vmem [shape: f32[1,32], index: 6, kind: input, shape index: {}]
  %s7 = inlined_call_operand.vmem [shape: bf16[32,64], index: 7, kind: input, shape index: {}]
  %s8 = inlined_call_operand.vmem [shape: f32[1,64], index: 8, kind: input, shape index: {}]
  %s9 = inlined_call_operand.vmem [shape: bf16[64,32], index: 9, kind: input, shape index: {}]
  %s10 = inlined_call_operand.vmem [shape: f32[1,32], index: 10, kind: input, shape index: {}]
  %s11 = inlined_call_operand.vmem [shape: f32[1,32], index: 11, kind: input, shape index: {}]
  %s12 = inlined_call_operand.vmem [shape: f32[1,32], index: 12, kind: input, shape index: {}]
  %s13 = inlined_call_operand.hbm [shape: bf16[2,8,32], index: 13, kind: output, shape index: {}]
  %s14 = sld [smem:[#allocation0]]
  $region97: #{tpu_custom_call.1} parent=0
    _
  %s16 = ssub.s32 1, %s14
  %s17 = scalar_select 0, %s16, %s14
  $region1: #{tpu_custom_call.1} parent=0
    #allocation8 [shape = 'u8[4096]{0}', space=vmem, size = 0x1000, scoped, tag = 'input window, operand 0']
    #allocation9 [shape = 's32[2]{0}', space=sflag, size = 0x8, scoped, tag = 'scoped memory for tpu_custom_call.1']
    #allocation10 [shape = 's32[2]{0}', space=sflag, size = 0x8, scoped, tag = 'scoped memory for tpu_custom_call.1']
    #allocation11 [shape = 'u8[4096]{0}', space=vmem, size = 0x1000, scoped, tag = 'output window, operand 0']
    %18 = vsyncpa [#allocation9], 0
    %s19 = scalar_lea.sflag [#allocation9], 1
    %20 = vsyncpa %s19, 0
    %21 = vsyncpa [#allocation10], 0
    %s22 = scalar_lea.sflag [#allocation10], 1
    %23 = vsyncpa %s22, 0
    loop: start=0, step=1, limit=4
    $region2: #{tpu_custom_call.1} parent=1 // loop_pre_header
      _
    $region3: #{tpu_custom_call.1} parent=1 // loop_header
      %s25 = sphi 0, %s29
      %p26 = scmp.ge.s32.totalorder %s25, 4
      %s32 = sphi 0, %s44
      %s33 = sphi 0, %s40
      %s34 = sphi 0, %s32
      %s35 = sphi 0, %s33
      %s36 = sphi 0, %s34
      %s37 = sphi 0, %s35
      %s47 = sphi 0, %s49
      %s50 = sphi 0, %s47
      %s51 = sphi 0, %s50
      %s67 = sphi 0, %s51
      %s71 = sphi 0, %s71
      %s73 = sphi 0, %s71
      %s74 = sphi 0, %s73
      %s88 = sphi 0, %s74
      %s92 = sphi 0, %s92
      %s94 = sphi 0, %s92
      %s95 = sphi 0, %s94
      %s109 = sphi 0, %s95
      %s113 = sphi 0, %s113
      %s115 = sphi 0, %s113
      %s116 = sphi 0, %s115
      %s130 = sphi 0, %s116
      %s134 = sphi 0, %s134
      %s136 = sphi 0, %s134
      %s137 = sphi 0, %s136
      %s151 = sphi 0, %s137
      %s155 = sphi 0, %s155
      %s157 = sphi 0, %s155
      %s158 = sphi 0, %s157
      %s172 = sphi 0, %s158
      %s176 = sphi 0, %s176
      %s178 = sphi 0, %s176
      %s179 = sphi 0, %s178
      %s193 = sphi 0, %s179
      %s199 = sphi 0, %s201
      %s202 = sphi 0, %s199
      %s203 = sphi 0, %s202
      %s219 = sphi 0, %s203
      %s225 = sphi 0, %s227
      %s228 = sphi 0, %s225
      %s229 = sphi 0, %s228
      %s245 = sphi 0, %s229
      %s251 = sphi 0, %s253
      %s254 = sphi 0, %s251
      %s255 = sphi 0, %s254
      %s271 = sphi 0, %s255
      %s275 = sphi 0, %s275
      %s277 = sphi 0, %s275
      %s278 = sphi 0, %s277
      %s292 = sphi 0, %s278
      %s296 = sphi 0, %s296
      %s298 = sphi 0, %s296
      %s299 = sphi 0, %s298
      %s313 = sphi 0, %s299
      %s317 = sphi 0, %s317
      %s319 = sphi 0, %s317
      %s320 = sphi 0, %s319
      %s334 = sphi 0, %s320
      %s340 = sphi 0, %s342
      %s343 = sphi 0, %s340
      %s344 = sphi 0, %s343
      %s360 = sphi 0, %s344
    $region4: #{tpu_custom_call.1} parent=1 // loop_header_branch
      %28 = sbr.rel (%p26) target = $region8
    $region5: #{tpu_custom_call.1} parent=1 // loop_body
      %s30 = ssub.s32 %s25, 1
      %s31 = ssub.s32 %s25, 2
      %s38 = sadd.s32 1, %s33
      %p39 = scmp.ge.s32.totalorder %s38, 1
      %s40 = scalar_select %p39, 0, %s38
      %s41 = sadd.s32 1, %s32
      %s42 = scalar_select %p39, %s41, %s32
      %p43 = scmp.ge.s32.totalorder %s42, 2
      %s44 = scalar_select %p43, 0, %s42
      %s45 = ssub.s32 %s32, %s44
      %p46 = scmp.eq.s32.totalorder %s45, 0
      %s48 = sadd.s32 %s47, 1
      %s49 = scalar_select %p46, %s47, %s48
      %p52 = pneg %p46
      %p53 = scmp.eq.s32.totalorder %s25, 1
      %p54 = por %p52, %p53
      %p55 = scmp.ne.s32.totalorder %s47, %s50
      %p56 = scmp.eq.s32.totalorder %s25, 0
      %p57 = por %p55, %p56
      %p58 = scmp.ne.s32.totalorder %s47, %s50
      %p59 = scmp.eq.s32.totalorder %s30, 1
      %p60 = por %p58, %p59
      %p61 = scmp.ne.s32.totalorder %s50, %s51
      %p62 = scmp.eq.s32.totalorder %s30, 0
      %p63 = por %p61, %p62
      %p64 = scmp.ne.s32.totalorder %s50, %s51
      %p65 = scmp.eq.s32.totalorder %s31, 1
      %p66 = por %p64, %p65
      %p68 = scmp.ne.s32.totalorder %s51, %s67
      %p69 = scmp.eq.s32.totalorder %s31, 0
      %p70 = por %p68, %p69
      %s72 = sadd.s32 %s71, 1
      %p75 = scmp.eq.s32.totalorder %s25, 1
      %p76 = scmp.ne.s32.totalorder %s71, %s73
      %p77 = scmp.eq.s32.totalorder %s25, 0
      %p78 = por %p76, %p77
      %p79 = scmp.ne.s32.totalorder %s71, %s73
      %p80 = scmp.eq.s32.totalorder %s30, 1
      %p81 = por %p79, %p80
      %p82 = scmp.ne.s32.totalorder %s73, %s74
      %p83 = scmp.eq.s32.totalorder %s30, 0
      %p84 = por %p82, %p83
      %p85 = scmp.ne.s32.totalorder %s73, %s74
      %p86 = scmp.eq.s32.totalorder %s31, 1
      %p87 = por %p85, %p86
      %p89 = scmp.ne.s32.totalorder %s74, %s88
      %p90 = scmp.eq.s32.totalorder %s31, 0
      %p91 = por %p89, %p90
      %s93 = sadd.s32 %s92, 1
      %p96 = scmp.eq.s32.totalorder %s25, 1
      %p97 = scmp.ne.s32.totalorder %s92, %s94
      %p98 = scmp.eq.s32.totalorder %s25, 0
      %p99 = por %p97, %p98
      %p100 = scmp.ne.s32.totalorder %s92, %s94
      %p101 = scmp.eq.s32.totalorder %s30, 1
      %p102 = por %p100, %p101
      %p103 = scmp.ne.s32.totalorder %s94, %s95
      %p104 = scmp.eq.s32.totalorder %s30, 0
      %p105 = por %p103, %p104
      %p106 = scmp.ne.s32.totalorder %s94, %s95
      %p107 = scmp.eq.s32.totalorder %s31, 1
      %p108 = por %p106, %p107
      %p110 = scmp.ne.s32.totalorder %s95, %s109
      %p111 = scmp.eq.s32.totalorder %s31, 0
      %p112 = por %p110, %p111
      %s114 = sadd.s32 %s113, 1
      %p117 = scmp.eq.s32.totalorder %s25, 1
      %p118 = scmp.ne.s32.totalorder %s113, %s115
      %p119 = scmp.eq.s32.totalorder %s25, 0
      %p120 = por %p118, %p119
      %p121 = scmp.ne.s32.totalorder %s113, %s115
      %p122 = scmp.eq.s32.totalorder %s30, 1
      %p123 = por %p121, %p122
      %p124 = scmp.ne.s32.totalorder %s115, %s116
      %p125 = scmp.eq.s32.totalorder %s30, 0
      %p126 = por %p124, %p125
      %p127 = scmp.ne.s32.totalorder %s115, %s116
      %p128 = scmp.eq.s32.totalorder %s31, 1
      %p129 = por %p127, %p128
      %p131 = scmp.ne.s32.totalorder %s116, %s130
      %p132 = scmp.eq.s32.totalorder %s31, 0
      %p133 = por %p131, %p132
      %s135 = sadd.s32 %s134, 1
      %p138 = scmp.eq.s32.totalorder %s25, 1
      %p139 = scmp.ne.s32.totalorder %s134, %s136
      %p140 = scmp.eq.s32.totalorder %s25, 0
      %p141 = por %p139, %p140
      %p142 = scmp.ne.s32.totalorder %s134, %s136
      %p143 = scmp.eq.s32.totalorder %s30, 1
      %p144 = por %p142, %p143
      %p145 = scmp.ne.s32.totalorder %s136, %s137
      %p146 = scmp.eq.s32.totalorder %s30, 0
      %p147 = por %p145, %p146
      %p148 = scmp.ne.s32.totalorder %s136, %s137
      %p149 = scmp.eq.s32.totalorder %s31, 1
      %p150 = por %p148, %p149
      %p152 = scmp.ne.s32.totalorder %s137, %s151
      %p153 = scmp.eq.s32.totalorder %s31, 0
      %p154 = por %p152, %p153
      %s156 = sadd.s32 %s155, 1
      %p159 = scmp.eq.s32.totalorder %s25, 1
      %p160 = scmp.ne.s32.totalorder %s155, %s157
      %p161 = scmp.eq.s32.totalorder %s25, 0
      %p162 = por %p160, %p161
      %p163 = scmp.ne.s32.totalorder %s155, %s157
      %p164 = scmp.eq.s32.totalorder %s30, 1
      %p165 = por %p163, %p164
      %p166 = scmp.ne.s32.totalorder %s157, %s158
      %p167 = scmp.eq.s32.totalorder %s30, 0
      %p168 = por %p166, %p167
      %p169 = scmp.ne.s32.totalorder %s157, %s158
      %p170 = scmp.eq.s32.totalorder %s31, 1
      %p171 = por %p169, %p170
      %p173 = scmp.ne.s32.totalorder %s158, %s172
      %p174 = scmp.eq.s32.totalorder %s31, 0
      %p175 = por %p173, %p174
      %s177 = sadd.s32 %s176, 1
      %p180 = scmp.eq.s32.totalorder %s25, 1
      %p181 = scmp.ne.s32.totalorder %s176, %s178
      %p182 = scmp.eq.s32.totalorder %s25, 0
      %p183 = por %p181, %p182
      %p184 = scmp.ne.s32.totalorder %s176, %s178
      %p185 = scmp.eq.s32.totalorder %s30, 1
      %p186 = por %p184, %p185
      %p187 = scmp.ne.s32.totalorder %s178, %s179
      %p188 = scmp.eq.s32.totalorder %s30, 0
      %p189 = por %p187, %p188
      %p190 = scmp.ne.s32.totalorder %s178, %s179
      %p191 = scmp.eq.s32.totalorder %s31, 1
      %p192 = por %p190, %p191
      %p194 = scmp.ne.s32.totalorder %s179, %s193
      %p195 = scmp.eq.s32.totalorder %s31, 0
      %p196 = por %p194, %p195
      %s197 = ssub.s32 %s33, %s40
      %p198 = scmp.eq.s32.totalorder %s197, 0
      %s200 = sadd.s32 %s199, 1
      %s201 = scalar_select %p198, %s199, %s200
      %p204 = pneg %p198
      %p205 = scmp.eq.s32.totalorder %s25, 1
      %p206 = por %p204, %p205
      %p207 = scmp.ne.s32.totalorder %s199, %s202
      %p208 = scmp.eq.s32.totalorder %s25, 0
      %p209 = por %p207, %p208
      %p210 = scmp.ne.s32.totalorder %s199, %s202
      %p211 = scmp.eq.s32.totalorder %s30, 1
      %p212 = por %p210, %p211
      %p213 = scmp.ne.s32.totalorder %s202, %s203
      %p214 = scmp.eq.s32.totalorder %s30, 0
      %p215 = por %p213, %p214
      %p216 = scmp.ne.s32.totalorder %s202, %s203
      %p217 = scmp.eq.s32.totalorder %s31, 1
      %p218 = por %p216, %p217
      %p220 = scmp.ne.s32.totalorder %s203, %s219
      %p221 = scmp.eq.s32.totalorder %s31, 0
      %p222 = por %p220, %p221
      %s223 = ssub.s32 %s33, %s40
      %p224 = scmp.eq.s32.totalorder %s223, 0
      %s226 = sadd.s32 %s225, 1
      %s227 = scalar_select %p224, %s225, %s226
      %p230 = pneg %p224
      %p231 = scmp.eq.s32.totalorder %s25, 1
      %p232 = por %p230, %p231
      %p233 = scmp.ne.s32.totalorder %s225, %s228
      %p234 = scmp.eq.s32.totalorder %s25, 0
      %p235 = por %p233, %p234
      %p236 = scmp.ne.s32.totalorder %s225, %s228
      %p237 = scmp.eq.s32.totalorder %s30, 1
      %p238 = por %p236, %p237
      %p239 = scmp.ne.s32.totalorder %s228, %s229
      %p240 = scmp.eq.s32.totalorder %s30, 0
      %p241 = por %p239, %p240
      %p242 = scmp.ne.s32.totalorder %s228, %s229
      %p243 = scmp.eq.s32.totalorder %s31, 1
      %p244 = por %p242, %p243
      %p246 = scmp.ne.s32.totalorder %s229, %s245
      %p247 = scmp.eq.s32.totalorder %s31, 0
      %p248 = por %p246, %p247
      %s249 = ssub.s32 %s33, %s40
      %p250 = scmp.eq.s32.totalorder %s249, 0
      %s252 = sadd.s32 %s251, 1
      %s253 = scalar_select %p250, %s251, %s252
      %p256 = pneg %p250
      %p257 = scmp.eq.s32.totalorder %s25, 1
      %p258 = por %p256, %p257
      %p259 = scmp.ne.s32.totalorder %s251, %s254
      %p260 = scmp.eq.s32.totalorder %s25, 0
      %p261 = por %p259, %p260
      %p262 = scmp.ne.s32.totalorder %s251, %s254
      %p263 = scmp.eq.s32.totalorder %s30, 1
      %p264 = por %p262, %p263
      %p265 = scmp.ne.s32.totalorder %s254, %s255
      %p266 = scmp.eq.s32.totalorder %s30, 0
      %p267 = por %p265, %p266
      %p268 = scmp.ne.s32.totalorder %s254, %s255
      %p269 = scmp.eq.s32.totalorder %s31, 1
      %p270 = por %p268, %p269
      %p272 = scmp.ne.s32.totalorder %s255, %s271
      %p273 = scmp.eq.s32.totalorder %s31, 0
      %p274 = por %p272, %p273
      %s276 = sadd.s32 %s275, 1
      %p279 = scmp.eq.s32.totalorder %s25, 1
      %p280 = scmp.ne.s32.totalorder %s275, %s277
      %p281 = scmp.eq.s32.totalorder %s25, 0
      %p282 = por %p280, %p281
      %p283 = scmp.ne.s32.totalorder %s275, %s277
      %p284 = scmp.eq.s32.totalorder %s30, 1
      %p285 = por %p283, %p284
      %p286 = scmp.ne.s32.totalorder %s277, %s278
      %p287 = scmp.eq.s32.totalorder %s30, 0
      %p288 = por %p286, %p287
      %p289 = scmp.ne.s32.totalorder %s277, %s278
      %p290 = scmp.eq.s32.totalorder %s31, 1
      %p291 = por %p289, %p290
      %p293 = scmp.ne.s32.totalorder %s278, %s292
      %p294 = scmp.eq.s32.totalorder %s31, 0
      %p295 = por %p293, %p294
      %s297 = sadd.s32 %s296, 1
      %p300 = scmp.eq.s32.totalorder %s25, 1
      %p301 = scmp.ne.s32.totalorder %s296, %s298
      %p302 = scmp.eq.s32.totalorder %s25, 0
      %p303 = por %p301, %p302
      %p304 = scmp.ne.s32.totalorder %s296, %s298
      %p305 = scmp.eq.s32.totalorder %s30, 1
      %p306 = por %p304, %p305
      %p307 = scmp.ne.s32.totalorder %s298, %s299
      %p308 = scmp.eq.s32.totalorder %s30, 0
      %p309 = por %p307, %p308
      %p310 = scmp.ne.s32.totalorder %s298, %s299
      %p311 = scmp.eq.s32.totalorder %s31, 1
      %p312 = por %p310, %p311
      %p314 = scmp.ne.s32.totalorder %s299, %s313
      %p315 = scmp.eq.s32.totalorder %s31, 0
      %p316 = por %p314, %p315
      %s318 = sadd.s32 %s317, 1
      %p321 = scmp.eq.s32.totalorder %s25, 1
      %p322 = scmp.ne.s32.totalorder %s317, %s319
      %p323 = scmp.eq.s32.totalorder %s25, 0
      %p324 = por %p322, %p323
      %p325 = scmp.ne.s32.totalorder %s317, %s319
      %p326 = scmp.eq.s32.totalorder %s30, 1
      %p327 = por %p325, %p326
      %p328 = scmp.ne.s32.totalorder %s319, %s320
      %p329 = scmp.eq.s32.totalorder %s30, 0
      %p330 = por %p328, %p329
      %p331 = scmp.ne.s32.totalorder %s319, %s320
      %p332 = scmp.eq.s32.totalorder %s31, 1
      %p333 = por %p331, %p332
      %p335 = scmp.ne.s32.totalorder %s320, %s334
      %p336 = scmp.eq.s32.totalorder %s31, 0
      %p337 = por %p335, %p336
      %s338 = ssub.s32 %s32, %s44
      %p339 = scmp.eq.s32.totalorder %s338, 0
      %s341 = sadd.s32 %s340, 1
      %s342 = scalar_select %p339, %s340, %s341
      %p345 = pneg %p339
      %p346 = scmp.eq.s32.totalorder %s25, 1
      %p347 = por %p345, %p346
      %p348 = scmp.ne.s32.totalorder %s340, %s343
      %p349 = scmp.eq.s32.totalorder %s25, 0
      %p350 = por %p348, %p349
      %p351 = scmp.ne.s32.totalorder %s340, %s343
      %p352 = scmp.eq.s32.totalorder %s30, 1
      %p353 = por %p351, %p352
      %p354 = scmp.ne.s32.totalorder %s343, %s344
      %p355 = scmp.eq.s32.totalorder %s30, 0
      %p356 = por %p354, %p355
      %p357 = scmp.ne.s32.totalorder %s343, %s344
      %p358 = scmp.eq.s32.totalorder %s31, 1
      %p359 = por %p357, %p358
      %p361 = scmp.ne.s32.totalorder %s344, %s360
      %p362 = scmp.eq.s32.totalorder %s31, 0
      %p363 = por %p361, %p362
      %p364 = scmp.le.s32.totalorder 1, %s25
      %p365 = scmp.lt.s32.totalorder %s25, 3
      %p366 = pnand %p364, %p365
      %p367 = pneg %p366
      // Predicated region
      $region9: #{tpu_custom_call.1} parent=5 // pred_check
        _
      $region10: #{tpu_custom_call.1} parent=5 // pred_check_branch
        %369 = sbr.rel (%p366) target = $region12
      $region11: #{tpu_custom_call.1} parent=5 // pred_region
        %s370 = ssub.s32 %s25, 1
        // Predicated region
        $region13: #{tpu_custom_call.1} parent=11 // pred_check
          %p371 = pneg %p84
        $region14: #{tpu_custom_call.1} parent=11 // pred_check_branch
          %373 = sbr.rel (%p371) target = $region16
        $region15: #{tpu_custom_call.1} parent=11 // pred_region
          _
        $region16: #{tpu_custom_call.1} parent=11 // pred_fallthru
          _
        // Predicated region
        $region17: #{tpu_custom_call.1} parent=11 // pred_check
          %p374 = pneg %p105
        $region18: #{tpu_custom_call.1} parent=11 // pred_check_branch
          %376 = sbr.rel (%p374) target = $region20
        $region19: #{tpu_custom_call.1} parent=11 // pred_region
          _
        $region20: #{tpu_custom_call.1} parent=11 // pred_fallthru
          _
        // Predicated region
        $region21: #{tpu_custom_call.1} parent=11 // pred_check
          %p377 = pneg %p126
        $region22: #{tpu_custom_call.1} parent=11 // pred_check_branch
          %379 = sbr.rel (%p377) target = $region24
        $region23: #{tpu_custom_call.1} parent=11 // pred_region
          _
        $region24: #{tpu_custom_call.1} parent=11 // pred_fallthru
          _
        // Predicated region
        $region25: #{tpu_custom_call.1} parent=11 // pred_check
          %p380 = pneg %p147
        $region26: #{tpu_custom_call.1} parent=11 // pred_check_branch
          %382 = sbr.rel (%p380) target = $region28
        $region27: #{tpu_custom_call.1} parent=11 // pred_region
          _
        $region28: #{tpu_custom_call.1} parent=11 // pred_fallthru
          _
        // Predicated region
        $region29: #{tpu_custom_call.1} parent=11 // pred_check
          %p383 = pneg %p168
        $region30: #{tpu_custom_call.1} parent=11 // pred_check_branch
          %385 = sbr.rel (%p383) target = $region32
        $region31: #{tpu_custom_call.1} parent=11 // pred_region
          _
        $region32: #{tpu_custom_call.1} parent=11 // pred_fallthru
          _
        // Predicated region
        $region33: #{tpu_custom_call.1} parent=11 // pred_check
          %p386 = pneg %p189
        $region34: #{tpu_custom_call.1} parent=11 // pred_check_branch
          %388 = sbr.rel (%p386) target = $region36
        $region35: #{tpu_custom_call.1} parent=11 // pred_region
          _
        $region36: #{tpu_custom_call.1} parent=11 // pred_fallthru
          _
        // Predicated region
        $region37: #{tpu_custom_call.1} parent=11 // pred_check
          %p389 = pneg %p215
        $region38: #{tpu_custom_call.1} parent=11 // pred_check_branch
          %391 = sbr.rel (%p389) target = $region40
        $region39: #{tpu_custom_call.1} parent=11 // pred_region
          %p392 = scmp.lt.s32.totalorder %s35, 0
          %s393 = scalar_select %p392, %s35, 0
          %s394 = smul.addr %s393, 4
          %s395 = scalar_lea.vmem %s7, %s394
        $region40: #{tpu_custom_call.1} parent=11 // pred_fallthru
          _
        // Predicated region
        $region41: #{tpu_custom_call.1} parent=11 // pred_check
          %p396 = pneg %p241
        $region42: #{tpu_custom_call.1} parent=11 // pred_check_branch
          %398 = sbr.rel (%p396) target = $region44
        $region43: #{tpu_custom_call.1} parent=11 // pred_region
          %p399 = scmp.lt.s32.totalorder %s35, 0
          %s400 = scalar_select %p399, %s35, 0
          %s401 = scalar_lea.vmem %s8, %s400
        $region44: #{tpu_custom_call.1} parent=11 // pred_fallthru
          _
        // Predicated region
        $region45: #{tpu_custom_call.1} parent=11 // pred_check
          %p402 = pneg %p267
        $region46: #{tpu_custom_call.1} parent=11 // pred_check_branch
          %404 = sbr.rel (%p402) target = $region48
        $region47: #{tpu_custom_call.1} parent=11 // pred_region
          %s405 = smul.u32 8, %s35
          %p406 = scmp.lt.s32.totalorder %s405, 7
          %s407 = scalar_select %p406, %s405, 7
          %s408 = smul.addr %s407, 4
          %s409 = scalar_lea.vmem %s9, %s408
          %s410 = smul.u32 8, %s35
        $region48: #{tpu_custom_call.1} parent=11 // pred_fallthru
          _
        // Predicated region
        $region49: #{tpu_custom_call.1} parent=11 // pred_check
          %p411 = pneg %p288
        $region50: #{tpu_custom_call.1} parent=11 // pred_check_branch
          %413 = sbr.rel (%p411) target = $region52
        $region51: #{tpu_custom_call.1} parent=11 // pred_region
          _
        $region52: #{tpu_custom_call.1} parent=11 // pred_fallthru
          _
        // Predicated region
        $region53: #{tpu_custom_call.1} parent=11 // pred_check
          %p414 = pneg %p309
        $region54: #{tpu_custom_call.1} parent=11 // pred_check_branch
          %416 = sbr.rel (%p414) target = $region56
        $region55: #{tpu_custom_call.1} parent=11 // pred_region
          _
        $region56: #{tpu_custom_call.1} parent=11 // pred_fallthru
          _
        // Predicated region
        $region57: #{tpu_custom_call.1} parent=11 // pred_check
          %p417 = pneg %p330
        $region58: #{tpu_custom_call.1} parent=11 // pred_check_branch
          %419 = sbr.rel (%p417) target = $region60
        $region59: #{tpu_custom_call.1} parent=11 // pred_region
          _
        $region60: #{tpu_custom_call.1} parent=11 // pred_fallthru
          _
      $region12: #{tpu_custom_call.1} parent=5 // pred_fallthru
        _
      %p420 = scmp.lt.s32.totalorder %s25, 2
      // Predicated region
      $region61: #{tpu_custom_call.1} parent=5 // pred_check
        %p421 = pneg %p420
      $region62: #{tpu_custom_call.1} parent=5 // pred_check_branch
        %423 = sbr.rel (%p421) target = $region64
      $region63: #{tpu_custom_call.1} parent=5 // pred_region
        // Predicated region
        $region65: #{tpu_custom_call.1} parent=63 // pred_check
          %p424 = pneg %p57
        $region66: #{tpu_custom_call.1} parent=63 // pred_check_branch
          %426 = sbr.rel (%p424) target = $region68
        $region67: #{tpu_custom_call.1} parent=63 // pred_region
          %s427 = sand.u32 %s47, 1
          %s428 = scalar_lea.sflag [#allocation9], %s427
          %s429 = sand.u32 %s47, 1
          %s430 = smul.addr %s429, 4
          %s431 = scalar_lea.vmem [#allocation8], %s430
          %433 = vsyncadd %s428, 0
          %s434 = smul.addr %s32, 4
          %s435 = scalar_lea.hbm %s0, %s434
          %s437 = sshll.u32 %s435, 4
          %s438 = int_to_ptr.hbm [resolvable:$true] %s437
          %s439 = sshll.u32 %s431, 4
          %s440 = int_to_ptr.vmem [resolvable:$true] %s439
          %442 = dma.hbm_to_vmem [thread:$0]  %s438, 64, %s440, %s428
        $region68: #{tpu_custom_call.1} parent=63 // pred_fallthru
          _
      $region64: #{tpu_custom_call.1} parent=5 // pred_fallthru
        _
      %p443 = scmp.le.s32.totalorder 1, %s25
      %p444 = scmp.lt.s32.totalorder %s25, 3
      %p445 = pnand %p443, %p444
      %p446 = pneg %p445
      // Predicated region
      $region69: #{tpu_custom_call.1} parent=5 // pred_check
        _
      $region70: #{tpu_custom_call.1} parent=5 // pred_check_branch
        %448 = sbr.rel (%p445) target = $region72
      $region71: #{tpu_custom_call.1} parent=5 // pred_region
        %s449 = ssub.s32 %s25, 1
        %s450 = sand.u32 %s50, 1
        %s451 = scalar_lea.sflag [#allocation9], %s450
        %s452 = sand.u32 %s50, 1
        %s453 = smul.addr %s452, 4
        %s454 = scalar_lea.vmem [#allocation8], %s453
        // Predicated region
        $region73: #{tpu_custom_call.1} parent=71 // pred_check
          %p455 = pneg %p63
        $region74: #{tpu_custom_call.1} parent=71 // pred_check_branch
          %457 = sbr.rel (%p455) target = $region76
        $region75: #{tpu_custom_call.1} parent=71 // pred_region
          %459 = dma.done %s451, 64
        $region76: #{tpu_custom_call.1} parent=71 // pred_fallthru
          _
        %s460 = sand.u32 %s50, 1
        %s461 = scalar_lea.sflag [#allocation9], %s460
        %s462 = sand.u32 %s50, 1
        %s463 = smul.addr %s462, 4
        %s464 = scalar_lea.vmem [#allocation8], %s463
        %p465 = pneg %p63
        %p466 = pneg %p60
        %p467 = pneg %p84
        %p468 = pneg %p81
        %p469 = pneg %p105
        %p470 = pneg %p102
        %p471 = pneg %p126
        %p472 = pneg %p123
        %p473 = pneg %p147
        %p474 = pneg %p144
        %p475 = pneg %p168
        %p476 = pneg %p165
        %p477 = pneg %p189
        %p478 = pneg %p186
        %p479 = scmp.lt.s32.totalorder %s35, 0
        %s480 = scalar_select %p479, %s35, 0
        %s481 = smul.addr %s480, 4
        %s482 = scalar_lea.vmem %s7, %s481
        %p483 = pneg %p215
        %p484 = pneg %p212
        %p485 = scmp.lt.s32.totalorder %s35, 0
        %s486 = scalar_select %p485, %s35, 0
        %s487 = scalar_lea.vmem %s8, %s486
        %p488 = pneg %p241
        %p489 = pneg %p238
        %s490 = smul.u32 8, %s35
        %p491 = scmp.lt.s32.totalorder %s490, 7
        %s492 = scalar_select %p491, %s490, 7
        %s493 = smul.addr %s492, 4
        %s494 = scalar_lea.vmem %s9, %s493
        %p495 = pneg %p267
        %p496 = pneg %p264
        %p497 = pneg %p288
        %p498 = pneg %p285
        %p499 = pneg %p309
        %p500 = pneg %p306
        %p501 = pneg %p330
        %p502 = pneg %p327
        %p503 = pneg %p356
        %p504 = pneg %p353
        %s505 = sand.u32 %s343, 1
        %s506 = scalar_lea.sflag [#allocation10], %s505
        %s507 = sand.u32 %s343, 1
        %s508 = smul.addr %s507, 4
        %s509 = scalar_lea.vmem [#allocation11], %s508
        %p510 = scmp.lt.s32.totalorder %s35, 0
        %s511 = scalar_select %p510, %s35, 0
        %s512 = smul.addr %s511, 4
        %s513 = scalar_lea.vmem %s7, %s512
        %p514 = scmp.lt.s32.totalorder %s35, 0
        %s515 = scalar_select %p514, %s35, 0
        %s516 = scalar_lea.vmem %s8, %s515
        %s517 = smul.u32 8, %s35
        %p518 = scmp.lt.s32.totalorder %s517, 7
        %s519 = scalar_select %p518, %s517, 7
        %s520 = smul.addr %s519, 4
        %s521 = scalar_lea.vmem %s9, %s520
        %s522 = smul.u32 8, %s35
        %p524 = scmp.eq.s32.totalorder %s35, 0
        // Predicated region
        $region77: #{tpu_custom_call.1} parent=71 // pred_check
          %p525 = pneg %p524
        $region78: #{tpu_custom_call.1} parent=71 // pred_check_branch
          %527 = sbr.rel (%p525) target = $region80
        $region79: #{tpu_custom_call.1} parent=71 // pred_region
          %v528 = vld [vmem:[%s454] sm:$0xf]
          %v529 = vld [vmem:[%s1] sm:$0xf]
          %v530 = vld [vmem:[%s1 + $0x4] sm:$0xf]
          %v531 = vld [vmem:[%s1 + $0x8] sm:$0xf]
          %v532 = vld [vmem:[%s1 + $0xc] sm:$0xf]
          %v533 = vld [vmem:[%s2] sm:$0x1]
          %v535 = vperm.slane %v533, 0
          %v541 = vunpack.c.l.b16 %v529
          %v542 = vunpack.c.l.b16 %v530
          %v543 = vunpack.c.l.b16 %v531
          %v544 = vunpack.c.l.b16 %v532
          %v545 = vpack.c.b16 %v542, %v541
          %v546 = vpack.c.b16 %v544, %v543
          %vm549 = vcmask 261120
          %v551 = vsel %vm549, %v528, 0
          %553 = vmatpush.bf16.msra.mxu0 0
          %554 = vmatpush.bf16.msra.mxu0 0
          %555 = vmatpush.bf16.msra.mxu0 0
          %556 = vmatpush.bf16.msra.mxu0 0
          %557 = vmatpush.bf16.msra.mxu0 0
          %558 = vmatpush.bf16.msra.mxu0 0
          %559 = vmatpush.bf16.msra.mxu0 %v546
          %560 = vmatpush.bf16.msra.mxu0 %v545
          %561 = vmatmul.bf16.gmra.mxu0 %v551
          %v562 = vpop.f32.mrf.mxu0
          %v563 = vadd.f32 %v535, %v562
          %v564 = vpop.f32.mrf.mxu0
          %565 = vdwg.mxu0
          %v566 = vpack.c.bf16 %v563, %v563
          %vm567 = vcmask 60416
          %568 = vst.msk [vmem:[#allocation2] sm:$0xf] %vm567, %v566
          %570 = vrot.lane.b32.xlu0 %v566, 96
          %v571 = vpop.permute.xlu0 %570
          %573 = vst.msk [vmem:[#allocation3] sm:$0xf] %vm567, %v571
          %574 = vrot.lane.b32.xlu0 %v566, 64
          %v575 = vpop.permute.xlu0 %574
          %577 = vst.msk [vmem:[#allocation4] sm:$0xf] %vm567, %v575
          %578 = vrot.lane.b32.xlu0 %v566, 120
          %v579 = vpop.permute.xlu0 %578
          %s581 = scalar_lea.vmem [#allocation2], 4
          %582 = vst.msk [vmem:[%s581] sm:$0xf] %vm567, %v579
          %583 = vrot.lane.b32.xlu0 %v566, 88
          %v584 = vpop.permute.xlu0 %583
          %s586 = scalar_lea.vmem [#allocation3], 4
          %587 = vst.msk [vmem:[%s586] sm:$0xf] %vm567, %v584
          %588 = vrot.lane.b32.xlu0 %v566, 56
          %v589 = vpop.permute.xlu0 %588
          %s591 = scalar_lea.vmem [#allocation4], 4
          %592 = vst.msk [vmem:[%s591] sm:$0xf] %vm567, %v589
          %593 = vrot.lane.b32.xlu0 %v566, 112
          %v594 = vpop.permute.xlu0 %593
          %s596 = scalar_lea.vmem [#allocation2], 8
          %597 = vst.msk [vmem:[%s596] sm:$0xf] %vm567, %v594
          %598 = vrot.lane.b32.xlu0 %v566, 80
          %v599 = vpop.permute.xlu0 %598
          %s601 = scalar_lea.vmem [#allocation3], 8
          %602 = vst.msk [vmem:[%s601] sm:$0xf] %vm567, %v599
          %603 = vrot.lane.b32.xlu0 %v566, 48
          %v604 = vpop.permute.xlu0 %603
          %s606 = scalar_lea.vmem [#allocation4], 8
          %607 = vst.msk [vmem:[%s606] sm:$0xf] %vm567, %v604
          %608 = vrot.lane.b32.xlu0 %v566, 104
          %v609 = vpop.permute.xlu0 %608
          %s611 = scalar_lea.vmem [#allocation2], 12
          %612 = vst.msk [vmem:[%s611] sm:$0xf] %vm567, %v609
          %613 = vrot.lane.b32.xlu0 %v566, 72
          %v614 = vpop.permute.xlu0 %613
          %s616 = scalar_lea.vmem [#allocation3], 12
          %617 = vst.msk [vmem:[%s616] sm:$0xf] %vm567, %v614
          %618 = vrot.lane.b32.xlu0 %v566, 40
          %v619 = vpop.permute.xlu0 %618
          %s621 = scalar_lea.vmem [#allocation4], 12
          %622 = vst.msk [vmem:[%s621] sm:$0xf] %vm567, %v619
          %v623 = vlaneseq
          %v624 = vshrl.u32 %v623, 7
          %v625 = vlaneseq
          %v626 = vand.u32 %v625, 127
          %vm627 = vcmp.ge.s32.totalorder %v624, %v626
          %v628 = vld [vmem:[#allocation2] sm:$0xf]
          %v629 = vld [vmem:[#allocation2 + $0x4] sm:$0xf]
          %v630 = vld [vmem:[#allocation2 + $0x8] sm:$0xf]
          %v631 = vld [vmem:[#allocation2 + $0xc] sm:$0xf]
          %v632 = vld [vmem:[#allocation3] sm:$0xf]
          %v633 = vld [vmem:[#allocation3 + $0x4] sm:$0xf]
          %v634 = vld [vmem:[#allocation3 + $0x8] sm:$0xf]
          %v635 = vld [vmem:[#allocation3 + $0xc] sm:$0xf]
          %v636 = vld [vmem:[#allocation4] sm:$0xf]
          %v637 = vld [vmem:[#allocation4 + $0x4] sm:$0xf]
          %v638 = vld [vmem:[#allocation4 + $0x8] sm:$0xf]
          %v639 = vld [vmem:[#allocation4 + $0xc] sm:$0xf]
          %vm640 = vcmask 64512
          %v642 = vsel %vm640, %v628, 0
          %v645 = vsel %vm640, %v632, 0
          %647 = vmatpush.bf16.xpose.msra.mxu0 0
          %648 = vmatpush.bf16.xpose.msra.mxu0 0
          %649 = vmatpush.bf16.xpose.msra.mxu0 0
          %650 = vmatpush.bf16.xpose.msra.mxu0 0
          %651 = vmatpush.bf16.xpose.msra.mxu0 0
          %652 = vmatpush.bf16.xpose.msra.mxu0 0
          %653 = vmatpush.bf16.xpose.msra.mxu0 0
          %654 = vmatpush.bf16.xpose.msra.mxu0 %v645
          %655 = vmatmul.bf16.gmra.mxu0 %v642
          %v656 = vpop.f32.mrf.mxu0
          %v657 = vadd.f32 0.0, %v656
          %v658 = vpop.f32.mrf.mxu0
          %659 = vdwg.mxu0
          %v661 = vsel %vm640, %v629, 0
          %v664 = vsel %vm640, %v633, 0
          %666 = vmatpush.bf16.xpose.msra.mxu0 0
          %667 = vmatpush.bf16.xpose.msra.mxu0 0
          %668 = vmatpush.bf16.xpose.msra.mxu0 0
          %669 = vmatpush.bf16.xpose.msra.mxu0 0
          %670 = vmatpush.bf16.xpose.msra.mxu0 0
          %671 = vmatpush.bf16.xpose.msra.mxu0 0
          %672 = vmatpush.bf16.xpose.msra.mxu0 0
          %673 = vmatpush.bf16.xpose.msra.mxu0 %v664
          %674 = vmatmul.bf16.gmra.mxu0 %v661
          %v675 = vpop.f32.mrf.mxu0
          %v676 = vadd.f32 0.0, %v675
          %v677 = vpop.f32.mrf.mxu0
          %678 = vdwg.mxu0
          %v680 = vsel %vm640, %v630, 0
          %v683 = vsel %vm640, %v634, 0
          %685 = vmatpush.bf16.xpose.msra.mxu0 0
          %686 = vmatpush.bf16.xpose.msra.mxu0 0
          %687 = vmatpush.bf16.xpose.msra.mxu0 0
          %688 = vmatpush.bf16.xpose.msra.mxu0 0
          %689 = vmatpush.bf16.xpose.msra.mxu0 0
          %690 = vmatpush.bf16.xpose.msra.mxu0 0
          %691 = vmatpush.bf16.xpose.msra.mxu0 0
          %692 = vmatpush.bf16.xpose.msra.mxu0 %v683
          %693 = vmatmul.bf16.gmra.mxu0 %v680
          %v694 = vpop.f32.mrf.mxu0
          %v695 = vadd.f32 0.0, %v694
          %v696 = vpop.f32.mrf.mxu0
          %697 = vdwg.mxu0
          %v699 = vsel %vm640, %v631, 0
          %v702 = vsel %vm640, %v635, 0
          %704 = vmatpush.bf16.xpose.msra.mxu0 0
          %705 = vmatpush.bf16.xpose.msra.mxu0 0
          %706 = vmatpush.bf16.xpose.msra.mxu0 0
          %707 = vmatpush.bf16.xpose.msra.mxu0 0
          %708 = vmatpush.bf16.xpose.msra.mxu0 0
          %709 = vmatpush.bf16.xpose.msra.mxu0 0
          %710 = vmatpush.bf16.xpose.msra.mxu0 0
          %711 = vmatpush.bf16.xpose.msra.mxu0 %v702
          %712 = vmatmul.bf16.gmra.mxu0 %v699
          %v713 = vpop.f32.mrf.mxu0
          %v714 = vadd.f32 0.0, %v713
          %v715 = vpop.f32.mrf.mxu0
          %716 = vdwg.mxu0
          %v717 = vsel %vm627, 1, 0
          %vm718 = vcmp.eq.s32.totalorder %v717, 1
          %v719 = vsel %vm718, %v657, -1e+30
          %v720 = vsel %vm718, %v676, -1e+30
          %v721 = vsel %vm718, %v695, -1e+30
          %v722 = vsel %vm718, %v714, -1e+30
          %v723 = vsel %vm640, %v719, -inf
          %724 = vmax.xlane.f32.xlu0 %v723
          %v725 = vpop.xlane.xlu0 %724
          %v726 = vsel %vm640, %v720, -inf
          %727 = vmax.xlane.f32.xlu0 %v726
          %v728 = vpop.xlane.xlu0 %727
          %v729 = vsel %vm640, %v721, -inf
          %730 = vmax.xlane.f32.xlu0 %v729
          %v731 = vpop.xlane.xlu0 %730
          %v732 = vsel %vm640, %v722, -inf
          %733 = vmax.xlane.f32.xlu0 %v732
          %v734 = vpop.xlane.xlu0 %733
          %v735 = vmax.f32 %v725, -1e+30
          %v736 = vmax.f32 %v728, -1e+30
          %v737 = vmax.f32 %v731, -1e+30
          %v738 = vmax.f32 %v734, -1e+30
          %v739 = vsub.f32 -1e+30, %v735
          %v740 = vsub.f32 -1e+30, %v736
          %v741 = vsub.f32 -1e+30, %v737
          %v742 = vsub.f32 -1e+30, %v738
          %v743 = vmul.f32 %v739, 1.442695
          %v744 = vpow.pop %v743
          %v745 = vmul.f32 %v740, 1.442695
          %v746 = vpow.pop %v745
          %v747 = vmul.f32 %v741, 1.442695
          %v748 = vpow.pop %v747
          %v749 = vmul.f32 %v742, 1.442695
          %v750 = vpow.pop %v749
          %v751 = vsub.f32 %v719, %v735
          %v752 = vsub.f32 %v720, %v736
          %v753 = vsub.f32 %v721, %v737
          %v754 = vsub.f32 %v722, %v738
          %v755 = vmul.f32 %v751, 1.442695
          %v756 = vpow.pop %v755
          %v757 = vmul.f32 %v752, 1.442695
          %v758 = vpow.pop %v757
          %v759 = vmul.f32 %v753, 1.442695
          %v760 = vpow.pop %v759
          %v761 = vmul.f32 %v754, 1.442695
          %v762 = vpow.pop %v761
          %v763 = vmul.f32 %v744, 0.0
          %v764 = vmul.f32 %v746, 0.0
          %v765 = vmul.f32 %v748, 0.0
          %v766 = vmul.f32 %v750, 0.0
          %v767 = vsel %vm640, %v756, 0.0
          %768 = vadd.xlane.f32.xlu0 %v767
          %v769 = vpop.xlane.xlu0 %768
          %v770 = vsel %vm640, %v758, 0.0
          %771 = vadd.xlane.f32.xlu0 %v770
          %v772 = vpop.xlane.xlu0 %771
          %v773 = vsel %vm640, %v760, 0.0
          %774 = vadd.xlane.f32.xlu0 %v773
          %v775 = vpop.xlane.xlu0 %774
          %v776 = vsel %vm640, %v762, 0.0
          %777 = vadd.xlane.f32.xlu0 %v776
          %v778 = vpop.xlane.xlu0 %777
          %v779 = vadd.f32 %v763, %v769
          %v780 = vadd.f32 %v764, %v772
          %v781 = vadd.f32 %v765, %v775
          %v782 = vadd.f32 %v766, %v778
          %v783 = vpack.c.bf16 %v756, %v756
          %v784 = vpack.c.bf16 %v758, %v758
          %v785 = vpack.c.bf16 %v760, %v760
          %v786 = vpack.c.bf16 %v762, %v762
          %v788 = vsel %vm640, %v783, 0
          %vm790 = vcmask 1043456
          %v792 = vsel %vm790, %v636, 0
          %794 = vmatpush.bf16.msra.mxu0 0
          %795 = vmatpush.bf16.msra.mxu0 0
          %796 = vmatpush.bf16.msra.mxu0 0
          %797 = vmatpush.bf16.msra.mxu0 0
          %798 = vmatpush.bf16.msra.mxu0 0
          %799 = vmatpush.bf16.msra.mxu0 0
          %800 = vmatpush.bf16.msra.mxu0 0
          %801 = vmatpush.bf16.msra.mxu0 %v792
          %802 = vmatmul.bf16.gmra.mxu0 %v788
          %v803 = vpop.f32.mrf.mxu0
          %v804 = vadd.f32 0.0, %v803
          %v805 = vpop.f32.mrf.mxu0
          %806 = vdwg.mxu0
          %v808 = vsel %vm640, %v784, 0
          %v811 = vsel %vm790, %v637, 0
          %813 = vmatpush.bf16.msra.mxu0 0
          %814 = vmatpush.bf16.msra.mxu0 0
          %815 = vmatpush.bf16.msra.mxu0 0
          %816 = vmatpush.bf16.msra.mxu0 0
          %817 = vmatpush.bf16.msra.mxu0 0
          %818 = vmatpush.bf16.msra.mxu0 0
          %819 = vmatpush.bf16.msra.mxu0 0
          %820 = vmatpush.bf16.msra.mxu0 %v811
          %821 = vmatmul.bf16.gmra.mxu0 %v808
          %v822 = vpop.f32.mrf.mxu0
          %v823 = vadd.f32 0.0, %v822
          %v824 = vpop.f32.mrf.mxu0
          %825 = vdwg.mxu0
          %v827 = vsel %vm640, %v785, 0
          %v830 = vsel %vm790, %v638, 0
          %832 = vmatpush.bf16.msra.mxu0 0
          %833 = vmatpush.bf16.msra.mxu0 0
          %834 = vmatpush.bf16.msra.mxu0 0
          %835 = vmatpush.bf16.msra.mxu0 0
          %836 = vmatpush.bf16.msra.mxu0 0
          %837 = vmatpush.bf16.msra.mxu0 0
          %838 = vmatpush.bf16.msra.mxu0 0
          %839 = vmatpush.bf16.msra.mxu0 %v830
          %840 = vmatmul.bf16.gmra.mxu0 %v827
          %v841 = vpop.f32.mrf.mxu0
          %v842 = vadd.f32 0.0, %v841
          %v843 = vpop.f32.mrf.mxu0
          %844 = vdwg.mxu0
          %v846 = vsel %vm640, %v786, 0
          %v849 = vsel %vm790, %v639, 0
          %851 = vmatpush.bf16.msra.mxu0 0
          %852 = vmatpush.bf16.msra.mxu0 0
          %853 = vmatpush.bf16.msra.mxu0 0
          %854 = vmatpush.bf16.msra.mxu0 0
          %855 = vmatpush.bf16.msra.mxu0 0
          %856 = vmatpush.bf16.msra.mxu0 0
          %857 = vmatpush.bf16.msra.mxu0 0
          %858 = vmatpush.bf16.msra.mxu0 %v849
          %859 = vmatmul.bf16.gmra.mxu0 %v846
          %v860 = vpop.f32.mrf.mxu0
          %v861 = vadd.f32 0.0, %v860
          %v862 = vpop.f32.mrf.mxu0
          %863 = vdwg.mxu0
          %v864 = vadd.f32 %v763, %v804
          %v865 = vadd.f32 %v764, %v823
          %v866 = vadd.f32 %v765, %v842
          %v867 = vadd.f32 %v766, %v861
          %v868 = vrcp.pop %v779
          %v869 = vrcp.pop %v780
          %v870 = vrcp.pop %v781
          %v871 = vrcp.pop %v782
          %v872 = vmul.f32 %v864, %v868
          %v873 = vmul.f32 %v865, %v869
          %v874 = vmul.f32 %v866, %v870
          %v875 = vmul.f32 %v867, %v871
          %876 = vst.msk [vmem:[#allocation5] sm:$0xff] %vm640, %v872
          %878 = vrot.lane.b32.xlu0 %v873, 8
          %v879 = vpop.permute.xlu0 %878
          %vm881 = vcmask 130112
          %882 = vst.msk [vmem:[#allocation5] sm:$0xff] %vm881, %v879
          %884 = vrot.lane.b32.xlu0 %v874, 16
          %v885 = vpop.permute.xlu0 %884
          %vm887 = vcmask 195712
          %888 = vst.msk [vmem:[#allocation5] sm:$0xff] %vm887, %v885
          %890 = vrot.lane.b32.xlu0 %v875, 24
          %v891 = vpop.permute.xlu0 %890
          %vm893 = vcmask 261312
          %894 = vst.msk [vmem:[#allocation5] sm:$0xff] %vm893, %v891
          %v895 = vld [vmem:[#allocation5] sm:$0xff]
          %v896 = vpack.c.bf16 %v895, %v895
          %v897 = vld [vmem:[%s3] sm:$0xf]
          %v898 = vld [vmem:[%s3 + $0x4] sm:$0xf]
          %v899 = vld [vmem:[%s3 + $0x8] sm:$0xf]
          %v900 = vld [vmem:[%s3 + $0xc] sm:$0xf]
          %v901 = vld [vmem:[%s4] sm:$0x1]
          %v903 = vperm.slane %v901, 0
          %v909 = vunpack.c.l.b16 %v897
          %v910 = vunpack.c.l.b16 %v898
          %v911 = vunpack.c.l.b16 %v899
          %v912 = vunpack.c.l.b16 %v900
          %v913 = vpack.c.b16 %v910, %v909
          %v914 = vpack.c.b16 %v912, %v911
          %v918 = vsel %vm549, %v896, 0
          %920 = vmatpush.bf16.msra.mxu0 0
          %921 = vmatpush.bf16.msra.mxu0 0
          %922 = vmatpush.bf16.msra.mxu0 0
          %923 = vmatpush.bf16.msra.mxu0 0
          %924 = vmatpush.bf16.msra.mxu0 0
          %925 = vmatpush.bf16.msra.mxu0 0
          %926 = vmatpush.bf16.msra.mxu0 %v914
          %927 = vmatpush.bf16.msra.mxu0 %v913
          %928 = vmatmul.bf16.gmra.mxu0 %v918
          %v929 = vpop.f32.mrf.mxu0
          %v930 = vadd.f32 %v903, %v929
          %v931 = vpop.f32.mrf.mxu0
          %932 = vdwg.mxu0
          %v933 = vld [vmem:[%s454] sm:$0xf]
          %v934 = vunpack.c.l.bf16 %v933
          %v935 = vadd.f32 %v934, %v930
          %v936 = vld [vmem:[%s5] sm:$0x1]
          %v937 = vld [vmem:[%s6] sm:$0x1]
          %v938 = vsel %vm549, %v935, 0.0
          %939 = vadd.xlane.f32.xlu0 %v938
          %v940 = vpop.xlane.xlu0 %939
          %v941 = vrcp.pop 32.0
          %v942 = vmul.f32 32.0, %v941
          %v943 = vsub.f32 1.0, %v942
          %v944 = vmul.f32 %v941, %v943
          %v945 = vadd.f32 %v941, %v944
          %vm946 = vweird.f32 %v941
          %v947 = vsel %vm946, %v941, %v945
          %v948 = vmul.f32 %v940, %v947
          %v949 = vsub.f32 %v935, %v948
          %v950 = vmul.f32 %v949, %v949
          %v951 = vsel %vm549, %v950, 0.0
          %952 = vadd.xlane.f32.xlu0 %v951
          %v953 = vpop.xlane.xlu0 %952
          %v954 = vmul.f32 %v953, %v947
          %v955 = vadd.f32 %v954, 1e-05
          %v956 = vrsqrt.pop %v955
          %v957 = vmul.f32 %v956, %v955
          %v958 = vmul.f32 %v957, %v956
          %v959 = vmul.f32 0.5, %v958
          %v960 = vsub.f32 1.5, %v959
          %v961 = vmul.f32 %v956, %v960
          %vm962 = vweird.f32 %v955
          %vm963 = vweird.f32 %v956
          %vm964 = vmor %vm962, %vm963
          %v965 = vsel %vm964, %v956, %v961
          %v966 = vmul.f32 %v949, %v965
          %v968 = vperm.slane %v936, 0
          %v970 = vmul.f32 %v966, %v968
          %v972 = vperm.slane %v937, 0
          %v974 = vadd.f32 %v970, %v972
          %975 = vst.msk [vmem:[#allocation6] sm:$0xff] %vm549, %v974
          %976 = vst.msk [vmem:[#allocation7] sm:$0xff] %vm549, 0.0
        $region80: #{tpu_custom_call.1} parent=71 // pred_fallthru
          _
        %v977 = vld [vmem:[#allocation6] sm:$0xff]
        %v978 = vpack.c.bf16 %v977, %v977
        %v979 = vld [vmem:[%s513] sm:$0xf]
        %v980 = vld [vmem:[%s513 + $0x4] sm:$0xf]
        %v981 = vld [vmem:[%s513 + $0x8] sm:$0xf]
        %v982 = vld [vmem:[%s513 + $0xc] sm:$0xf]
        %v983 = vld [vmem:[%s516] sm:$0x1]
        %v985 = vperm.slane %v983, 0
        %v991 = vunpack.c.l.b16 %v979
        %v992 = vunpack.c.l.b16 %v980
        %v993 = vunpack.c.l.b16 %v981
        %v994 = vunpack.c.l.b16 %v982
        %v995 = vpack.c.b16 %v992, %v991
        %v996 = vpack.c.b16 %v994, %v993
        %vm999 = vcmask 261120
        %v1001 = vsel %vm999, %v978, 0
        %1003 = vmatpush.bf16.msra.mxu0 0
        %1004 = vmatpush.bf16.msra.mxu0 0
        %1005 = vmatpush.bf16.msra.mxu0 0
        %1006 = vmatpush.bf16.msra.mxu0 0
        %1007 = vmatpush.bf16.msra.mxu0 0
        %1008 = vmatpush.bf16.msra.mxu0 0
        %1009 = vmatpush.bf16.msra.mxu0 %v996
        %1010 = vmatpush.bf16.msra.mxu0 %v995
        %1011 = vmatmul.bf16.gmra.mxu0 %v1001
        %v1012 = vpop.f32.mrf.mxu0
        %v1013 = vadd.f32 %v985, %v1012
        %v1014 = vpop.f32.mrf.mxu0
        %1015 = vdwg.mxu0
        %v1016 = vmax.f32 %v1013, 0.0
        %v1017 = vld [vmem:[#allocation7] sm:$0xff]
        %v1018 = vpack.c.bf16 %v1016, %v1016
        %v1019 = vld [vmem:[%s521] sm:$0xf]
        %v1020 = vld [vmem:[%s521 + $0x4] sm:$0xf]
        %v1021 = vld [vmem:[%s521 + $0x8] sm:$0xf]
        %v1022 = vld [vmem:[%s521 + $0xc] sm:$0xf]
        %v1023 = vld [vmem:[%s521 + $0x10] sm:$0xf]
        %v1024 = vld [vmem:[%s521 + $0x14] sm:$0xf]
        %v1025 = vld [vmem:[%s521 + $0x18] sm:$0xf]
        %v1026 = vld [vmem:[%s521 + $0x1c] sm:$0xf]
        %v1035 = vunpack.c.l.b16 %v1019
        %v1036 = vunpack.c.l.b16 %v1020
        %v1037 = vunpack.c.l.b16 %v1021
        %v1038 = vunpack.c.l.b16 %v1022
        %v1039 = vunpack.c.l.b16 %v1023
        %v1040 = vunpack.c.l.b16 %v1024
        %v1041 = vunpack.c.l.b16 %v1025
        %v1042 = vunpack.c.l.b16 %v1026
        %v1043 = vpack.c.b16 %v1036, %v1035
        %v1044 = vpack.c.b16 %v1038, %v1037
        %v1045 = vpack.c.b16 %v1040, %v1039
        %v1046 = vpack.c.b16 %v1042, %v1041
        %vm1051 = vcmask 523264
        %v1053 = vsel %vm1051, %v1018, 0
        %1055 = vmatpush.bf16.msra.mxu0 0
        %1056 = vmatpush.bf16.msra.mxu0 0
        %1057 = vmatpush.bf16.msra.mxu0 0
        %1058 = vmatpush.bf16.msra.mxu0 0
        %1059 = vmatpush.bf16.msra.mxu0 %v1046
        %1060 = vmatpush.bf16.msra.mxu0 %v1045
        %1061 = vmatpush.bf16.msra.mxu0 %v1044
        %1062 = vmatpush.bf16.msra.mxu0 %v1043
        %1063 = vmatmul.bf16.gmra.mxu0 %v1053
        %v1064 = vpop.f32.mrf.mxu0
        %v1065 = vadd.f32 0.0, %v1064
        %v1066 = vpop.f32.mrf.mxu0
        %1067 = vdwg.mxu0
        %v1068 = vadd.f32 %v1017, %v1065
        %1069 = vst.msk [vmem:[#allocation7] sm:$0xff] %vm999, %v1068
        // Predicated region
        $region81: #{tpu_custom_call.1} parent=71 // pred_check
          %p1070 = pneg %p524
        $region82: #{tpu_custom_call.1} parent=71 // pred_check_branch
          %1072 = sbr.rel (%p1070) target = $region84
        $region83: #{tpu_custom_call.1} parent=71 // pred_region
          %v1073 = vld [vmem:[#allocation6] sm:$0xff]
          %v1074 = vld [vmem:[#allocation7] sm:$0xff]
          %v1075 = vadd.f32 %v1073, %v1074
          %v1076 = vld [vmem:[%s10] sm:$0x1]
          %v1078 = vperm.slane %v1076, 0
          %v1080 = vadd.f32 %v1075, %v1078
          %v1081 = vld [vmem:[%s11] sm:$0x1]
          %v1082 = vld [vmem:[%s12] sm:$0x1]
          %v1083 = vsel %vm999, %v1080, 0.0
          %1084 = vadd.xlane.f32.xlu0 %v1083
          %v1085 = vpop.xlane.xlu0 %1084
          %v1086 = vrcp.pop 32.0
          %v1087 = vmul.f32 32.0, %v1086
          %v1088 = vsub.f32 1.0, %v1087
          %v1089 = vmul.f32 %v1086, %v1088
          %v1090 = vadd.f32 %v1086, %v1089
          %vm1091 = vweird.f32 %v1086
          %v1092 = vsel %vm1091, %v1086, %v1090
          %v1093 = vmul.f32 %v1085, %v1092
          %v1094 = vsub.f32 %v1080, %v1093
          %v1095 = vmul.f32 %v1094, %v1094
          %v1096 = vsel %vm999, %v1095, 0.0
          %1097 = vadd.xlane.f32.xlu0 %v1096
          %v1098 = vpop.xlane.xlu0 %1097
          %v1099 = vmul.f32 %v1098, %v1092
          %v1100 = vadd.f32 %v1099, 1e-05
          %v1101 = vrsqrt.pop %v1100
          %v1102 = vmul.f32 %v1101, %v1100
          %v1103 = vmul.f32 %v1102, %v1101
          %v1104 = vmul.f32 0.5, %v1103
          %v1105 = vsub.f32 1.5, %v1104
          %v1106 = vmul.f32 %v1101, %v1105
          %vm1107 = vweird.f32 %v1100
          %vm1108 = vweird.f32 %v1101
          %vm1109 = vmor %vm1107, %vm1108
          %v1110 = vsel %vm1109, %v1101, %v1106
          %v1111 = vmul.f32 %v1094, %v1110
          %v1113 = vperm.slane %v1081, 0
          %v1115 = vmul.f32 %v1111, %v1113
          %v1117 = vperm.slane %v1082, 0
          %v1119 = vadd.f32 %v1115, %v1117
          %v1120 = vpack.c.bf16 %v1119, %v1119
          %vm1121 = vcmask 257024
          %1122 = vst.msk [vmem:[%s509] sm:$0xf] %vm1121, %v1120
        $region84: #{tpu_custom_call.1} parent=71 // pred_fallthru
          _
        %s1123 = sand.u32 %s343, 1
        %s1124 = scalar_lea.sflag [#allocation10], %s1123
        %s1125 = sand.u32 %s343, 1
        %s1126 = smul.addr %s1125, 4
        %s1127 = scalar_lea.vmem [#allocation11], %s1126
        // Predicated region
        $region85: #{tpu_custom_call.1} parent=71 // pred_check
          %p1128 = pneg %p353
        $region86: #{tpu_custom_call.1} parent=71 // pred_check_branch
          %1130 = sbr.rel (%p1128) target = $region88
        $region87: #{tpu_custom_call.1} parent=71 // pred_region
          %1132 = vsyncadd %s1124, 0
          %s1133 = smul.addr %s34, 4
          %s1134 = scalar_lea.hbm %s13, %s1133
          %s1136 = sshll.u32 %s1127, 4
          %s1137 = int_to_ptr.vmem [resolvable:$true] %s1136
          %s1138 = sshll.u32 %s1134, 4
          %s1139 = int_to_ptr.hbm [resolvable:$true] %s1138
          %1141 = dma.vmem_to_hbm [thread:$0]  %s1137, 64, %s1139, %s1124
        $region88: #{tpu_custom_call.1} parent=71 // pred_fallthru
          _
      $region72: #{tpu_custom_call.1} parent=5 // pred_fallthru
        _
      %p1142 = scmp.le.s32.totalorder 2, %s25
      // Predicated region
      $region89: #{tpu_custom_call.1} parent=5 // pred_check
        %p1143 = pneg %p1142
      $region90: #{tpu_custom_call.1} parent=5 // pred_check_branch
        %1145 = sbr.rel (%p1143) target = $region92
      $region91: #{tpu_custom_call.1} parent=5 // pred_region
        %s1146 = ssub.s32 %s25, 2
        // Predicated region
        $region93: #{tpu_custom_call.1} parent=91 // pred_check
          %p1147 = pneg %p359
        $region94: #{tpu_custom_call.1} parent=91 // pred_check_branch
          %1149 = sbr.rel (%p1147) target = $region96
        $region95: #{tpu_custom_call.1} parent=91 // pred_region
          %s1150 = sand.u32 %s344, 1
          %s1151 = scalar_lea.sflag [#allocation10], %s1150
          %s1152 = sand.u32 %s344, 1
          %s1153 = smul.addr %s1152, 4
          %s1154 = scalar_lea.vmem [#allocation11], %s1153
          %1156 = dma.done %s1151, 64
        $region96: #{tpu_custom_call.1} parent=91 // pred_fallthru
          _
      $region92: #{tpu_custom_call.1} parent=5 // pred_fallthru
        _
    $region6: #{tpu_custom_call.1} parent=1 // loop_footer
      %s29 = sadd.s32 1, %s25
    $region7: #{tpu_custom_call.1} parent=1 // loop_footer_branch
      %24 = sbr.rel target = $region3
    $region8: #{tpu_custom_call.1} parent=1 // loop_exit
      _
    %1157 = vsyncpa [#allocation9], 1
    %s1158 = scalar_lea.sflag [#allocation9], 1
    %1159 = vsyncpa %s1158, 1
    %1160 = vsyncpa [#allocation10], 1
    %s1161 = scalar_lea.sflag [#allocation10], 1
    %1162 = vsyncpa %s1161, 1

</llo_original>
